<compile_context>
chip_gen: v7x
topology: tpu7x:2x2x1
jax: 0.10.0
libtpu: 0.0.40
codegen_flags: <defaults>
</compile_context>

<pallas_src>
import functools

import jax
import jax.numpy as jnp
from jax.experimental import pallas as pl
from jax.experimental.pallas import tpu as pltpu


def _encoder_layer_kernel(
    src_ref,
    wqkv_ref, bqkv_ref, wo_ref, bo_ref,
    g1_ref, be1_ref,
    w1_ref, b1_ref, w2_ref, b2_ref,
    g2_ref, be2_ref,
    wp_ref, bp_ref, wc1_ref, bc1_ref, wc2_ref, bc2_ref,
    out_ref,
    *, n_heads, eps,
):
    f32 = jnp.float32
    bf16 = jnp.bfloat16
    bs, L, D = src_ref.shape
    d_k = D // n_heads
    n_rows = bs * L
    scale = float(d_k ** -0.5)    # _ScaledDotProductAttention.scale (lsa=False)

    def mm(a, b):
        # MXU matmul: bf16 operands, f32 accumulation.
        return jnp.dot(a.astype(bf16), b.astype(bf16),
                       preferred_element_type=f32)

    def gelu(x):
        # TODO(synk): torch nn.GELU defaults to exact erf; tanh approximation
        # used here (EUP-friendly, ~1e-3 max abs diff).
        return jax.nn.gelu(x)

    x = src_ref[...].astype(f32).reshape(n_rows, D)

    # ---------------- fused QKV projection (one [D, 3D] matmul) -------------
    qkv = mm(x, wqkv_ref[...]) + bqkv_ref[...].astype(f32)
    q3 = (qkv[:, :D] * scale).reshape(bs, L, D)     # fold 1/sqrt(d_k) into q
    k3 = qkv[:, D:2 * D].reshape(bs, L, D)
    v3 = qkv[:, 2 * D:].reshape(bs, L, D)

    # ------------- multi-head self-attention (batched over bs) --------------
    ctx_heads = []
    for h in range(n_heads):
        sl = slice(h * d_k, (h + 1) * d_k)
        qh = q3[:, :, sl].astype(bf16)
        kh = k3[:, :, sl].astype(bf16)
        vh = v3[:, :, sl].astype(bf16)
        scores = jax.lax.dot_general(                       # [bs, L, L]
            qh, kh, (((2,), (2,)), ((0,), (0,))),
            preferred_element_type=f32)
        m = jnp.max(scores, axis=-1, keepdims=True)
        e = jnp.exp(scores - m)
        attn = e * pl.reciprocal(jnp.sum(e, axis=-1, keepdims=True),
                                 approx=True)
        ctx_heads.append(jax.lax.dot_general(               # [bs, L, d_k]
            attn.astype(bf16), vh, (((2,), (1,)), ((0,), (0,))),
            preferred_element_type=f32))
    ctx = jnp.concatenate(ctx_heads, axis=-1).reshape(n_rows, D)

    # single full output projection + attention residual
    x1 = x + mm(ctx, wo_ref[...]) + bo_ref[...].astype(f32)
    # (attn_dropout / proj_dropout / dropout_attn are identity at p=0)

    # -------- BatchNorm1d over (bs*q_len) rows per d_model channel ----------
    # Training-mode batch statistics (biased variance), matching a freshly
    # constructed torch BatchNorm1d forward.
    # TODO(synk): eval-mode running stats not modeled (no checkpoint to load).
    def batch_norm(xr, g_ref, b_ref):
        mean = jnp.mean(xr, axis=0, keepdims=True)
        var = jnp.mean((xr - mean) ** 2, axis=0, keepdims=True)
        inv = jax.lax.rsqrt(var + eps)
        return (xr - mean) * (inv * g_ref[...].astype(f32)) + b_ref[...].astype(f32)

    x1 = batch_norm(x1, g1_ref, be1_ref)

    # --------------- position-wise feed-forward + residual ------------------
    hid = gelu(mm(x1, w1_ref[...]) + b1_ref[...].astype(f32))
    x2 = x1 + mm(hid, w2_ref[...]) + b2_ref[...].astype(f32)
    x2 = batch_norm(x2, g2_ref, be2_ref)

    # -------- TCN: DilatedConvEncoder(d_model, [d_model], kernel_size=3) ----
    # Single ConvBlock, dilation=1, final=True -> 1x1-conv projector residual.
    # TODO(synk): the `gamma=0.9` arg of ts2vec DilatedConvEncoder has no
    # public reference; standard ConvBlock (gelu->conv3->gelu->conv3 + proj).
    def same_conv3(h2, w_ref, b_ref):
        # zero-padded "same" shifts built once along q_len (per batch, so no
        # cross-batch bleed), then ONE concatenated-tap matmul with K = 3*D.
        h3 = h2.reshape(bs, L, D)
        zero = jnp.zeros((bs, 1, D), f32)
        h_prev = jnp.concatenate([zero, h3[:, :-1, :]], axis=1)   # h[t-1]
        h_next = jnp.concatenate([h3[:, 1:, :], zero], axis=1)    # h[t+1]
        h_cat = jnp.concatenate([h_prev, h3, h_next], axis=-1)    # [bs, L, 3D]
        return mm(h_cat.reshape(n_rows, 3 * D), w_ref[...]) + b_ref[...].astype(f32)

    resid = mm(x2, wp_ref[...]) + bp_ref[...].astype(f32)         # 1x1 projector
    hb = gelu(x2)
    hb = same_conv3(hb, wc1_ref, bc1_ref)
    hb = gelu(hb)
    hb = same_conv3(hb, wc2_ref, bc2_ref)

    out_ref[...] = (hb + resid).reshape(bs, L, D).astype(out_ref.dtype)


def tst_tcn_encoder_layer(src, params, *, n_heads, eps=1e-5):
    bs, L, D = src.shape
    # Fuse Q/K/V weights into one [D, 3D] matmul; conv taps into [3D, D].
    wqkv = jnp.concatenate([params["wq"], params["wk"], params["wv"]], axis=1)
    bqkv = jnp.concatenate([params["bq"], params["bk"], params["bv"]], axis=1)
    args = [
        src, wqkv, bqkv, params["wo"], params["bo"],
        params["bn1_g"], params["bn1_b"],
        params["ff_w1"], params["ff_b1"], params["ff_w2"], params["ff_b2"],
        params["bn2_g"], params["bn2_b"],
        params["proj_w"], params["proj_b"],
        params["conv1_w"].reshape(3 * D, D), params["conv1_b"],
        params["conv2_w"].reshape(3 * D, D), params["conv2_b"],
    ]
    # Whole-array-resident kernel: give Mosaic an explicit VMEM budget with
    # headroom for activations/temps (capped at 64 MiB so it also fits v7x).
    # TODO(synk): for large bs*q_len, tile rows with a ("parallel", ...) grid
    # (BatchNorm would need a separate cross-tile stats pass / accumulator).
    total_bytes = src.size * src.dtype.itemsize + sum(
        a.size * a.dtype.itemsize for a in args)
    vmem_limit = int(min(64 * 2**20, max(32 * 2**20, 16 * total_bytes)))

    kernel = functools.partial(_encoder_layer_kernel, n_heads=n_heads, eps=eps)
    return pl.pallas_call(
        kernel,
        out_shape=jax.ShapeDtypeStruct((bs, L, D), src.dtype),
        in_specs=[pl.BlockSpec(memory_space=pltpu.MemorySpace.VMEM)] * len(args),
        out_specs=pl.BlockSpec(memory_space=pltpu.MemorySpace.VMEM),
        compiler_params=pltpu.CompilerParams(vmem_limit_bytes=vmem_limit),
    )(*args)


def tst_encoder(src, layer_params, *, n_heads, eps=1e-5):
    """TSTEncoder forward (mix_tcn=True, res_attention=False)."""
    out = src
    for p in layer_params:
        out = tst_tcn_encoder_layer(out, p, n_heads=n_heads, eps=eps)
    return out


def init_params(key, d_model, n_heads, d_ff, w_dtype=jnp.bfloat16):
    # Matmul weights in bf16 (MXU-native, halves VMEM/HBM traffic); biases and
    # BatchNorm affine params in f32 (elementwise path stays f32).
    ks = jax.random.split(key, 16)
    f32 = jnp.float32

    def w(k, shape, s=0.05):
        return (s * jax.random.normal(k, shape)).astype(w_dtype)

    def b(k, shape, s=0.02):
        return (s * jax.random.normal(k, shape)).astype(f32)

    return dict(
        wq=w(ks[0], (d_model, d_model)), bq=b(ks[1], (1, d_model)),
        wk=w(ks[2], (d_model, d_model)), bk=b(ks[3], (1, d_model)),
        wv=w(ks[4], (d_model, d_model)), bv=b(ks[5], (1, d_model)),
        wo=w(ks[6], (d_model, d_model)), bo=b(ks[7], (1, d_model)),
        bn1_g=jnp.ones((1, d_model), f32), bn1_b=jnp.zeros((1, d_model), f32),
        ff_w1=w(ks[8], (d_model, d_ff)), ff_b1=b(ks[9], (1, d_ff)),
        ff_w2=w(ks[10], (d_ff, d_model)), ff_b2=b(ks[11], (1, d_model)),
        bn2_g=jnp.ones((1, d_model), f32), bn2_b=jnp.zeros((1, d_model), f32),
        proj_w=w(ks[12], (d_model, d_model)), proj_b=jnp.zeros((1, d_model), f32),
        conv1_w=w(ks[13], (3, d_model, d_model)), conv1_b=jnp.zeros((1, d_model), f32),
        conv2_w=w(ks[14], (3, d_model, d_model)), conv2_b=jnp.zeros((1, d_model), f32),
    )


if __name__ == "__main__":
    bs, q_len, d_model, n_heads, d_ff, n_layers = 2, 16, 32, 4, 64, 2
    key = jax.random.PRNGKey(0)
    keys = jax.random.split(key, n_layers + 1)
    src = jax.random.normal(keys[0], (bs, q_len, d_model), jnp.float32)
    layer_params = [init_params(k, d_model, n_heads, d_ff) for k in keys[1:]]

    fwd = jax.jit(functools.partial(tst_encoder, n_heads=n_heads))
    out = jax.block_until_ready(fwd(src, layer_params))

    assert out.shape == (bs, q_len, d_model), out.shape
    assert bool(jnp.isfinite(out).all()), "non-finite output"
    print("KERNEL_OK")
</pallas_src>

<mosaic_0001>
module attributes {stable_mosaic.version = 11 : i64} {
  func.func @_encoder_layer_kernel(%arg0: memref<2x16x32xf32, #tpu.memory_space<vmem>>, %arg1: memref<32x96xbf16, #tpu.memory_space<vmem>>, %arg2: memref<1x96xf32, #tpu.memory_space<vmem>>, %arg3: memref<32x32xbf16, #tpu.memory_space<vmem>>, %arg4: memref<1x32xf32, #tpu.memory_space<vmem>>, %arg5: memref<1x32xf32, #tpu.memory_space<vmem>>, %arg6: memref<1x32xf32, #tpu.memory_space<vmem>>, %arg7: memref<32x64xbf16, #tpu.memory_space<vmem>>, %arg8: memref<1x64xf32, #tpu.memory_space<vmem>>, %arg9: memref<64x32xbf16, #tpu.memory_space<vmem>>, %arg10: memref<1x32xf32, #tpu.memory_space<vmem>>, %arg11: memref<1x32xf32, #tpu.memory_space<vmem>>, %arg12: memref<1x32xf32, #tpu.memory_space<vmem>>, %arg13: memref<32x32xbf16, #tpu.memory_space<vmem>>, %arg14: memref<1x32xf32, #tpu.memory_space<vmem>>, %arg15: memref<96x32xbf16, #tpu.memory_space<vmem>>, %arg16: memref<1x32xf32, #tpu.memory_space<vmem>>, %arg17: memref<96x32xbf16, #tpu.memory_space<vmem>>, %arg18: memref<1x32xf32, #tpu.memory_space<vmem>>, %arg19: memref<2x16x32xf32, #tpu.memory_space<vmem>>) attributes {dimension_semantics = [], scalar_prefetch = 0 : i64, scratch_operands = 0 : i64, tpu.core_type = #tpu.core_type<tc>} {
    %c0 = arith.constant 0 : index
    %c0_0 = arith.constant 0 : index
    %c0_1 = arith.constant 0 : index
    %0 = vector.load %arg0[%c0, %c0_0, %c0_1] : memref<2x16x32xf32, #tpu.memory_space<vmem>>, vector<2x16x32xf32>
    %1 = vector.shape_cast %0 : vector<2x16x32xf32> to vector<32x32xf32>
    %c0_2 = arith.constant 0 : index
    %c0_3 = arith.constant 0 : index
    %2 = vector.load %arg1[%c0_2, %c0_3] : memref<32x96xbf16, #tpu.memory_space<vmem>>, vector<32x96xbf16>
    %3 = arith.truncf %1 : vector<32x32xf32> to vector<32x32xbf16>
    %cst = arith.constant dense<0.000000e+00> : vector<32x96xf32>
    %4 = tpu.matmul %3, %2, %cst {dimension_numbers = #tpu.dot_dimension_numbers<[1], [0], [0], [1], [0, 0, 1, 1], [], []>} : vector<32x32xbf16>, vector<32x96xbf16>, vector<32x96xf32> -> vector<32x96xf32>
    %c0_4 = arith.constant 0 : index
    %c0_5 = arith.constant 0 : index
    %5 = vector.load %arg2[%c0_4, %c0_5] : memref<1x96xf32, #tpu.memory_space<vmem>>, vector<1x96xf32>
    %6 = vector.broadcast %5 : vector<1x96xf32> to vector<32x96xf32>
    %7 = arith.addf %4, %6 : vector<32x96xf32>
    %8 = vector.extract_strided_slice %7 {offsets = [0, 0], sizes = [32, 32], strides = [1, 1]} : vector<32x96xf32> to vector<32x32xf32>
    %cst_6 = arith.constant 0.353553385 : f32
    %9 = vector.broadcast %cst_6 : f32 to vector<32x32xf32>
    %10 = arith.mulf %8, %9 : vector<32x32xf32>
    %11 = vector.shape_cast %10 : vector<32x32xf32> to vector<2x16x32xf32>
    %12 = vector.extract_strided_slice %7 {offsets = [0, 32], sizes = [32, 32], strides = [1, 1]} : vector<32x96xf32> to vector<32x32xf32>
    %13 = vector.shape_cast %12 : vector<32x32xf32> to vector<2x16x32xf32>
    %14 = vector.extract_strided_slice %7 {offsets = [0, 64], sizes = [32, 32], strides = [1, 1]} : vector<32x96xf32> to vector<32x32xf32>
    %15 = vector.shape_cast %14 : vector<32x32xf32> to vector<2x16x32xf32>
    %16 = vector.extract_strided_slice %11 {offsets = [0, 0, 0], sizes = [2, 16, 8], strides = [1, 1, 1]} : vector<2x16x32xf32> to vector<2x16x8xf32>
    %17 = arith.truncf %16 : vector<2x16x8xf32> to vector<2x16x8xbf16>
    %18 = vector.extract_strided_slice %13 {offsets = [0, 0, 0], sizes = [2, 16, 8], strides = [1, 1, 1]} : vector<2x16x32xf32> to vector<2x16x8xf32>
    %19 = arith.truncf %18 : vector<2x16x8xf32> to vector<2x16x8xbf16>
    %20 = vector.extract_strided_slice %15 {offsets = [0, 0, 0], sizes = [2, 16, 8], strides = [1, 1, 1]} : vector<2x16x32xf32> to vector<2x16x8xf32>
    %21 = arith.truncf %20 : vector<2x16x8xf32> to vector<2x16x8xbf16>
    %cst_7 = arith.constant dense<0.000000e+00> : vector<2x16x16xf32>
    %22 = tpu.matmul %17, %19, %cst_7 {dimension_numbers = #tpu.dot_dimension_numbers<[2], [2], [1], [1], [0, 0, 0, 1, 1, 1], [0], [0]>} : vector<2x16x8xbf16>, vector<2x16x8xbf16>, vector<2x16x16xf32> -> vector<2x16x16xf32>
    %cst_8 = arith.constant dense<0xFF800000> : vector<2x16xf32>
    %23 = vector.multi_reduction <maximumf>, %22, %cst_8 [2] : vector<2x16x16xf32> to vector<2x16xf32>
    %24 = vector.shape_cast %23 : vector<2x16xf32> to vector<2x16x1xf32>
    %25 = vector.broadcast %24 : vector<2x16x1xf32> to vector<2x16x16xf32>
    %26 = arith.subf %22, %25 : vector<2x16x16xf32>
    %27 = math.exp %26 : vector<2x16x16xf32>
    %cst_9 = arith.constant dense<0.000000e+00> : vector<2x16xf32>
    %28 = vector.multi_reduction <add>, %27, %cst_9 [2] : vector<2x16x16xf32> to vector<2x16xf32>
    %29 = vector.shape_cast %28 : vector<2x16xf32> to vector<2x16x1xf32>
    %30 = tpu.reciprocal %29 {approx = true} : vector<2x16x1xf32> -> vector<2x16x1xf32>
    %31 = vector.broadcast %30 : vector<2x16x1xf32> to vector<2x16x16xf32>
    %32 = arith.mulf %27, %31 : vector<2x16x16xf32>
    %33 = arith.truncf %32 : vector<2x16x16xf32> to vector<2x16x16xbf16>
    %cst_10 = arith.constant dense<0.000000e+00> : vector<2x16x8xf32>
    %34 = tpu.matmul %33, %21, %cst_10 {dimension_numbers = #tpu.dot_dimension_numbers<[2], [1], [1], [2], [0, 0, 0, 1, 1, 2], [0], [0]>} : vector<2x16x16xbf16>, vector<2x16x8xbf16>, vector<2x16x8xf32> -> vector<2x16x8xf32>
    %35 = vector.extract_strided_slice %11 {offsets = [0, 0, 8], sizes = [2, 16, 8], strides = [1, 1, 1]} : vector<2x16x32xf32> to vector<2x16x8xf32>
    %36 = arith.truncf %35 : vector<2x16x8xf32> to vector<2x16x8xbf16>
    %37 = vector.extract_strided_slice %13 {offsets = [0, 0, 8], sizes = [2, 16, 8], strides = [1, 1, 1]} : vector<2x16x32xf32> to vector<2x16x8xf32>
    %38 = arith.truncf %37 : vector<2x16x8xf32> to vector<2x16x8xbf16>
    %39 = vector.extract_strided_slice %15 {offsets = [0, 0, 8], sizes = [2, 16, 8], strides = [1, 1, 1]} : vector<2x16x32xf32> to vector<2x16x8xf32>
    %40 = arith.truncf %39 : vector<2x16x8xf32> to vector<2x16x8xbf16>
    %cst_11 = arith.constant dense<0.000000e+00> : vector<2x16x16xf32>
    %41 = tpu.matmul %36, %38, %cst_11 {dimension_numbers = #tpu.dot_dimension_numbers<[2], [2], [1], [1], [0, 0, 0, 1, 1, 1], [0], [0]>} : vector<2x16x8xbf16>, vector<2x16x8xbf16>, vector<2x16x16xf32> -> vector<2x16x16xf32>
    %cst_12 = arith.constant dense<0xFF800000> : vector<2x16xf32>
    %42 = vector.multi_reduction <maximumf>, %41, %cst_12 [2] : vector<2x16x16xf32> to vector<2x16xf32>
    %43 = vector.shape_cast %42 : vector<2x16xf32> to vector<2x16x1xf32>
    %44 = vector.broadcast %43 : vector<2x16x1xf32> to vector<2x16x16xf32>
    %45 = arith.subf %41, %44 : vector<2x16x16xf32>
    %46 = math.exp %45 : vector<2x16x16xf32>
    %cst_13 = arith.constant dense<0.000000e+00> : vector<2x16xf32>
    %47 = vector.multi_reduction <add>, %46, %cst_13 [2] : vector<2x16x16xf32> to vector<2x16xf32>
    %48 = vector.shape_cast %47 : vector<2x16xf32> to vector<2x16x1xf32>
    %49 = tpu.reciprocal %48 {approx = true} : vector<2x16x1xf32> -> vector<2x16x1xf32>
    %50 = vector.broadcast %49 : vector<2x16x1xf32> to vector<2x16x16xf32>
    %51 = arith.mulf %46, %50 : vector<2x16x16xf32>
    %52 = arith.truncf %51 : vector<2x16x16xf32> to vector<2x16x16xbf16>
    %cst_14 = arith.constant dense<0.000000e+00> : vector<2x16x8xf32>
    %53 = tpu.matmul %52, %40, %cst_14 {dimension_numbers = #tpu.dot_dimension_numbers<[2], [1], [1], [2], [0, 0, 0, 1, 1, 2], [0], [0]>} : vector<2x16x16xbf16>, vector<2x16x8xbf16>, vector<2x16x8xf32> -> vector<2x16x8xf32>
    %54 = vector.extract_strided_slice %11 {offsets = [0, 0, 16], sizes = [2, 16, 8], strides = [1, 1, 1]} : vector<2x16x32xf32> to vector<2x16x8xf32>
    %55 = arith.truncf %54 : vector<2x16x8xf32> to vector<2x16x8xbf16>
    %56 = vector.extract_strided_slice %13 {offsets = [0, 0, 16], sizes = [2, 16, 8], strides = [1, 1, 1]} : vector<2x16x32xf32> to vector<2x16x8xf32>
    %57 = arith.truncf %56 : vector<2x16x8xf32> to vector<2x16x8xbf16>
    %58 = vector.extract_strided_slice %15 {offsets = [0, 0, 16], sizes = [2, 16, 8], strides = [1, 1, 1]} : vector<2x16x32xf32> to vector<2x16x8xf32>
    %59 = arith.truncf %58 : vector<2x16x8xf32> to vector<2x16x8xbf16>
    %cst_15 = arith.constant dense<0.000000e+00> : vector<2x16x16xf32>
    %60 = tpu.matmul %55, %57, %cst_15 {dimension_numbers = #tpu.dot_dimension_numbers<[2], [2], [1], [1], [0, 0, 0, 1, 1, 1], [0], [0]>} : vector<2x16x8xbf16>, vector<2x16x8xbf16>, vector<2x16x16xf32> -> vector<2x16x16xf32>
    %cst_16 = arith.constant dense<0xFF800000> : vector<2x16xf32>
    %61 = vector.multi_reduction <maximumf>, %60, %cst_16 [2] : vector<2x16x16xf32> to vector<2x16xf32>
    %62 = vector.shape_cast %61 : vector<2x16xf32> to vector<2x16x1xf32>
    %63 = vector.broadcast %62 : vector<2x16x1xf32> to vector<2x16x16xf32>
    %64 = arith.subf %60, %63 : vector<2x16x16xf32>
    %65 = math.exp %64 : vector<2x16x16xf32>
    %cst_17 = arith.constant dense<0.000000e+00> : vector<2x16xf32>
    %66 = vector.multi_reduction <add>, %65, %cst_17 [2] : vector<2x16x16xf32> to vector<2x16xf32>
    %67 = vector.shape_cast %66 : vector<2x16xf32> to vector<2x16x1xf32>
    %68 = tpu.reciprocal %67 {approx = true} : vector<2x16x1xf32> -> vector<2x16x1xf32>
    %69 = vector.broadcast %68 : vector<2x16x1xf32> to vector<2x16x16xf32>
    %70 = arith.mulf %65, %69 : vector<2x16x16xf32>
    %71 = arith.truncf %70 : vector<2x16x16xf32> to vector<2x16x16xbf16>
    %cst_18 = arith.constant dense<0.000000e+00> : vector<2x16x8xf32>
    %72 = tpu.matmul %71, %59, %cst_18 {dimension_numbers = #tpu.dot_dimension_numbers<[2], [1], [1], [2], [0, 0, 0, 1, 1, 2], [0], [0]>} : vector<2x16x16xbf16>, vector<2x16x8xbf16>, vector<2x16x8xf32> -> vector<2x16x8xf32>
    %73 = vector.extract_strided_slice %11 {offsets = [0, 0, 24], sizes = [2, 16, 8], strides = [1, 1, 1]} : vector<2x16x32xf32> to vector<2x16x8xf32>
    %74 = arith.truncf %73 : vector<2x16x8xf32> to vector<2x16x8xbf16>
    %75 = vector.extract_strided_slice %13 {offsets = [0, 0, 24], sizes = [2, 16, 8], strides = [1, 1, 1]} : vector<2x16x32xf32> to vector<2x16x8xf32>
    %76 = arith.truncf %75 : vector<2x16x8xf32> to vector<2x16x8xbf16>
    %77 = vector.extract_strided_slice %15 {offsets = [0, 0, 24], sizes = [2, 16, 8], strides = [1, 1, 1]} : vector<2x16x32xf32> to vector<2x16x8xf32>
    %78 = arith.truncf %77 : vector<2x16x8xf32> to vector<2x16x8xbf16>
    %cst_19 = arith.constant dense<0.000000e+00> : vector<2x16x16xf32>
    %79 = tpu.matmul %74, %76, %cst_19 {dimension_numbers = #tpu.dot_dimension_numbers<[2], [2], [1], [1], [0, 0, 0, 1, 1, 1], [0], [0]>} : vector<2x16x8xbf16>, vector<2x16x8xbf16>, vector<2x16x16xf32> -> vector<2x16x16xf32>
    %cst_20 = arith.constant dense<0xFF800000> : vector<2x16xf32>
    %80 = vector.multi_reduction <maximumf>, %79, %cst_20 [2] : vector<2x16x16xf32> to vector<2x16xf32>
    %81 = vector.shape_cast %80 : vector<2x16xf32> to vector<2x16x1xf32>
    %82 = vector.broadcast %81 : vector<2x16x1xf32> to vector<2x16x16xf32>
    %83 = arith.subf %79, %82 : vector<2x16x16xf32>
    %84 = math.exp %83 : vector<2x16x16xf32>
    %cst_21 = arith.constant dense<0.000000e+00> : vector<2x16xf32>
    %85 = vector.multi_reduction <add>, %84, %cst_21 [2] : vector<2x16x16xf32> to vector<2x16xf32>
    %86 = vector.shape_cast %85 : vector<2x16xf32> to vector<2x16x1xf32>
    %87 = tpu.reciprocal %86 {approx = true} : vector<2x16x1xf32> -> vector<2x16x1xf32>
    %88 = vector.broadcast %87 : vector<2x16x1xf32> to vector<2x16x16xf32>
    %89 = arith.mulf %84, %88 : vector<2x16x16xf32>
    %90 = arith.truncf %89 : vector<2x16x16xf32> to vector<2x16x16xbf16>
    %cst_22 = arith.constant dense<0.000000e+00> : vector<2x16x8xf32>
    %91 = tpu.matmul %90, %78, %cst_22 {dimension_numbers = #tpu.dot_dimension_numbers<[2], [1], [1], [2], [0, 0, 0, 1, 1, 2], [0], [0]>} : vector<2x16x16xbf16>, vector<2x16x8xbf16>, vector<2x16x8xf32> -> vector<2x16x8xf32>
    %92 = tpu.concatenate %34, %53, %72, %91 in 2 : vector<2x16x8xf32>, vector<2x16x8xf32>, vector<2x16x8xf32>, vector<2x16x8xf32> -> vector<2x16x32xf32>
    %93 = vector.shape_cast %92 : vector<2x16x32xf32> to vector<32x32xf32>
    %c0_23 = arith.constant 0 : index
    %c0_24 = arith.constant 0 : index
    %94 = vector.load %arg3[%c0_23, %c0_24] : memref<32x32xbf16, #tpu.memory_space<vmem>>, vector<32x32xbf16>
    %95 = arith.truncf %93 : vector<32x32xf32> to vector<32x32xbf16>
    %cst_25 = arith.constant dense<0.000000e+00> : vector<32x32xf32>
    %96 = tpu.matmul %95, %94, %cst_25 {dimension_numbers = #tpu.dot_dimension_numbers<[1], [0], [0], [1], [0, 0, 1, 1], [], []>} : vector<32x32xbf16>, vector<32x32xbf16>, vector<32x32xf32> -> vector<32x32xf32>
    %97 = arith.addf %1, %96 : vector<32x32xf32>
    %c0_26 = arith.constant 0 : index
    %c0_27 = arith.constant 0 : index
    %98 = vector.load %arg4[%c0_26, %c0_27] : memref<1x32xf32, #tpu.memory_space<vmem>>, vector<1x32xf32>
    %99 = vector.broadcast %98 : vector<1x32xf32> to vector<32x32xf32>
    %100 = arith.addf %97, %99 : vector<32x32xf32>
    %cst_28 = arith.constant dense<0.000000e+00> : vector<32xf32>
    %101 = vector.multi_reduction <add>, %100, %cst_28 [0] : vector<32x32xf32> to vector<32xf32>
    %102 = vector.shape_cast %101 : vector<32xf32> to vector<1x32xf32>
    %cst_29 = arith.constant 3.200000e+01 : f32
    %103 = vector.broadcast %cst_29 : f32 to vector<1x32xf32>
    %104 = arith.divf %102, %103 : vector<1x32xf32>
    %105 = vector.broadcast %104 : vector<1x32xf32> to vector<32x32xf32>
    %106 = arith.subf %100, %105 : vector<32x32xf32>
    %107 = arith.mulf %106, %106 : vector<32x32xf32>
    %cst_30 = arith.constant dense<0.000000e+00> : vector<32xf32>
    %108 = vector.multi_reduction <add>, %107, %cst_30 [0] : vector<32x32xf32> to vector<32xf32>
    %109 = vector.shape_cast %108 : vector<32xf32> to vector<1x32xf32>
    %cst_31 = arith.constant 3.200000e+01 : f32
    %110 = vector.broadcast %cst_31 : f32 to vector<1x32xf32>
    %111 = arith.divf %109, %110 : vector<1x32xf32>
    %cst_32 = arith.constant 9.99999974E-6 : f32
    %112 = vector.broadcast %cst_32 : f32 to vector<1x32xf32>
    %113 = arith.addf %111, %112 : vector<1x32xf32>
    %114 = math.rsqrt %113 : vector<1x32xf32>
    %115 = vector.broadcast %104 : vector<1x32xf32> to vector<32x32xf32>
    %116 = arith.subf %100, %115 : vector<32x32xf32>
    %c0_33 = arith.constant 0 : index
    %c0_34 = arith.constant 0 : index
    %117 = vector.load %arg5[%c0_33, %c0_34] : memref<1x32xf32, #tpu.memory_space<vmem>>, vector<1x32xf32>
    %118 = arith.mulf %114, %117 : vector<1x32xf32>
    %119 = vector.broadcast %118 : vector<1x32xf32> to vector<32x32xf32>
    %120 = arith.mulf %116, %119 : vector<32x32xf32>
    %c0_35 = arith.constant 0 : index
    %c0_36 = arith.constant 0 : index
    %121 = vector.load %arg6[%c0_35, %c0_36] : memref<1x32xf32, #tpu.memory_space<vmem>>, vector<1x32xf32>
    %122 = vector.broadcast %121 : vector<1x32xf32> to vector<32x32xf32>
    %123 = arith.addf %120, %122 : vector<32x32xf32>
    %c0_37 = arith.constant 0 : index
    %c0_38 = arith.constant 0 : index
    %124 = vector.load %arg7[%c0_37, %c0_38] : memref<32x64xbf16, #tpu.memory_space<vmem>>, vector<32x64xbf16>
    %125 = arith.truncf %123 : vector<32x32xf32> to vector<32x32xbf16>
    %cst_39 = arith.constant dense<0.000000e+00> : vector<32x64xf32>
    %126 = tpu.matmul %125, %124, %cst_39 {dimension_numbers = #tpu.dot_dimension_numbers<[1], [0], [0], [1], [0, 0, 1, 1], [], []>} : vector<32x32xbf16>, vector<32x64xbf16>, vector<32x64xf32> -> vector<32x64xf32>
    %c0_40 = arith.constant 0 : index
    %c0_41 = arith.constant 0 : index
    %127 = vector.load %arg8[%c0_40, %c0_41] : memref<1x64xf32, #tpu.memory_space<vmem>>, vector<1x64xf32>
    %128 = vector.broadcast %127 : vector<1x64xf32> to vector<32x64xf32>
    %129 = arith.addf %126, %128 : vector<32x64xf32>
    %130 = arith.mulf %129, %129 : vector<32x64xf32>
    %131 = arith.mulf %129, %130 : vector<32x64xf32>
    %cst_42 = arith.constant 4.471500e-02 : f32
    %132 = vector.broadcast %cst_42 : f32 to vector<32x64xf32>
    %133 = arith.mulf %132, %131 : vector<32x64xf32>
    %134 = arith.addf %129, %133 : vector<32x64xf32>
    %cst_43 = arith.constant 0.797884583 : f32
    %135 = vector.broadcast %cst_43 : f32 to vector<32x64xf32>
    %136 = arith.mulf %135, %134 : vector<32x64xf32>
    %137 = math.tanh %136 : vector<32x64xf32>
    %cst_44 = arith.constant 1.000000e+00 : f32
    %138 = vector.broadcast %cst_44 : f32 to vector<32x64xf32>
    %139 = arith.addf %138, %137 : vector<32x64xf32>
    %cst_45 = arith.constant 5.000000e-01 : f32
    %140 = vector.broadcast %cst_45 : f32 to vector<32x64xf32>
    %141 = arith.mulf %140, %139 : vector<32x64xf32>
    %142 = arith.mulf %129, %141 : vector<32x64xf32>
    %c0_46 = arith.constant 0 : index
    %c0_47 = arith.constant 0 : index
    %143 = vector.load %arg9[%c0_46, %c0_47] : memref<64x32xbf16, #tpu.memory_space<vmem>>, vector<64x32xbf16>
    %144 = arith.truncf %142 : vector<32x64xf32> to vector<32x64xbf16>
    %cst_48 = arith.constant dense<0.000000e+00> : vector<32x32xf32>
    %145 = tpu.matmul %144, %143, %cst_48 {dimension_numbers = #tpu.dot_dimension_numbers<[1], [0], [0], [1], [0, 0, 1, 1], [], []>} : vector<32x64xbf16>, vector<64x32xbf16>, vector<32x32xf32> -> vector<32x32xf32>
    %146 = arith.addf %123, %145 : vector<32x32xf32>
    %c0_49 = arith.constant 0 : index
    %c0_50 = arith.constant 0 : index
    %147 = vector.load %arg10[%c0_49, %c0_50] : memref<1x32xf32, #tpu.memory_space<vmem>>, vector<1x32xf32>
    %148 = vector.broadcast %147 : vector<1x32xf32> to vector<32x32xf32>
    %149 = arith.addf %146, %148 : vector<32x32xf32>
    %cst_51 = arith.constant dense<0.000000e+00> : vector<32xf32>
    %150 = vector.multi_reduction <add>, %149, %cst_51 [0] : vector<32x32xf32> to vector<32xf32>
    %151 = vector.shape_cast %150 : vector<32xf32> to vector<1x32xf32>
    %cst_52 = arith.constant 3.200000e+01 : f32
    %152 = vector.broadcast %cst_52 : f32 to vector<1x32xf32>
    %153 = arith.divf %151, %152 : vector<1x32xf32>
    %154 = vector.broadcast %153 : vector<1x32xf32> to vector<32x32xf32>
    %155 = arith.subf %149, %154 : vector<32x32xf32>
    %156 = arith.mulf %155, %155 : vector<32x32xf32>
    %cst_53 = arith.constant dense<0.000000e+00> : vector<32xf32>
    %157 = vector.multi_reduction <add>, %156, %cst_53 [0] : vector<32x32xf32> to vector<32xf32>
    %158 = vector.shape_cast %157 : vector<32xf32> to vector<1x32xf32>
    %cst_54 = arith.constant 3.200000e+01 : f32
    %159 = vector.broadcast %cst_54 : f32 to vector<1x32xf32>
    %160 = arith.divf %158, %159 : vector<1x32xf32>
    %cst_55 = arith.constant 9.99999974E-6 : f32
    %161 = vector.broadcast %cst_55 : f32 to vector<1x32xf32>
    %162 = arith.addf %160, %161 : vector<1x32xf32>
    %163 = math.rsqrt %162 : vector<1x32xf32>
    %164 = vector.broadcast %153 : vector<1x32xf32> to vector<32x32xf32>
    %165 = arith.subf %149, %164 : vector<32x32xf32>
    %c0_56 = arith.constant 0 : index
    %c0_57 = arith.constant 0 : index
    %166 = vector.load %arg11[%c0_56, %c0_57] : memref<1x32xf32, #tpu.memory_space<vmem>>, vector<1x32xf32>
    %167 = arith.mulf %163, %166 : vector<1x32xf32>
    %168 = vector.broadcast %167 : vector<1x32xf32> to vector<32x32xf32>
    %169 = arith.mulf %165, %168 : vector<32x32xf32>
    %c0_58 = arith.constant 0 : index
    %c0_59 = arith.constant 0 : index
    %170 = vector.load %arg12[%c0_58, %c0_59] : memref<1x32xf32, #tpu.memory_space<vmem>>, vector<1x32xf32>
    %171 = vector.broadcast %170 : vector<1x32xf32> to vector<32x32xf32>
    %172 = arith.addf %169, %171 : vector<32x32xf32>
    %c0_60 = arith.constant 0 : index
    %c0_61 = arith.constant 0 : index
    %173 = vector.load %arg13[%c0_60, %c0_61] : memref<32x32xbf16, #tpu.memory_space<vmem>>, vector<32x32xbf16>
    %174 = arith.truncf %172 : vector<32x32xf32> to vector<32x32xbf16>
    %cst_62 = arith.constant dense<0.000000e+00> : vector<32x32xf32>
    %175 = tpu.matmul %174, %173, %cst_62 {dimension_numbers = #tpu.dot_dimension_numbers<[1], [0], [0], [1], [0, 0, 1, 1], [], []>} : vector<32x32xbf16>, vector<32x32xbf16>, vector<32x32xf32> -> vector<32x32xf32>
    %c0_63 = arith.constant 0 : index
    %c0_64 = arith.constant 0 : index
    %176 = vector.load %arg14[%c0_63, %c0_64] : memref<1x32xf32, #tpu.memory_space<vmem>>, vector<1x32xf32>
    %177 = vector.broadcast %176 : vector<1x32xf32> to vector<32x32xf32>
    %178 = arith.addf %175, %177 : vector<32x32xf32>
    %179 = arith.mulf %172, %172 : vector<32x32xf32>
    %180 = arith.mulf %172, %179 : vector<32x32xf32>
    %cst_65 = arith.constant 4.471500e-02 : f32
    %181 = vector.broadcast %cst_65 : f32 to vector<32x32xf32>
    %182 = arith.mulf %181, %180 : vector<32x32xf32>
    %183 = arith.addf %172, %182 : vector<32x32xf32>
    %cst_66 = arith.constant 0.797884583 : f32
    %184 = vector.broadcast %cst_66 : f32 to vector<32x32xf32>
    %185 = arith.mulf %184, %183 : vector<32x32xf32>
    %186 = math.tanh %185 : vector<32x32xf32>
    %cst_67 = arith.constant 1.000000e+00 : f32
    %187 = vector.broadcast %cst_67 : f32 to vector<32x32xf32>
    %188 = arith.addf %187, %186 : vector<32x32xf32>
    %cst_68 = arith.constant 5.000000e-01 : f32
    %189 = vector.broadcast %cst_68 : f32 to vector<32x32xf32>
    %190 = arith.mulf %189, %188 : vector<32x32xf32>
    %191 = arith.mulf %172, %190 : vector<32x32xf32>
    %192 = vector.shape_cast %191 : vector<32x32xf32> to vector<2x16x32xf32>
    %cst_69 = arith.constant 0.000000e+00 : f32
    %193 = vector.broadcast %cst_69 : f32 to vector<2x1x32xf32>
    %194 = vector.extract_strided_slice %192 {offsets = [0, 0, 0], sizes = [2, 15, 32], strides = [1, 1, 1]} : vector<2x16x32xf32> to vector<2x15x32xf32>
    %195 = tpu.concatenate %193, %194 in 1 : vector<2x1x32xf32>, vector<2x15x32xf32> -> vector<2x16x32xf32>
    %196 = vector.extract_strided_slice %192 {offsets = [0, 1, 0], sizes = [2, 15, 32], strides = [1, 1, 1]} : vector<2x16x32xf32> to vector<2x15x32xf32>
    %197 = tpu.concatenate %196, %193 in 1 : vector<2x15x32xf32>, vector<2x1x32xf32> -> vector<2x16x32xf32>
    %198 = tpu.concatenate %195, %192, %197 in 2 : vector<2x16x32xf32>, vector<2x16x32xf32>, vector<2x16x32xf32> -> vector<2x16x96xf32>
    %199 = vector.shape_cast %198 : vector<2x16x96xf32> to vector<32x96xf32>
    %c0_70 = arith.constant 0 : index
    %c0_71 = arith.constant 0 : index
    %200 = vector.load %arg15[%c0_70, %c0_71] : memref<96x32xbf16, #tpu.memory_space<vmem>>, vector<96x32xbf16>
    %201 = arith.truncf %199 : vector<32x96xf32> to vector<32x96xbf16>
    %cst_72 = arith.constant dense<0.000000e+00> : vector<32x32xf32>
    %202 = tpu.matmul %201, %200, %cst_72 {dimension_numbers = #tpu.dot_dimension_numbers<[1], [0], [0], [1], [0, 0, 1, 1], [], []>} : vector<32x96xbf16>, vector<96x32xbf16>, vector<32x32xf32> -> vector<32x32xf32>
    %c0_73 = arith.constant 0 : index
    %c0_74 = arith.constant 0 : index
    %203 = vector.load %arg16[%c0_73, %c0_74] : memref<1x32xf32, #tpu.memory_space<vmem>>, vector<1x32xf32>
    %204 = vector.broadcast %203 : vector<1x32xf32> to vector<32x32xf32>
    %205 = arith.addf %202, %204 : vector<32x32xf32>
    %206 = arith.mulf %205, %205 : vector<32x32xf32>
    %207 = arith.mulf %205, %206 : vector<32x32xf32>
    %cst_75 = arith.constant 4.471500e-02 : f32
    %208 = vector.broadcast %cst_75 : f32 to vector<32x32xf32>
    %209 = arith.mulf %208, %207 : vector<32x32xf32>
    %210 = arith.addf %205, %209 : vector<32x32xf32>
    %cst_76 = arith.constant 0.797884583 : f32
    %211 = vector.broadcast %cst_76 : f32 to vector<32x32xf32>
    %212 = arith.mulf %211, %210 : vector<32x32xf32>
    %213 = math.tanh %212 : vector<32x32xf32>
    %cst_77 = arith.constant 1.000000e+00 : f32
    %214 = vector.broadcast %cst_77 : f32 to vector<32x32xf32>
    %215 = arith.addf %214, %213 : vector<32x32xf32>
    %cst_78 = arith.constant 5.000000e-01 : f32
    %216 = vector.broadcast %cst_78 : f32 to vector<32x32xf32>
    %217 = arith.mulf %216, %215 : vector<32x32xf32>
    %218 = arith.mulf %205, %217 : vector<32x32xf32>
    %219 = vector.shape_cast %218 : vector<32x32xf32> to vector<2x16x32xf32>
    %cst_79 = arith.constant 0.000000e+00 : f32
    %220 = vector.broadcast %cst_79 : f32 to vector<2x1x32xf32>
    %221 = vector.extract_strided_slice %219 {offsets = [0, 0, 0], sizes = [2, 15, 32], strides = [1, 1, 1]} : vector<2x16x32xf32> to vector<2x15x32xf32>
    %222 = tpu.concatenate %220, %221 in 1 : vector<2x1x32xf32>, vector<2x15x32xf32> -> vector<2x16x32xf32>
    %223 = vector.extract_strided_slice %219 {offsets = [0, 1, 0], sizes = [2, 15, 32], strides = [1, 1, 1]} : vector<2x16x32xf32> to vector<2x15x32xf32>
    %224 = tpu.concatenate %223, %220 in 1 : vector<2x15x32xf32>, vector<2x1x32xf32> -> vector<2x16x32xf32>
    %225 = tpu.concatenate %222, %219, %224 in 2 : vector<2x16x32xf32>, vector<2x16x32xf32>, vector<2x16x32xf32> -> vector<2x16x96xf32>
    %226 = vector.shape_cast %225 : vector<2x16x96xf32> to vector<32x96xf32>
    %c0_80 = arith.constant 0 : index
    %c0_81 = arith.constant 0 : index
    %227 = vector.load %arg17[%c0_80, %c0_81] : memref<96x32xbf16, #tpu.memory_space<vmem>>, vector<96x32xbf16>
    %228 = arith.truncf %226 : vector<32x96xf32> to vector<32x96xbf16>
    %cst_82 = arith.constant dense<0.000000e+00> : vector<32x32xf32>
    %229 = tpu.matmul %228, %227, %cst_82 {dimension_numbers = #tpu.dot_dimension_numbers<[1], [0], [0], [1], [0, 0, 1, 1], [], []>} : vector<32x96xbf16>, vector<96x32xbf16>, vector<32x32xf32> -> vector<32x32xf32>
    %c0_83 = arith.constant 0 : index
    %c0_84 = arith.constant 0 : index
    %230 = vector.load %arg18[%c0_83, %c0_84] : memref<1x32xf32, #tpu.memory_space<vmem>>, vector<1x32xf32>
    %231 = vector.broadcast %230 : vector<1x32xf32> to vector<32x32xf32>
    %232 = arith.addf %229, %231 : vector<32x32xf32>
    %233 = arith.addf %232, %178 : vector<32x32xf32>
    %234 = vector.shape_cast %233 : vector<32x32xf32> to vector<2x16x32xf32>
    %c0_85 = arith.constant 0 : index
    %c0_86 = arith.constant 0 : index
    %c0_87 = arith.constant 0 : index
    %235 = vector.load %arg19[%c0_85, %c0_86, %c0_87] : memref<2x16x32xf32, #tpu.memory_space<vmem>>, vector<2x16x32xf32>
    tpu.vector_store %arg19[%c0_85, %c0_86, %c0_87], %234 {strides = array<i32>} : memref<2x16x32xf32, #tpu.memory_space<vmem>>, vector<2x16x32xf32>,
    return
  }
}

module attributes {stable_mosaic.version = 11 : i64} {
  func.func @_encoder_layer_kernel(%arg0: memref<2x16x32xf32, #tpu.memory_space<vmem>>, %arg1: memref<32x96xbf16, #tpu.memory_space<vmem>>, %arg2: memref<1x96xf32, #tpu.memory_space<vmem>>, %arg3: memref<32x32xbf16, #tpu.memory_space<vmem>>, %arg4: memref<1x32xf32, #tpu.memory_space<vmem>>, %arg5: memref<1x32xf32, #tpu.memory_space<vmem>>, %arg6: memref<1x32xf32, #tpu.memory_space<vmem>>, %arg7: memref<32x64xbf16, #tpu.memory_space<vmem>>, %arg8: memref<1x64xf32, #tpu.memory_space<vmem>>, %arg9: memref<64x32xbf16, #tpu.memory_space<vmem>>, %arg10: memref<1x32xf32, #tpu.memory_space<vmem>>, %arg11: memref<1x32xf32, #tpu.memory_space<vmem>>, %arg12: memref<1x32xf32, #tpu.memory_space<vmem>>, %arg13: memref<32x32xbf16, #tpu.memory_space<vmem>>, %arg14: memref<1x32xf32, #tpu.memory_space<vmem>>, %arg15: memref<96x32xbf16, #tpu.memory_space<vmem>>, %arg16: memref<1x32xf32, #tpu.memory_space<vmem>>, %arg17: memref<96x32xbf16, #tpu.memory_space<vmem>>, %arg18: memref<1x32xf32, #tpu.memory_space<vmem>>, %arg19: memref<2x16x32xf32, #tpu.memory_space<vmem>>) attributes {dimension_semantics = [], scalar_prefetch = 0 : i64, scratch_operands = 0 : i64, tpu.core_type = #tpu.core_type<tc>} {
    %c0 = arith.constant 0 : index
    %c0_0 = arith.constant 0 : index
    %c0_1 = arith.constant 0 : index
    %0 = vector.load %arg0[%c0, %c0_0, %c0_1] : memref<2x16x32xf32, #tpu.memory_space<vmem>>, vector<2x16x32xf32>
    %1 = vector.shape_cast %0 : vector<2x16x32xf32> to vector<32x32xf32>
    %c0_2 = arith.constant 0 : index
    %c0_3 = arith.constant 0 : index
    %2 = vector.load %arg1[%c0_2, %c0_3] : memref<32x96xbf16, #tpu.memory_space<vmem>>, vector<32x96xbf16>
    %3 = arith.truncf %1 : vector<32x32xf32> to vector<32x32xbf16>
    %cst = arith.constant dense<0.000000e+00> : vector<32x96xf32>
    %4 = tpu.matmul %3, %2, %cst {dimension_numbers = #tpu.dot_dimension_numbers<[1], [0], [0], [1], [0, 0, 1, 1], [], []>} : vector<32x32xbf16>, vector<32x96xbf16>, vector<32x96xf32> -> vector<32x96xf32>
    %c0_4 = arith.constant 0 : index
    %c0_5 = arith.constant 0 : index
    %5 = vector.load %arg2[%c0_4, %c0_5] : memref<1x96xf32, #tpu.memory_space<vmem>>, vector<1x96xf32>
    %6 = vector.broadcast %5 : vector<1x96xf32> to vector<32x96xf32>
    %7 = arith.addf %4, %6 : vector<32x96xf32>
    %8 = vector.extract_strided_slice %7 {offsets = [0, 0], sizes = [32, 32], strides = [1, 1]} : vector<32x96xf32> to vector<32x32xf32>
    %cst_6 = arith.constant 0.353553385 : f32
    %9 = vector.broadcast %cst_6 : f32 to vector<32x32xf32>
    %10 = arith.mulf %8, %9 : vector<32x32xf32>
    %11 = vector.shape_cast %10 : vector<32x32xf32> to vector<2x16x32xf32>
    %12 = vector.extract_strided_slice %7 {offsets = [0, 32], sizes = [32, 32], strides = [1, 1]} : vector<32x96xf32> to vector<32x32xf32>
    %13 = vector.shape_cast %12 : vector<32x32xf32> to vector<2x16x32xf32>
    %14 = vector.extract_strided_slice %7 {offsets = [0, 64], sizes = [32, 32], strides = [1, 1]} : vector<32x96xf32> to vector<32x32xf32>
    %15 = vector.shape_cast %14 : vector<32x32xf32> to vector<2x16x32xf32>
    %16 = vector.extract_strided_slice %11 {offsets = [0, 0, 0], sizes = [2, 16, 8], strides = [1, 1, 1]} : vector<2x16x32xf32> to vector<2x16x8xf32>
    %17 = arith.truncf %16 : vector<2x16x8xf32> to vector<2x16x8xbf16>
    %18 = vector.extract_strided_slice %13 {offsets = [0, 0, 0], sizes = [2, 16, 8], strides = [1, 1, 1]} : vector<2x16x32xf32> to vector<2x16x8xf32>
    %19 = arith.truncf %18 : vector<2x16x8xf32> to vector<2x16x8xbf16>
    %20 = vector.extract_strided_slice %15 {offsets = [0, 0, 0], sizes = [2, 16, 8], strides = [1, 1, 1]} : vector<2x16x32xf32> to vector<2x16x8xf32>
    %21 = arith.truncf %20 : vector<2x16x8xf32> to vector<2x16x8xbf16>
    %cst_7 = arith.constant dense<0.000000e+00> : vector<2x16x16xf32>
    %22 = tpu.matmul %17, %19, %cst_7 {dimension_numbers = #tpu.dot_dimension_numbers<[2], [2], [1], [1], [0, 0, 0, 1, 1, 1], [0], [0]>} : vector<2x16x8xbf16>, vector<2x16x8xbf16>, vector<2x16x16xf32> -> vector<2x16x16xf32>
    %cst_8 = arith.constant dense<0xFF800000> : vector<2x16xf32>
    %23 = vector.multi_reduction <maximumf>, %22, %cst_8 [2] : vector<2x16x16xf32> to vector<2x16xf32>
    %24 = vector.shape_cast %23 : vector<2x16xf32> to vector<2x16x1xf32>
    %25 = vector.broadcast %24 : vector<2x16x1xf32> to vector<2x16x16xf32>
    %26 = arith.subf %22, %25 : vector<2x16x16xf32>
    %27 = math.exp %26 : vector<2x16x16xf32>
    %cst_9 = arith.constant dense<0.000000e+00> : vector<2x16xf32>
    %28 = vector.multi_reduction <add>, %27, %cst_9 [2] : vector<2x16x16xf32> to vector<2x16xf32>
    %29 = vector.shape_cast %28 : vector<2x16xf32> to vector<2x16x1xf32>
    %30 = tpu.reciprocal %29 {approx = true} : vector<2x16x1xf32> -> vector<2x16x1xf32>
    %31 = vector.broadcast %30 : vector<2x16x1xf32> to vector<2x16x16xf32>
    %32 = arith.mulf %27, %31 : vector<2x16x16xf32>
    %33 = arith.truncf %32 : vector<2x16x16xf32> to vector<2x16x16xbf16>
    %cst_10 = arith.constant dense<0.000000e+00> : vector<2x16x8xf32>
    %34 = tpu.matmul %33, %21, %cst_10 {dimension_numbers = #tpu.dot_dimension_numbers<[2], [1], [1], [2], [0, 0, 0, 1, 1, 2], [0], [0]>} : vector<2x16x16xbf16>, vector<2x16x8xbf16>, vector<2x16x8xf32> -> vector<2x16x8xf32>
    %35 = vector.extract_strided_slice %11 {offsets = [0, 0, 8], sizes = [2, 16, 8], strides = [1, 1, 1]} : vector<2x16x32xf32> to vector<2x16x8xf32>
    %36 = arith.truncf %35 : vector<2x16x8xf32> to vector<2x16x8xbf16>
    %37 = vector.extract_strided_slice %13 {offsets = [0, 0, 8], sizes = [2, 16, 8], strides = [1, 1, 1]} : vector<2x16x32xf32> to vector<2x16x8xf32>
    %38 = arith.truncf %37 : vector<2x16x8xf32> to vector<2x16x8xbf16>
    %39 = vector.extract_strided_slice %15 {offsets = [0, 0, 8], sizes = [2, 16, 8], strides = [1, 1, 1]} : vector<2x16x32xf32> to vector<2x16x8xf32>
    %40 = arith.truncf %39 : vector<2x16x8xf32> to vector<2x16x8xbf16>
    %cst_11 = arith.constant dense<0.000000e+00> : vector<2x16x16xf32>
    %41 = tpu.matmul %36, %38, %cst_11 {dimension_numbers = #tpu.dot_dimension_numbers<[2], [2], [1], [1], [0, 0, 0, 1, 1, 1], [0], [0]>} : vector<2x16x8xbf16>, vector<2x16x8xbf16>, vector<2x16x16xf32> -> vector<2x16x16xf32>
    %cst_12 = arith.constant dense<0xFF800000> : vector<2x16xf32>
    %42 = vector.multi_reduction <maximumf>, %41, %cst_12 [2] : vector<2x16x16xf32> to vector<2x16xf32>
    %43 = vector.shape_cast %42 : vector<2x16xf32> to vector<2x16x1xf32>
    %44 = vector.broadcast %43 : vector<2x16x1xf32> to vector<2x16x16xf32>
    %45 = arith.subf %41, %44 : vector<2x16x16xf32>
    %46 = math.exp %45 : vector<2x16x16xf32>
    %cst_13 = arith.constant dense<0.000000e+00> : vector<2x16xf32>
    %47 = vector.multi_reduction <add>, %46, %cst_13 [2] : vector<2x16x16xf32> to vector<2x16xf32>
    %48 = vector.shape_cast %47 : vector<2x16xf32> to vector<2x16x1xf32>
    %49 = tpu.reciprocal %48 {approx = true} : vector<2x16x1xf32> -> vector<2x16x1xf32>
    %50 = vector.broadcast %49 : vector<2x16x1xf32> to vector<2x16x16xf32>
    %51 = arith.mulf %46, %50 : vector<2x16x16xf32>
    %52 = arith.truncf %51 : vector<2x16x16xf32> to vector<2x16x16xbf16>
    %cst_14 = arith.constant dense<0.000000e+00> : vector<2x16x8xf32>
    %53 = tpu.matmul %52, %40, %cst_14 {dimension_numbers = #tpu.dot_dimension_numbers<[2], [1], [1], [2], [0, 0, 0, 1, 1, 2], [0], [0]>} : vector<2x16x16xbf16>, vector<2x16x8xbf16>, vector<2x16x8xf32> -> vector<2x16x8xf32>
    %54 = vector.extract_strided_slice %11 {offsets = [0, 0, 16], sizes = [2, 16, 8], strides = [1, 1, 1]} : vector<2x16x32xf32> to vector<2x16x8xf32>
    %55 = arith.truncf %54 : vector<2x16x8xf32> to vector<2x16x8xbf16>
    %56 = vector.extract_strided_slice %13 {offsets = [0, 0, 16], sizes = [2, 16, 8], strides = [1, 1, 1]} : vector<2x16x32xf32> to vector<2x16x8xf32>
    %57 = arith.truncf %56 : vector<2x16x8xf32> to vector<2x16x8xbf16>
    %58 = vector.extract_strided_slice %15 {offsets = [0, 0, 16], sizes = [2, 16, 8], strides = [1, 1, 1]} : vector<2x16x32xf32> to vector<2x16x8xf32>
    %59 = arith.truncf %58 : vector<2x16x8xf32> to vector<2x16x8xbf16>
    %cst_15 = arith.constant dense<0.000000e+00> : vector<2x16x16xf32>
    %60 = tpu.matmul %55, %57, %cst_15 {dimension_numbers = #tpu.dot_dimension_numbers<[2], [2], [1], [1], [0, 0, 0, 1, 1, 1], [0], [0]>} : vector<2x16x8xbf16>, vector<2x16x8xbf16>, vector<2x16x16xf32> -> vector<2x16x16xf32>
    %cst_16 = arith.constant dense<0xFF800000> : vector<2x16xf32>
    %61 = vector.multi_reduction <maximumf>, %60, %cst_16 [2] : vector<2x16x16xf32> to vector<2x16xf32>
    %62 = vector.shape_cast %61 : vector<2x16xf32> to vector<2x16x1xf32>
    %63 = vector.broadcast %62 : vector<2x16x1xf32> to vector<2x16x16xf32>
    %64 = arith.subf %60, %63 : vector<2x16x16xf32>
    %65 = math.exp %64 : vector<2x16x16xf32>
    %cst_17 = arith.constant dense<0.000000e+00> : vector<2x16xf32>
    %66 = vector.multi_reduction <add>, %65, %cst_17 [2] : vector<2x16x16xf32> to vector<2x16xf32>
    %67 = vector.shape_cast %66 : vector<2x16xf32> to vector<2x16x1xf32>
    %68 = tpu.reciprocal %67 {approx = true} : vector<2x16x1xf32> -> vector<2x16x1xf32>
    %69 = vector.broadcast %68 : vector<2x16x1xf32> to vector<2x16x16xf32>
    %70 = arith.mulf %65, %69 : vector<2x16x16xf32>
    %71 = arith.truncf %70 : vector<2x16x16xf32> to vector<2x16x16xbf16>
    %cst_18 = arith.constant dense<0.000000e+00> : vector<2x16x8xf32>
    %72 = tpu.matmul %71, %59, %cst_18 {dimension_numbers = #tpu.dot_dimension_numbers<[2], [1], [1], [2], [0, 0, 0, 1, 1, 2], [0], [0]>} : vector<2x16x16xbf16>, vector<2x16x8xbf16>, vector<2x16x8xf32> -> vector<2x16x8xf32>
    %73 = vector.extract_strided_slice %11 {offsets = [0, 0, 24], sizes = [2, 16, 8], strides = [1, 1, 1]} : vector<2x16x32xf32> to vector<2x16x8xf32>
    %74 = arith.truncf %73 : vector<2x16x8xf32> to vector<2x16x8xbf16>
    %75 = vector.extract_strided_slice %13 {offsets = [0, 0, 24], sizes = [2, 16, 8], strides = [1, 1, 1]} : vector<2x16x32xf32> to vector<2x16x8xf32>
    %76 = arith.truncf %75 : vector<2x16x8xf32> to vector<2x16x8xbf16>
    %77 = vector.extract_strided_slice %15 {offsets = [0, 0, 24], sizes = [2, 16, 8], strides = [1, 1, 1]} : vector<2x16x32xf32> to vector<2x16x8xf32>
    %78 = arith.truncf %77 : vector<2x16x8xf32> to vector<2x16x8xbf16>
    %cst_19 = arith.constant dense<0.000000e+00> : vector<2x16x16xf32>
    %79 = tpu.matmul %74, %76, %cst_19 {dimension_numbers = #tpu.dot_dimension_numbers<[2], [2], [1], [1], [0, 0, 0, 1, 1, 1], [0], [0]>} : vector<2x16x8xbf16>, vector<2x16x8xbf16>, vector<2x16x16xf32> -> vector<2x16x16xf32>
    %cst_20 = arith.constant dense<0xFF800000> : vector<2x16xf32>
    %80 = vector.multi_reduction <maximumf>, %79, %cst_20 [2] : vector<2x16x16xf32> to vector<2x16xf32>
    %81 = vector.shape_cast %80 : vector<2x16xf32> to vector<2x16x1xf32>
    %82 = vector.broadcast %81 : vector<2x16x1xf32> to vector<2x16x16xf32>
    %83 = arith.subf %79, %82 : vector<2x16x16xf32>
    %84 = math.exp %83 : vector<2x16x16xf32>
    %cst_21 = arith.constant dense<0.000000e+00> : vector<2x16xf32>
    %85 = vector.multi_reduction <add>, %84, %cst_21 [2] : vector<2x16x16xf32> to vector<2x16xf32>
    %86 = vector.shape_cast %85 : vector<2x16xf32> to vector<2x16x1xf32>
    %87 = tpu.reciprocal %86 {approx = true} : vector<2x16x1xf32> -> vector<2x16x1xf32>
    %88 = vector.broadcast %87 : vector<2x16x1xf32> to vector<2x16x16xf32>
    %89 = arith.mulf %84, %88 : vector<2x16x16xf32>
    %90 = arith.truncf %89 : vector<2x16x16xf32> to vector<2x16x16xbf16>
    %cst_22 = arith.constant dense<0.000000e+00> : vector<2x16x8xf32>
    %91 = tpu.matmul %90, %78, %cst_22 {dimension_numbers = #tpu.dot_dimension_numbers<[2], [1], [1], [2], [0, 0, 0, 1, 1, 2], [0], [0]>} : vector<2x16x16xbf16>, vector<2x16x8xbf16>, vector<2x16x8xf32> -> vector<2x16x8xf32>
    %92 = tpu.concatenate %34, %53, %72, %91 in 2 : vector<2x16x8xf32>, vector<2x16x8xf32>, vector<2x16x8xf32>, vector<2x16x8xf32> -> vector<2x16x32xf32>
    %93 = vector.shape_cast %92 : vector<2x16x32xf32> to vector<32x32xf32>
    %c0_23 = arith.constant 0 : index
    %c0_24 = arith.constant 0 : index
    %94 = vector.load %arg3[%c0_23, %c0_24] : memref<32x32xbf16, #tpu.memory_space<vmem>>, vector<32x32xbf16>
    %95 = arith.truncf %93 : vector<32x32xf32> to vector<32x32xbf16>
    %cst_25 = arith.constant dense<0.000000e+00> : vector<32x32xf32>
    %96 = tpu.matmul %95, %94, %cst_25 {dimension_numbers = #tpu.dot_dimension_numbers<[1], [0], [0], [1], [0, 0, 1, 1], [], []>} : vector<32x32xbf16>, vector<32x32xbf16>, vector<32x32xf32> -> vector<32x32xf32>
    %97 = arith.addf %1, %96 : vector<32x32xf32>
    %c0_26 = arith.constant 0 : index
    %c0_27 = arith.constant 0 : index
    %98 = vector.load %arg4[%c0_26, %c0_27] : memref<1x32xf32, #tpu.memory_space<vmem>>, vector<1x32xf32>
    %99 = vector.broadcast %98 : vector<1x32xf32> to vector<32x32xf32>
    %100 = arith.addf %97, %99 : vector<32x32xf32>
    %cst_28 = arith.constant dense<0.000000e+00> : vector<32xf32>
    %101 = vector.multi_reduction <add>, %100, %cst_28 [0] : vector<32x32xf32> to vector<32xf32>
    %102 = vector.shape_cast %101 : vector<32xf32> to vector<1x32xf32>
    %cst_29 = arith.constant 3.200000e+01 : f32
    %103 = vector.broadcast %cst_29 : f32 to vector<1x32xf32>
    %104 = arith.divf %102, %103 : vector<1x32xf32>
    %105 = vector.broadcast %104 : vector<1x32xf32> to vector<32x32xf32>
    %106 = arith.subf %100, %105 : vector<32x32xf32>
    %107 = arith.mulf %106, %106 : vector<32x32xf32>
    %cst_30 = arith.constant dense<0.000000e+00> : vector<32xf32>
    %108 = vector.multi_reduction <add>, %107, %cst_30 [0] : vector<32x32xf32> to vector<32xf32>
    %109 = vector.shape_cast %108 : vector<32xf32> to vector<1x32xf32>
    %cst_31 = arith.constant 3.200000e+01 : f32
    %110 = vector.broadcast %cst_31 : f32 to vector<1x32xf32>
    %111 = arith.divf %109, %110 : vector<1x32xf32>
    %cst_32 = arith.constant 9.99999974E-6 : f32
    %112 = vector.broadcast %cst_32 : f32 to vector<1x32xf32>
    %113 = arith.addf %111, %112 : vector<1x32xf32>
    %114 = math.rsqrt %113 : vector<1x32xf32>
    %115 = vector.broadcast %104 : vector<1x32xf32> to vector<32x32xf32>
    %116 = arith.subf %100, %115 : vector<32x32xf32>
    %c0_33 = arith.constant 0 : index
    %c0_34 = arith.constant 0 : index
    %117 = vector.load %arg5[%c0_33, %c0_34] : memref<1x32xf32, #tpu.memory_space<vmem>>, vector<1x32xf32>
    %118 = arith.mulf %114, %117 : vector<1x32xf32>
    %119 = vector.broadcast %118 : vector<1x32xf32> to vector<32x32xf32>
    %120 = arith.mulf %116, %119 : vector<32x32xf32>
    %c0_35 = arith.constant 0 : index
    %c0_36 = arith.constant 0 : index
    %121 = vector.load %arg6[%c0_35, %c0_36] : memref<1x32xf32, #tpu.memory_space<vmem>>, vector<1x32xf32>
    %122 = vector.broadcast %121 : vector<1x32xf32> to vector<32x32xf32>
    %123 = arith.addf %120, %122 : vector<32x32xf32>
    %c0_37 = arith.constant 0 : index
    %c0_38 = arith.constant 0 : index
    %124 = vector.load %arg7[%c0_37, %c0_38] : memref<32x64xbf16, #tpu.memory_space<vmem>>, vector<32x64xbf16>
    %125 = arith.truncf %123 : vector<32x32xf32> to vector<32x32xbf16>
    %cst_39 = arith.constant dense<0.000000e+00> : vector<32x64xf32>
    %126 = tpu.matmul %125, %124, %cst_39 {dimension_numbers = #tpu.dot_dimension_numbers<[1], [0], [0], [1], [0, 0, 1, 1], [], []>} : vector<32x32xbf16>, vector<32x64xbf16>, vector<32x64xf32> -> vector<32x64xf32>
    %c0_40 = arith.constant 0 : index
    %c0_41 = arith.constant 0 : index
    %127 = vector.load %arg8[%c0_40, %c0_41] : memref<1x64xf32, #tpu.memory_space<vmem>>, vector<1x64xf32>
    %128 = vector.broadcast %127 : vector<1x64xf32> to vector<32x64xf32>
    %129 = arith.addf %126, %128 : vector<32x64xf32>
    %130 = arith.mulf %129, %129 : vector<32x64xf32>
    %131 = arith.mulf %129, %130 : vector<32x64xf32>
    %cst_42 = arith.constant 4.471500e-02 : f32
    %132 = vector.broadcast %cst_42 : f32 to vector<32x64xf32>
    %133 = arith.mulf %132, %131 : vector<32x64xf32>
    %134 = arith.addf %129, %133 : vector<32x64xf32>
    %cst_43 = arith.constant 0.797884583 : f32
    %135 = vector.broadcast %cst_43 : f32 to vector<32x64xf32>
    %136 = arith.mulf %135, %134 : vector<32x64xf32>
    %137 = math.tanh %136 : vector<32x64xf32>
    %cst_44 = arith.constant 1.000000e+00 : f32
    %138 = vector.broadcast %cst_44 : f32 to vector<32x64xf32>
    %139 = arith.addf %138, %137 : vector<32x64xf32>
    %cst_45 = arith.constant 5.000000e-01 : f32
    %140 = vector.broadcast %cst_45 : f32 to vector<32x64xf32>
    %141 = arith.mulf %140, %139 : vector<32x64xf32>
    %142 = arith.mulf %129, %141 : vector<32x64xf32>
    %c0_46 = arith.constant 0 : index
    %c0_47 = arith.constant 0 : index
    %143 = vector.load %arg9[%c0_46, %c0_47] : memref<64x32xbf16, #tpu.memory_space<vmem>>, vector<64x32xbf16>
    %144 = arith.truncf %142 : vector<32x64xf32> to vector<32x64xbf16>
    %cst_48 = arith.constant dense<0.000000e+00> : vector<32x32xf32>
    %145 = tpu.matmul %144, %143, %cst_48 {dimension_numbers = #tpu.dot_dimension_numbers<[1], [0], [0], [1], [0, 0, 1, 1], [], []>} : vector<32x64xbf16>, vector<64x32xbf16>, vector<32x32xf32> -> vector<32x32xf32>
    %146 = arith.addf %123, %145 : vector<32x32xf32>
    %c0_49 = arith.constant 0 : index
    %c0_50 = arith.constant 0 : index
    %147 = vector.load %arg10[%c0_49, %c0_50] : memref<1x32xf32, #tpu.memory_space<vmem>>, vector<1x32xf32>
    %148 = vector.broadcast %147 : vector<1x32xf32> to vector<32x32xf32>
    %149 = arith.addf %146, %148 : vector<32x32xf32>
    %cst_51 = arith.constant dense<0.000000e+00> : vector<32xf32>
    %150 = vector.multi_reduction <add>, %149, %cst_51 [0] : vector<32x32xf32> to vector<32xf32>
    %151 = vector.shape_cast %150 : vector<32xf32> to vector<1x32xf32>
    %cst_52 = arith.constant 3.200000e+01 : f32
    %152 = vector.broadcast %cst_52 : f32 to vector<1x32xf32>
    %153 = arith.divf %151, %152 : vector<1x32xf32>
    %154 = vector.broadcast %153 : vector<1x32xf32> to vector<32x32xf32>
    %155 = arith.subf %149, %154 : vector<32x32xf32>
    %156 = arith.mulf %155, %155 : vector<32x32xf32>
    %cst_53 = arith.constant dense<0.000000e+00> : vector<32xf32>
    %157 = vector.multi_reduction <add>, %156, %cst_53 [0] : vector<32x32xf32> to vector<32xf32>
    %158 = vector.shape_cast %157 : vector<32xf32> to vector<1x32xf32>
    %cst_54 = arith.constant 3.200000e+01 : f32
    %159 = vector.broadcast %cst_54 : f32 to vector<1x32xf32>
    %160 = arith.divf %158, %159 : vector<1x32xf32>
    %cst_55 = arith.constant 9.99999974E-6 : f32
    %161 = vector.broadcast %cst_55 : f32 to vector<1x32xf32>
    %162 = arith.addf %160, %161 : vector<1x32xf32>
    %163 = math.rsqrt %162 : vector<1x32xf32>
    %164 = vector.broadcast %153 : vector<1x32xf32> to vector<32x32xf32>
    %165 = arith.subf %149, %164 : vector<32x32xf32>
    %c0_56 = arith.constant 0 : index
    %c0_57 = arith.constant 0 : index
    %166 = vector.load %arg11[%c0_56, %c0_57] : memref<1x32xf32, #tpu.memory_space<vmem>>, vector<1x32xf32>
    %167 = arith.mulf %163, %166 : vector<1x32xf32>
    %168 = vector.broadcast %167 : vector<1x32xf32> to vector<32x32xf32>
    %169 = arith.mulf %165, %168 : vector<32x32xf32>
    %c0_58 = arith.constant 0 : index
    %c0_59 = arith.constant 0 : index
    %170 = vector.load %arg12[%c0_58, %c0_59] : memref<1x32xf32, #tpu.memory_space<vmem>>, vector<1x32xf32>
    %171 = vector.broadcast %170 : vector<1x32xf32> to vector<32x32xf32>
    %172 = arith.addf %169, %171 : vector<32x32xf32>
    %c0_60 = arith.constant 0 : index
    %c0_61 = arith.constant 0 : index
    %173 = vector.load %arg13[%c0_60, %c0_61] : memref<32x32xbf16, #tpu.memory_space<vmem>>, vector<32x32xbf16>
    %174 = arith.truncf %172 : vector<32x32xf32> to vector<32x32xbf16>
    %cst_62 = arith.constant dense<0.000000e+00> : vector<32x32xf32>
    %175 = tpu.matmul %174, %173, %cst_62 {dimension_numbers = #tpu.dot_dimension_numbers<[1], [0], [0], [1], [0, 0, 1, 1], [], []>} : vector<32x32xbf16>, vector<32x32xbf16>, vector<32x32xf32> -> vector<32x32xf32>
    %c0_63 = arith.constant 0 : index
    %c0_64 = arith.constant 0 : index
    %176 = vector.load %arg14[%c0_63, %c0_64] : memref<1x32xf32, #tpu.memory_space<vmem>>, vector<1x32xf32>
    %177 = vector.broadcast %176 : vector<1x32xf32> to vector<32x32xf32>
    %178 = arith.addf %175, %177 : vector<32x32xf32>
    %179 = arith.mulf %172, %172 : vector<32x32xf32>
    %180 = arith.mulf %172, %179 : vector<32x32xf32>
    %cst_65 = arith.constant 4.471500e-02 : f32
    %181 = vector.broadcast %cst_65 : f32 to vector<32x32xf32>
    %182 = arith.mulf %181, %180 : vector<32x32xf32>
    %183 = arith.addf %172, %182 : vector<32x32xf32>
    %cst_66 = arith.constant 0.797884583 : f32
    %184 = vector.broadcast %cst_66 : f32 to vector<32x32xf32>
    %185 = arith.mulf %184, %183 : vector<32x32xf32>
    %186 = math.tanh %185 : vector<32x32xf32>
    %cst_67 = arith.constant 1.000000e+00 : f32
    %187 = vector.broadcast %cst_67 : f32 to vector<32x32xf32>
    %188 = arith.addf %187, %186 : vector<32x32xf32>
    %cst_68 = arith.constant 5.000000e-01 : f32
    %189 = vector.broadcast %cst_68 : f32 to vector<32x32xf32>
    %190 = arith.mulf %189, %188 : vector<32x32xf32>
    %191 = arith.mulf %172, %190 : vector<32x32xf32>
    %192 = vector.shape_cast %191 : vector<32x32xf32> to vector<2x16x32xf32>
    %cst_69 = arith.constant 0.000000e+00 : f32
    %193 = vector.broadcast %cst_69 : f32 to vector<2x1x32xf32>
    %194 = vector.extract_strided_slice %192 {offsets = [0, 0, 0], sizes = [2, 15, 32], strides = [1, 1, 1]} : vector<2x16x32xf32> to vector<2x15x32xf32>
    %195 = tpu.concatenate %193, %194 in 1 : vector<2x1x32xf32>, vector<2x15x32xf32> -> vector<2x16x32xf32>
    %196 = vector.extract_strided_slice %192 {offsets = [0, 1, 0], sizes = [2, 15, 32], strides = [1, 1, 1]} : vector<2x16x32xf32> to vector<2x15x32xf32>
    %197 = tpu.concatenate %196, %193 in 1 : vector<2x15x32xf32>, vector<2x1x32xf32> -> vector<2x16x32xf32>
    %198 = tpu.concatenate %195, %192, %197 in 2 : vector<2x16x32xf32>, vector<2x16x32xf32>, vector<2x16x32xf32> -> vector<2x16x96xf32>
    %199 = vector.shape_cast %198 : vector<2x16x96xf32> to vector<32x96xf32>
    %c0_70 = arith.constant 0 : index
    %c0_71 = arith.constant 0 : index
    %200 = vector.load %arg15[%c0_70, %c0_71] : memref<96x32xbf16, #tpu.memory_space<vmem>>, vector<96x32xbf16>
    %201 = arith.truncf %199 : vector<32x96xf32> to vector<32x96xbf16>
    %cst_72 = arith.constant dense<0.000000e+00> : vector<32x32xf32>
    %202 = tpu.matmul %201, %200, %cst_72 {dimension_numbers = #tpu.dot_dimension_numbers<[1], [0], [0], [1], [0, 0, 1, 1], [], []>} : vector<32x96xbf16>, vector<96x32xbf16>, vector<32x32xf32> -> vector<32x32xf32>
    %c0_73 = arith.constant 0 : index
    %c0_74 = arith.constant 0 : index
    %203 = vector.load %arg16[%c0_73, %c0_74] : memref<1x32xf32, #tpu.memory_space<vmem>>, vector<1x32xf32>
    %204 = vector.broadcast %203 : vector<1x32xf32> to vector<32x32xf32>
    %205 = arith.addf %202, %204 : vector<32x32xf32>
    %206 = arith.mulf %205, %205 : vector<32x32xf32>
    %207 = arith.mulf %205, %206 : vector<32x32xf32>
    %cst_75 = arith.constant 4.471500e-02 : f32
    %208 = vector.broadcast %cst_75 : f32 to vector<32x32xf32>
    %209 = arith.mulf %208, %207 : vector<32x32xf32>
    %210 = arith.addf %205, %209 : vector<32x32xf32>
    %cst_76 = arith.constant 0.797884583 : f32
    %211 = vector.broadcast %cst_76 : f32 to vector<32x32xf32>
    %212 = arith.mulf %211, %210 : vector<32x32xf32>
    %213 = math.tanh %212 : vector<32x32xf32>
    %cst_77 = arith.constant 1.000000e+00 : f32
    %214 = vector.broadcast %cst_77 : f32 to vector<32x32xf32>
    %215 = arith.addf %214, %213 : vector<32x32xf32>
    %cst_78 = arith.constant 5.000000e-01 : f32
    %216 = vector.broadcast %cst_78 : f32 to vector<32x32xf32>
    %217 = arith.mulf %216, %215 : vector<32x32xf32>
    %218 = arith.mulf %205, %217 : vector<32x32xf32>
    %219 = vector.shape_cast %218 : vector<32x32xf32> to vector<2x16x32xf32>
    %cst_79 = arith.constant 0.000000e+00 : f32
    %220 = vector.broadcast %cst_79 : f32 to vector<2x1x32xf32>
    %221 = vector.extract_strided_slice %219 {offsets = [0, 0, 0], sizes = [2, 15, 32], strides = [1, 1, 1]} : vector<2x16x32xf32> to vector<2x15x32xf32>
    %222 = tpu.concatenate %220, %221 in 1 : vector<2x1x32xf32>, vector<2x15x32xf32> -> vector<2x16x32xf32>
    %223 = vector.extract_strided_slice %219 {offsets = [0, 1, 0], sizes = [2, 15, 32], strides = [1, 1, 1]} : vector<2x16x32xf32> to vector<2x15x32xf32>
    %224 = tpu.concatenate %223, %220 in 1 : vector<2x15x32xf32>, vector<2x1x32xf32> -> vector<2x16x32xf32>
    %225 = tpu.concatenate %222, %219, %224 in 2 : vector<2x16x32xf32>, vector<2x16x32xf32>, vector<2x16x32xf32> -> vector<2x16x96xf32>
    %226 = vector.shape_cast %225 : vector<2x16x96xf32> to vector<32x96xf32>
    %c0_80 = arith.constant 0 : index
    %c0_81 = arith.constant 0 : index
    %227 = vector.load %arg17[%c0_80, %c0_81] : memref<96x32xbf16, #tpu.memory_space<vmem>>, vector<96x32xbf16>
    %228 = arith.truncf %226 : vector<32x96xf32> to vector<32x96xbf16>
    %cst_82 = arith.constant dense<0.000000e+00> : vector<32x32xf32>
    %229 = tpu.matmul %228, %227, %cst_82 {dimension_numbers = #tpu.dot_dimension_numbers<[1], [0], [0], [1], [0, 0, 1, 1], [], []>} : vector<32x96xbf16>, vector<96x32xbf16>, vector<32x32xf32> -> vector<32x32xf32>
    %c0_83 = arith.constant 0 : index
    %c0_84 = arith.constant 0 : index
    %230 = vector.load %arg18[%c0_83, %c0_84] : memref<1x32xf32, #tpu.memory_space<vmem>>, vector<1x32xf32>
    %231 = vector.broadcast %230 : vector<1x32xf32> to vector<32x32xf32>
    %232 = arith.addf %229, %231 : vector<32x32xf32>
    %233 = arith.addf %232, %178 : vector<32x32xf32>
    %234 = vector.shape_cast %233 : vector<32x32xf32> to vector<2x16x32xf32>
    %c0_85 = arith.constant 0 : index
    %c0_86 = arith.constant 0 : index
    %c0_87 = arith.constant 0 : index
    %235 = vector.load %arg19[%c0_85, %c0_86, %c0_87] : memref<2x16x32xf32, #tpu.memory_space<vmem>>, vector<2x16x32xf32>
    tpu.vector_store %arg19[%c0_85, %c0_86, %c0_87], %234 {strides = array<i32>} : memref<2x16x32xf32, #tpu.memory_space<vmem>>, vector<2x16x32xf32>,
    return
  }
}

</mosaic_0001>

<llo_original>
// kernel: tst_encoder.2
$region0: #{tst_encoder.2}
  #allocation0 [shape = 'u32[]', space=smem, size = 0x4, offset = 0x4, fixed_abs, tag = 'smem constant byte address 0x4 - core index']
  #allocation1 [shape = 'u32[144,128]{1,0:T(1,128)}', space=vmem, size = 0x12000, scoped, tag = 'internal scratch']
  %s0 = inlined_call_operand.vmem [shape: f32[2,16,32], index: 0, kind: input, shape index: {}]
  %s1 = inlined_call_operand.vmem [shape: bf16[32,96], index: 1, kind: input, shape index: {}]
  %s2 = inlined_call_operand.vmem [shape: f32[1,96], index: 2, kind: input, shape index: {}]
  %s3 = inlined_call_operand.vmem [shape: bf16[32,32], index: 3, kind: input, shape index: {}]
  %s4 = inlined_call_operand.hbm [shape: f32[1,32], index: 4, kind: input, shape index: {}]
  %s5 = inlined_call_operand.hbm [shape: f32[1,32], index: 5, kind: input, shape index: {}]
  %s6 = inlined_call_operand.hbm [shape: f32[1,32], index: 6, kind: input, shape index: {}]
  %s7 = inlined_call_operand.vmem [shape: bf16[32,64], index: 7, kind: input, shape index: {}]
  %s8 = inlined_call_operand.vmem [shape: f32[1,64], index: 8, kind: input, shape index: {}]
  %s9 = inlined_call_operand.vmem [shape: bf16[64,32], index: 9, kind: input, shape index: {}]
  %s10 = inlined_call_operand.vmem [shape: f32[1,32], index: 10, kind: input, shape index: {}]
  %s11 = inlined_call_operand.hbm [shape: f32[1,32], index: 11, kind: input, shape index: {}]
  %s12 = inlined_call_operand.hbm [shape: f32[1,32], index: 12, kind: input, shape index: {}]
  %s13 = inlined_call_operand.vmem [shape: bf16[32,32], index: 13, kind: input, shape index: {}]
  %s14 = inlined_call_operand.hbm [shape: f32[1,32], index: 14, kind: input, shape index: {}]
  %s15 = inlined_call_operand.vmem [shape: bf16[96,32], index: 15, kind: input, shape index: {}]
  %s16 = inlined_call_operand.hbm [shape: f32[1,32], index: 16, kind: input, shape index: {}]
  %s17 = inlined_call_operand.vmem [shape: bf16[96,32], index: 17, kind: input, shape index: {}]
  %s18 = inlined_call_operand.hbm [shape: f32[1,32], index: 18, kind: input, shape index: {}]
  %s19 = inlined_call_operand.vmem [shape: f32[2,16,32], index: 19, kind: output, shape index: {}]
  %s20 = sld [smem:[#allocation0]]
  $region118: #{tst_encoder.2} parent=0
    _
  %s22 = ssub.s32 1, %s20
  %s23 = scalar_select 0, %s22, %s20
  $region1: #{tst_encoder.2} parent=0
    #allocation2 [shape = 'u8[512]{0}', space=vmem, size = 0x400, scoped, tag = 'input window, operand 4, single buffered']
    #allocation3 [shape = 's32[1]{0}', space=sflag, size = 0x4, scoped, tag = 'scoped memory for tst_encoder.2']
    #allocation4 [shape = 'u8[512]{0}', space=vmem, size = 0x400, scoped, tag = 'input window, operand 5, single buffered']
    #allocation5 [shape = 's32[1]{0}', space=sflag, size = 0x4, scoped, tag = 'scoped memory for tst_encoder.2']
    #allocation6 [shape = 'u8[512]{0}', space=vmem, size = 0x400, scoped, tag = 'input window, operand 6, single buffered']
    #allocation7 [shape = 'u8[512]{0}', space=vmem, size = 0x400, scoped, tag = 'input window, operand 11, single buffered']
    #allocation8 [shape = 's32[1]{0}', space=sflag, size = 0x4, scoped, tag = 'scoped memory for tst_encoder.2']
    #allocation9 [shape = 'u8[512]{0}', space=vmem, size = 0x400, scoped, tag = 'input window, operand 12, single buffered']
    #allocation10 [shape = 'u8[512]{0}', space=vmem, size = 0x400, scoped, tag = 'input window, operand 14, single buffered']
    #allocation11 [shape = 's32[1]{0}', space=sflag, size = 0x4, scoped, tag = 'scoped memory for tst_encoder.2']
    #allocation12 [shape = 'u8[512]{0}', space=vmem, size = 0x400, scoped, tag = 'input window, operand 16, single buffered']
    #allocation13 [shape = 'u8[512]{0}', space=vmem, size = 0x400, scoped, tag = 'input window, operand 18, single buffered']
    #allocation14 [shape = 's32[1]{0}', space=sflag, size = 0x4, scoped, tag = 'scoped memory for tst_encoder.2']
    %24 = vsyncpa [#allocation3], 0
    %25 = vsyncpa [#allocation5], 0
    %26 = vsyncpa [#allocation8], 0
    %27 = vsyncpa [#allocation11], 0
    %28 = vsyncpa [#allocation14], 0
    // Predicated region
    $region2: #{tst_encoder.2} parent=1 // pred_check
      _
    $region3: #{tst_encoder.2} parent=1 // pred_check_branch
      %30 = sbr.rel (0) target = $region5
    $region4: #{tst_encoder.2} parent=1 // pred_region
      _
    $region5: #{tst_encoder.2} parent=1 // pred_fallthru
      _
    // Predicated region
    $region6: #{tst_encoder.2} parent=1 // pred_check
      _
    $region7: #{tst_encoder.2} parent=1 // pred_check_branch
      %32 = sbr.rel (0) target = $region9
    $region8: #{tst_encoder.2} parent=1 // pred_region
      _
    $region9: #{tst_encoder.2} parent=1 // pred_fallthru
      _
    // Predicated region
    $region10: #{tst_encoder.2} parent=1 // pred_check
      _
    $region11: #{tst_encoder.2} parent=1 // pred_check_branch
      %34 = sbr.rel (0) target = $region13
    $region12: #{tst_encoder.2} parent=1 // pred_region
      _
    $region13: #{tst_encoder.2} parent=1 // pred_fallthru
      _
    // Predicated region
    $region14: #{tst_encoder.2} parent=1 // pred_check
      _
    $region15: #{tst_encoder.2} parent=1 // pred_check_branch
      %36 = sbr.rel (0) target = $region17
    $region16: #{tst_encoder.2} parent=1 // pred_region
      _
    $region17: #{tst_encoder.2} parent=1 // pred_fallthru
      _
    // Predicated region
    $region18: #{tst_encoder.2} parent=1 // pred_check
      _
    $region19: #{tst_encoder.2} parent=1 // pred_check_branch
      %38 = sbr.rel (0) target = $region21
    $region20: #{tst_encoder.2} parent=1 // pred_region
      %s40 = ssub.s32 16, 16
      %41 = vsyncadd [#allocation3], %s40
      %s43 = sshll.u32 [#allocation2], 4
      %s44 = int_to_ptr.vmem [resolvable:$true] %s43
      %46 = dma.hbm_to_vmem [thread:$0]  %s4, 16, %s44, [#allocation3]
    $region21: #{tst_encoder.2} parent=1 // pred_fallthru
      _
    // Predicated region
    $region22: #{tst_encoder.2} parent=1 // pred_check
      _
    $region23: #{tst_encoder.2} parent=1 // pred_check_branch
      %48 = sbr.rel (0) target = $region25
    $region24: #{tst_encoder.2} parent=1 // pred_region
      %s50 = ssub.s32 16, 16
      %51 = vsyncadd [#allocation5], %s50
      %s53 = sshll.u32 [#allocation4], 4
      %s54 = int_to_ptr.vmem [resolvable:$true] %s53
      %56 = dma.hbm_to_vmem [thread:$0]  %s5, 16, %s54, [#allocation5]
    $region25: #{tst_encoder.2} parent=1 // pred_fallthru
      _
    // Predicated region
    $region26: #{tst_encoder.2} parent=1 // pred_check
      _
    $region27: #{tst_encoder.2} parent=1 // pred_check_branch
      %58 = sbr.rel (0) target = $region29
    $region28: #{tst_encoder.2} parent=1 // pred_region
      %s60 = ssub.s32 16, 16
      %61 = vsyncadd [#allocation5], %s60
      %s63 = sshll.u32 [#allocation6], 4
      %s64 = int_to_ptr.vmem [resolvable:$true] %s63
      %66 = dma.hbm_to_vmem [thread:$0]  %s6, 16, %s64, [#allocation5]
    $region29: #{tst_encoder.2} parent=1 // pred_fallthru
      _
    // Predicated region
    $region30: #{tst_encoder.2} parent=1 // pred_check
      _
    $region31: #{tst_encoder.2} parent=1 // pred_check_branch
      %68 = sbr.rel (0) target = $region33
    $region32: #{tst_encoder.2} parent=1 // pred_region
      _
    $region33: #{tst_encoder.2} parent=1 // pred_fallthru
      _
    // Predicated region
    $region34: #{tst_encoder.2} parent=1 // pred_check
      _
    $region35: #{tst_encoder.2} parent=1 // pred_check_branch
      %70 = sbr.rel (0) target = $region37
    $region36: #{tst_encoder.2} parent=1 // pred_region
      _
    $region37: #{tst_encoder.2} parent=1 // pred_fallthru
      _
    // Predicated region
    $region38: #{tst_encoder.2} parent=1 // pred_check
      _
    $region39: #{tst_encoder.2} parent=1 // pred_check_branch
      %72 = sbr.rel (0) target = $region41
    $region40: #{tst_encoder.2} parent=1 // pred_region
      _
    $region41: #{tst_encoder.2} parent=1 // pred_fallthru
      _
    // Predicated region
    $region42: #{tst_encoder.2} parent=1 // pred_check
      _
    $region43: #{tst_encoder.2} parent=1 // pred_check_branch
      %74 = sbr.rel (0) target = $region45
    $region44: #{tst_encoder.2} parent=1 // pred_region
      _
    $region45: #{tst_encoder.2} parent=1 // pred_fallthru
      _
    // Predicated region
    $region46: #{tst_encoder.2} parent=1 // pred_check
      _
    $region47: #{tst_encoder.2} parent=1 // pred_check_branch
      %76 = sbr.rel (0) target = $region49
    $region48: #{tst_encoder.2} parent=1 // pred_region
      %s78 = ssub.s32 16, 16
      %79 = vsyncadd [#allocation8], %s78
      %s81 = sshll.u32 [#allocation7], 4
      %s82 = int_to_ptr.vmem [resolvable:$true] %s81
      %84 = dma.hbm_to_vmem [thread:$0]  %s11, 16, %s82, [#allocation8]
    $region49: #{tst_encoder.2} parent=1 // pred_fallthru
      _
    // Predicated region
    $region50: #{tst_encoder.2} parent=1 // pred_check
      _
    $region51: #{tst_encoder.2} parent=1 // pred_check_branch
      %86 = sbr.rel (0) target = $region53
    $region52: #{tst_encoder.2} parent=1 // pred_region
      %s88 = ssub.s32 16, 16
      %89 = vsyncadd [#allocation8], %s88
      %s91 = sshll.u32 [#allocation9], 4
      %s92 = int_to_ptr.vmem [resolvable:$true] %s91
      %94 = dma.hbm_to_vmem [thread:$0]  %s12, 16, %s92, [#allocation8]
    $region53: #{tst_encoder.2} parent=1 // pred_fallthru
      _
    // Predicated region
    $region54: #{tst_encoder.2} parent=1 // pred_check
      _
    $region55: #{tst_encoder.2} parent=1 // pred_check_branch
      %96 = sbr.rel (0) target = $region57
    $region56: #{tst_encoder.2} parent=1 // pred_region
      _
    $region57: #{tst_encoder.2} parent=1 // pred_fallthru
      _
    // Predicated region
    $region58: #{tst_encoder.2} parent=1 // pred_check
      _
    $region59: #{tst_encoder.2} parent=1 // pred_check_branch
      %98 = sbr.rel (0) target = $region61
    $region60: #{tst_encoder.2} parent=1 // pred_region
      %s100 = ssub.s32 16, 16
      %101 = vsyncadd [#allocation11], %s100
      %s103 = sshll.u32 [#allocation10], 4
      %s104 = int_to_ptr.vmem [resolvable:$true] %s103
      %106 = dma.hbm_to_vmem [thread:$0]  %s14, 16, %s104, [#allocation11]
    $region61: #{tst_encoder.2} parent=1 // pred_fallthru
      _
    // Predicated region
    $region62: #{tst_encoder.2} parent=1 // pred_check
      _
    $region63: #{tst_encoder.2} parent=1 // pred_check_branch
      %108 = sbr.rel (0) target = $region65
    $region64: #{tst_encoder.2} parent=1 // pred_region
      _
    $region65: #{tst_encoder.2} parent=1 // pred_fallthru
      _
    // Predicated region
    $region66: #{tst_encoder.2} parent=1 // pred_check
      _
    $region67: #{tst_encoder.2} parent=1 // pred_check_branch
      %110 = sbr.rel (0) target = $region69
    $region68: #{tst_encoder.2} parent=1 // pred_region
      %s112 = ssub.s32 16, 16
      %113 = vsyncadd [#allocation11], %s112
      %s115 = sshll.u32 [#allocation12], 4
      %s116 = int_to_ptr.vmem [resolvable:$true] %s115
      %118 = dma.hbm_to_vmem [thread:$0]  %s16, 16, %s116, [#allocation11]
    $region69: #{tst_encoder.2} parent=1 // pred_fallthru
      _
    // Predicated region
    $region70: #{tst_encoder.2} parent=1 // pred_check
      _
    $region71: #{tst_encoder.2} parent=1 // pred_check_branch
      %120 = sbr.rel (0) target = $region73
    $region72: #{tst_encoder.2} parent=1 // pred_region
      _
    $region73: #{tst_encoder.2} parent=1 // pred_fallthru
      _
    // Predicated region
    $region74: #{tst_encoder.2} parent=1 // pred_check
      _
    $region75: #{tst_encoder.2} parent=1 // pred_check_branch
      %122 = sbr.rel (0) target = $region77
    $region76: #{tst_encoder.2} parent=1 // pred_region
      %s124 = ssub.s32 16, 16
      %125 = vsyncadd [#allocation14], %s124
      %s127 = sshll.u32 [#allocation13], 4
      %s128 = int_to_ptr.vmem [resolvable:$true] %s127
      %130 = dma.hbm_to_vmem [thread:$0]  %s18, 16, %s128, [#allocation14]
    $region77: #{tst_encoder.2} parent=1 // pred_fallthru
      _
    // Predicated region
    $region78: #{tst_encoder.2} parent=1 // pred_check
      _
    $region79: #{tst_encoder.2} parent=1 // pred_check_branch
      %132 = sbr.rel (0) target = $region81
    $region80: #{tst_encoder.2} parent=1 // pred_region
      %133 = dma.done [#allocation3], 16
    $region81: #{tst_encoder.2} parent=1 // pred_fallthru
      _
    // Predicated region
    $region82: #{tst_encoder.2} parent=1 // pred_check
      _
    $region83: #{tst_encoder.2} parent=1 // pred_check_branch
      %135 = sbr.rel (0) target = $region85
    $region84: #{tst_encoder.2} parent=1 // pred_region
      %136 = dma.done [#allocation5], 16
    $region85: #{tst_encoder.2} parent=1 // pred_fallthru
      _
    // Predicated region
    $region86: #{tst_encoder.2} parent=1 // pred_check
      _
    $region87: #{tst_encoder.2} parent=1 // pred_check_branch
      %138 = sbr.rel (0) target = $region89
    $region88: #{tst_encoder.2} parent=1 // pred_region
      %139 = dma.done [#allocation5], 16
    $region89: #{tst_encoder.2} parent=1 // pred_fallthru
      _
    // Predicated region
    $region90: #{tst_encoder.2} parent=1 // pred_check
      _
    $region91: #{tst_encoder.2} parent=1 // pred_check_branch
      %141 = sbr.rel (0) target = $region93
    $region92: #{tst_encoder.2} parent=1 // pred_region
      %142 = dma.done [#allocation8], 16
    $region93: #{tst_encoder.2} parent=1 // pred_fallthru
      _
    // Predicated region
    $region94: #{tst_encoder.2} parent=1 // pred_check
      _
    $region95: #{tst_encoder.2} parent=1 // pred_check_branch
      %144 = sbr.rel (0) target = $region97
    $region96: #{tst_encoder.2} parent=1 // pred_region
      %145 = dma.done [#allocation8], 16
    $region97: #{tst_encoder.2} parent=1 // pred_fallthru
      _
    // Predicated region
    $region98: #{tst_encoder.2} parent=1 // pred_check
      _
    $region99: #{tst_encoder.2} parent=1 // pred_check_branch
      %147 = sbr.rel (0) target = $region101
    $region100: #{tst_encoder.2} parent=1 // pred_region
      %148 = dma.done [#allocation11], 16
    $region101: #{tst_encoder.2} parent=1 // pred_fallthru
      _
    // Predicated region
    $region102: #{tst_encoder.2} parent=1 // pred_check
      _
    $region103: #{tst_encoder.2} parent=1 // pred_check_branch
      %150 = sbr.rel (0) target = $region105
    $region104: #{tst_encoder.2} parent=1 // pred_region
      %151 = dma.done [#allocation11], 16
    $region105: #{tst_encoder.2} parent=1 // pred_fallthru
      _
    // Predicated region
    $region106: #{tst_encoder.2} parent=1 // pred_check
      _
    $region107: #{tst_encoder.2} parent=1 // pred_check_branch
      %153 = sbr.rel (0) target = $region109
    $region108: #{tst_encoder.2} parent=1 // pred_region
      %154 = dma.done [#allocation14], 16
    $region109: #{tst_encoder.2} parent=1 // pred_fallthru
      _
    %v156 = vld [vmem:[%s0] sm:$0xff]
    %v157 = vld [vmem:[%s0 + $0x8] sm:$0xff]
    %v158 = vld [vmem:[%s0 + $0x10] sm:$0xff]
    %v159 = vld [vmem:[%s0 + $0x18] sm:$0xff]
    %v160 = vld [vmem:[%s1] sm:$0xf]
    %v161 = vld [vmem:[%s1 + $0x4] sm:$0xf]
    %v162 = vld [vmem:[%s1 + $0x8] sm:$0xf]
    %v163 = vld [vmem:[%s1 + $0xc] sm:$0xf]
    %v164 = vpack.c.bf16 %v157, %v156
    %v165 = vpack.c.bf16 %v159, %v158
    %v166 = vld [vmem:[%s2] sm:$0x1]
    %v168 = vlaneseq
    %v169 = vshrl.u32 %v168, 7
    %v170 = vsub.s32 0, %v169
    %v171 = vrot.slane %v166, %v170
    %v177 = vunpack.c.l.b16 %v160
    %v178 = vunpack.c.l.b16 %v161
    %v179 = vunpack.c.l.b16 %v162
    %v180 = vunpack.c.l.b16 %v163
    %v181 = vpack.c.b16 %v178, %v177
    %v182 = vpack.c.b16 %v180, %v179
    %vm185 = vcmask 261120
    %v187 = vsel %vm185, %v164, 0
    %v190 = vsel %vm185, %v165, 0
    %192 = vmatprep.subr.bf16.mxu0 0
    %193 = vmatpush1.bf16.msra.mxu0 %v181
    %194 = vmatprep.subr.bf16.mxu0 0
    %195 = vmatpush1.bf16.msra.mxu0 %v182
    %196 = vmatprep.subr.bf16.mxu0 0
    %197 = vmatpush1.bf16.msra.mxu0 0
    %198 = vmatprep.subr.bf16.mxu0 0
    %199 = vmatpush1.bf16.msra.mxu0 0
    %200 = vmatprep.subr.bf16.mxu0 0
    %201 = vmatpush1.bf16.msra.mxu0 0
    %202 = vmatprep.subr.bf16.mxu0 0
    %203 = vmatpush1.bf16.msra.mxu0 0
    %204 = vmatprep.subr.bf16.mxu0 0
    %205 = vmatpush1.bf16.msra.mxu0 0
    %206 = vmatprep.subr.bf16.mxu0 0
    %207 = vmatpush1.bf16.msra.mxu0 0
    %208 = vmatprep.subr.bf16.mxu0 0
    %209 = vmatpush1.bf16.msra.mxu0 0
    %210 = vmatprep.subr.bf16.mxu0 0
    %211 = vmatpush1.bf16.msra.mxu0 0
    %212 = vmatprep.subr.bf16.mxu0 0
    %213 = vmatpush1.bf16.msra.mxu0 0
    %214 = vmatprep.subr.bf16.mxu0 0
    %215 = vmatpush1.bf16.msra.mxu0 0
    %216 = vmatprep.subr.bf16.mxu0 0
    %217 = vmatpush1.bf16.msra.mxu0 0
    %218 = vmatprep.subr.bf16.mxu0 0
    %219 = vmatpush1.bf16.msra.mxu0 0
    %220 = vmatprep.subr.bf16.mxu0 0
    %221 = vmatpush1.bf16.msra.mxu0 0
    %222 = vmatprep.subr.bf16.mxu0 0
    %223 = vmatpush1.bf16.msra.mxu0 0
    %224 = vmatprep.mubr.bf16.mxu0 0
    %225 = vmatmul.mubr.bf16.gmra.mrb[0].mxu0 %v187
    %v226 = vpop.f32.mrb[0].mxu0
    %v227 = vadd.f32 %v171, %v226
    %v228 = vpop.f32.mrb[0].mxu0
    %v229 = vpop.f32.mrb[0].mxu0
    %v230 = vadd.f32 %v171, %v229
    %v231 = vpop.f32.mrb[0].mxu0
    %232 = vmatprep.mubr.bf16.mxu0 0
    %233 = vmatmul.mubr.bf16.gmra.mrb[0].mxu0 %v190
    %v234 = vpop.f32.mrb[0].mxu0
    %v235 = vadd.f32 %v171, %v234
    %v236 = vpop.f32.mrb[0].mxu0
    %v237 = vpop.f32.mrb[0].mxu0
    %v238 = vadd.f32 %v171, %v237
    %v239 = vpop.f32.mrb[0].mxu0
    %240 = vdwg.mxu0
    %v241 = vmul.f32 %v227, 0.35355338
    %v242 = vmul.f32 %v230, 0.35355338
    %v243 = vmul.f32 %v235, 0.35355338
    %v244 = vmul.f32 %v238, 0.35355338
    %v245 = vpack.c.bf16 %v242, %v241
    %v246 = vpack.c.bf16 %v244, %v243
    %v247 = vpack.c.bf16 %v230, %v227
    %v248 = vpack.c.bf16 %v238, %v235
    %250 = vrot.lane.b32.xlu0 %v247, 96
    %v251 = vpop.permute.xlu0 %250
    %vm252 = vcmask 64512
    %v254 = vsel %vm252, %v245, 0
    %v257 = vsel %vm252, %v251, 0
    %259 = vmatprep.subr.bf16.mxu0 0
    %260 = vmatpush1.bf16.xpose.msra.mxu0 %v257
    %261 = vmatprep.subr.bf16.mxu0 0
    %262 = vmatpush1.bf16.xpose.msra.mxu0 0
    %263 = vmatprep.subr.bf16.mxu0 0
    %264 = vmatpush1.bf16.xpose.msra.mxu0 0
    %265 = vmatprep.subr.bf16.mxu0 0
    %266 = vmatpush1.bf16.xpose.msra.mxu0 0
    %267 = vmatprep.subr.bf16.mxu0 0
    %268 = vmatpush1.bf16.xpose.msra.mxu0 0
    %269 = vmatprep.subr.bf16.mxu0 0
    %270 = vmatpush1.bf16.xpose.msra.mxu0 0
    %271 = vmatprep.subr.bf16.mxu0 0
    %272 = vmatpush1.bf16.xpose.msra.mxu0 0
    %273 = vmatprep.subr.bf16.mxu0 0
    %274 = vmatpush1.bf16.xpose.msra.mxu0 0
    %275 = vmatprep.subr.bf16.mxu0 0
    %276 = vmatpush1.bf16.xpose.msra.mxu0 0
    %277 = vmatprep.subr.bf16.mxu0 0
    %278 = vmatpush1.bf16.xpose.msra.mxu0 0
    %279 = vmatprep.subr.bf16.mxu0 0
    %280 = vmatpush1.bf16.xpose.msra.mxu0 0
    %281 = vmatprep.subr.bf16.mxu0 0
    %282 = vmatpush1.bf16.xpose.msra.mxu0 0
    %283 = vmatprep.subr.bf16.mxu0 0
    %284 = vmatpush1.bf16.xpose.msra.mxu0 0
    %285 = vmatprep.subr.bf16.mxu0 0
    %286 = vmatpush1.bf16.xpose.msra.mxu0 0
    %287 = vmatprep.subr.bf16.mxu0 0
    %288 = vmatpush1.bf16.xpose.msra.mxu0 0
    %289 = vmatprep.subr.bf16.mxu0 0
    %290 = vmatpush1.bf16.xpose.msra.mxu0 0
    %291 = vmatprep.mubr.bf16.mxu0 0
    %292 = vmatmul.mubr.bf16.gmra.mrb[0].mxu0 %v254
    %v293 = vpop.f32.mrb[0].mxu0
    %v294 = vadd.f32 0.0, %v293
    %v295 = vpop.f32.mrb[0].mxu0
    %v296 = vpop.f32.mrb[0].mxu0
    %v297 = vadd.f32 0.0, %v296
    %v298 = vpop.f32.mrb[0].mxu0
    %299 = vdwg.mxu0
    %301 = vrot.lane.b32.xlu0 %v248, 96
    %v302 = vpop.permute.xlu0 %301
    %v304 = vsel %vm252, %v246, 0
    %v307 = vsel %vm252, %v302, 0
    %309 = vmatprep.subr.bf16.mxu0 0
    %310 = vmatpush1.bf16.xpose.msra.mxu0 %v307
    %311 = vmatprep.subr.bf16.mxu0 0
    %312 = vmatpush1.bf16.xpose.msra.mxu0 0
    %313 = vmatprep.subr.bf16.mxu0 0
    %314 = vmatpush1.bf16.xpose.msra.mxu0 0
    %315 = vmatprep.subr.bf16.mxu0 0
    %316 = vmatpush1.bf16.xpose.msra.mxu0 0
    %317 = vmatprep.subr.bf16.mxu0 0
    %318 = vmatpush1.bf16.xpose.msra.mxu0 0
    %319 = vmatprep.subr.bf16.mxu0 0
    %320 = vmatpush1.bf16.xpose.msra.mxu0 0
    %321 = vmatprep.subr.bf16.mxu0 0
    %322 = vmatpush1.bf16.xpose.msra.mxu0 0
    %323 = vmatprep.subr.bf16.mxu0 0
    %324 = vmatpush1.bf16.xpose.msra.mxu0 0
    %325 = vmatprep.subr.bf16.mxu0 0
    %326 = vmatpush1.bf16.xpose.msra.mxu0 0
    %327 = vmatprep.subr.bf16.mxu0 0
    %328 = vmatpush1.bf16.xpose.msra.mxu0 0
    %329 = vmatprep.subr.bf16.mxu0 0
    %330 = vmatpush1.bf16.xpose.msra.mxu0 0
    %331 = vmatprep.subr.bf16.mxu0 0
    %332 = vmatpush1.bf16.xpose.msra.mxu0 0
    %333 = vmatprep.subr.bf16.mxu0 0
    %334 = vmatpush1.bf16.xpose.msra.mxu0 0
    %335 = vmatprep.subr.bf16.mxu0 0
    %336 = vmatpush1.bf16.xpose.msra.mxu0 0
    %337 = vmatprep.subr.bf16.mxu0 0
    %338 = vmatpush1.bf16.xpose.msra.mxu0 0
    %339 = vmatprep.subr.bf16.mxu0 0
    %340 = vmatpush1.bf16.xpose.msra.mxu0 0
    %341 = vmatprep.mubr.bf16.mxu0 0
    %342 = vmatmul.mubr.bf16.gmra.mrb[0].mxu0 %v304
    %v343 = vpop.f32.mrb[0].mxu0
    %v344 = vadd.f32 0.0, %v343
    %v345 = vpop.f32.mrb[0].mxu0
    %v346 = vpop.f32.mrb[0].mxu0
    %v347 = vadd.f32 0.0, %v346
    %v348 = vpop.f32.mrb[0].mxu0
    %349 = vdwg.mxu0
    %vm350 = vcmask 130048
    %v351 = vsel %vm350, %v294, -inf
    %352 = vmax.xlane.f32.xlu0 %v351
    %v353 = vpop.xlane.xlu0 %352
    %v354 = vsel %vm350, %v297, -inf
    %355 = vmax.xlane.f32.xlu0 %v354
    %v356 = vpop.xlane.xlu0 %355
    %v357 = vsel %vm350, %v344, -inf
    %358 = vmax.xlane.f32.xlu0 %v357
    %v359 = vpop.xlane.xlu0 %358
    %v360 = vsel %vm350, %v347, -inf
    %361 = vmax.xlane.f32.xlu0 %v360
    %v362 = vpop.xlane.xlu0 %361
    %v363 = vsub.f32 %v294, %v353
    %v364 = vsub.f32 %v297, %v356
    %v365 = vsub.f32 %v344, %v359
    %v366 = vsub.f32 %v347, %v362
    %v367 = vmul.f32 %v363, 1.442695
    %v368 = vpow.pop %v367
    %v369 = vmul.f32 %v364, 1.442695
    %v370 = vpow.pop %v369
    %v371 = vmul.f32 %v365, 1.442695
    %v372 = vpow.pop %v371
    %v373 = vmul.f32 %v366, 1.442695
    %v374 = vpow.pop %v373
    %v375 = vsel %vm350, %v368, 0.0
    %376 = vadd.xlane.f32.xlu0 %v375
    %v377 = vpop.xlane.xlu0 %376
    %v378 = vsel %vm350, %v370, 0.0
    %379 = vadd.xlane.f32.xlu0 %v378
    %v380 = vpop.xlane.xlu0 %379
    %v381 = vsel %vm350, %v372, 0.0
    %382 = vadd.xlane.f32.xlu0 %v381
    %v383 = vpop.xlane.xlu0 %382
    %v384 = vsel %vm350, %v374, 0.0
    %385 = vadd.xlane.f32.xlu0 %v384
    %v386 = vpop.xlane.xlu0 %385
    %v387 = vrcp.pop %v377
    %v388 = vrcp.pop %v380
    %v389 = vrcp.pop %v383
    %v390 = vrcp.pop %v386
    %v391 = vmul.f32 %v368, %v387
    %v392 = vmul.f32 %v370, %v388
    %v393 = vmul.f32 %v372, %v389
    %v394 = vmul.f32 %v374, %v390
    %v395 = vpack.c.bf16 %v392, %v391
    %v396 = vpack.c.bf16 %v394, %v393
    %397 = vrot.lane.b32.xlu0 %v247, 64
    %v398 = vpop.permute.xlu0 %397
    %v401 = vsel %vm350, %v395, 0
    %403 = vmatprep.subr.bf16.mxu0 0
    %404 = vmatpush1.bf16.msra.mxu0 %v398
    %405 = vmatprep.subr.bf16.mxu0 0
    %406 = vmatpush1.bf16.msra.mxu0 0
    %407 = vmatprep.subr.bf16.mxu0 0
    %408 = vmatpush1.bf16.msra.mxu0 0
    %409 = vmatprep.subr.bf16.mxu0 0
    %410 = vmatpush1.bf16.msra.mxu0 0
    %411 = vmatprep.subr.bf16.mxu0 0
    %412 = vmatpush1.bf16.msra.mxu0 0
    %413 = vmatprep.subr.bf16.mxu0 0
    %414 = vmatpush1.bf16.msra.mxu0 0
    %415 = vmatprep.subr.bf16.mxu0 0
    %416 = vmatpush1.bf16.msra.mxu0 0
    %417 = vmatprep.subr.bf16.mxu0 0
    %418 = vmatpush1.bf16.msra.mxu0 0
    %419 = vmatprep.subr.bf16.mxu0 0
    %420 = vmatpush1.bf16.msra.mxu0 0
    %421 = vmatprep.subr.bf16.mxu0 0
    %422 = vmatpush1.bf16.msra.mxu0 0
    %423 = vmatprep.subr.bf16.mxu0 0
    %424 = vmatpush1.bf16.msra.mxu0 0
    %425 = vmatprep.subr.bf16.mxu0 0
    %426 = vmatpush1.bf16.msra.mxu0 0
    %427 = vmatprep.subr.bf16.mxu0 0
    %428 = vmatpush1.bf16.msra.mxu0 0
    %429 = vmatprep.subr.bf16.mxu0 0
    %430 = vmatpush1.bf16.msra.mxu0 0
    %431 = vmatprep.subr.bf16.mxu0 0
    %432 = vmatpush1.bf16.msra.mxu0 0
    %433 = vmatprep.subr.bf16.mxu0 0
    %434 = vmatpush1.bf16.msra.mxu0 0
    %435 = vmatprep.mubr.bf16.mxu0 0
    %436 = vmatmul.mubr.bf16.gmra.mrb[0].mxu0 %v401
    %v437 = vpop.f32.mrb[0].mxu0
    %v438 = vadd.f32 0.0, %v437
    %v439 = vpop.f32.mrb[0].mxu0
    %v440 = vpop.f32.mrb[0].mxu0
    %v441 = vadd.f32 0.0, %v440
    %v442 = vpop.f32.mrb[0].mxu0
    %443 = vdwg.mxu0
    %444 = vrot.lane.b32.xlu0 %v248, 64
    %v445 = vpop.permute.xlu0 %444
    %v448 = vsel %vm350, %v396, 0
    %450 = vmatprep.subr.bf16.mxu0 0
    %451 = vmatpush1.bf16.msra.mxu0 %v445
    %452 = vmatprep.subr.bf16.mxu0 0
    %453 = vmatpush1.bf16.msra.mxu0 0
    %454 = vmatprep.subr.bf16.mxu0 0
    %455 = vmatpush1.bf16.msra.mxu0 0
    %456 = vmatprep.subr.bf16.mxu0 0
    %457 = vmatpush1.bf16.msra.mxu0 0
    %458 = vmatprep.subr.bf16.mxu0 0
    %459 = vmatpush1.bf16.msra.mxu0 0
    %460 = vmatprep.subr.bf16.mxu0 0
    %461 = vmatpush1.bf16.msra.mxu0 0
    %462 = vmatprep.subr.bf16.mxu0 0
    %463 = vmatpush1.bf16.msra.mxu0 0
    %464 = vmatprep.subr.bf16.mxu0 0
    %465 = vmatpush1.bf16.msra.mxu0 0
    %466 = vmatprep.subr.bf16.mxu0 0
    %467 = vmatpush1.bf16.msra.mxu0 0
    %468 = vmatprep.subr.bf16.mxu0 0
    %469 = vmatpush1.bf16.msra.mxu0 0
    %470 = vmatprep.subr.bf16.mxu0 0
    %471 = vmatpush1.bf16.msra.mxu0 0
    %472 = vmatprep.subr.bf16.mxu0 0
    %473 = vmatpush1.bf16.msra.mxu0 0
    %474 = vmatprep.subr.bf16.mxu0 0
    %475 = vmatpush1.bf16.msra.mxu0 0
    %476 = vmatprep.subr.bf16.mxu0 0
    %477 = vmatpush1.bf16.msra.mxu0 0
    %478 = vmatprep.subr.bf16.mxu0 0
    %479 = vmatpush1.bf16.msra.mxu0 0
    %480 = vmatprep.subr.bf16.mxu0 0
    %481 = vmatpush1.bf16.msra.mxu0 0
    %482 = vmatprep.mubr.bf16.mxu0 0
    %483 = vmatmul.mubr.bf16.gmra.mrb[0].mxu0 %v448
    %v484 = vpop.f32.mrb[0].mxu0
    %v485 = vadd.f32 0.0, %v484
    %v486 = vpop.f32.mrb[0].mxu0
    %v487 = vpop.f32.mrb[0].mxu0
    %v488 = vadd.f32 0.0, %v487
    %v489 = vpop.f32.mrb[0].mxu0
    %490 = vdwg.mxu0
    %492 = vrot.lane.b32.xlu0 %v245, 120
    %v493 = vpop.permute.xlu0 %492
    %494 = vrot.lane.b32.xlu0 %v247, 88
    %v495 = vpop.permute.xlu0 %494
    %v497 = vsel %vm252, %v493, 0
    %v500 = vsel %vm252, %v495, 0
    %502 = vmatprep.subr.bf16.mxu0 0
    %503 = vmatpush1.bf16.xpose.msra.mxu0 %v500
    %504 = vmatprep.subr.bf16.mxu0 0
    %505 = vmatpush1.bf16.xpose.msra.mxu0 0
    %506 = vmatprep.subr.bf16.mxu0 0
    %507 = vmatpush1.bf16.xpose.msra.mxu0 0
    %508 = vmatprep.subr.bf16.mxu0 0
    %509 = vmatpush1.bf16.xpose.msra.mxu0 0
    %510 = vmatprep.subr.bf16.mxu0 0
    %511 = vmatpush1.bf16.xpose.msra.mxu0 0
    %512 = vmatprep.subr.bf16.mxu0 0
    %513 = vmatpush1.bf16.xpose.msra.mxu0 0
    %514 = vmatprep.subr.bf16.mxu0 0
    %515 = vmatpush1.bf16.xpose.msra.mxu0 0
    %516 = vmatprep.subr.bf16.mxu0 0
    %517 = vmatpush1.bf16.xpose.msra.mxu0 0
    %518 = vmatprep.subr.bf16.mxu0 0
    %519 = vmatpush1.bf16.xpose.msra.mxu0 0
    %520 = vmatprep.subr.bf16.mxu0 0
    %521 = vmatpush1.bf16.xpose.msra.mxu0 0
    %522 = vmatprep.subr.bf16.mxu0 0
    %523 = vmatpush1.bf16.xpose.msra.mxu0 0
    %524 = vmatprep.subr.bf16.mxu0 0
    %525 = vmatpush1.bf16.xpose.msra.mxu0 0
    %526 = vmatprep.subr.bf16.mxu0 0
    %527 = vmatpush1.bf16.xpose.msra.mxu0 0
    %528 = vmatprep.subr.bf16.mxu0 0
    %529 = vmatpush1.bf16.xpose.msra.mxu0 0
    %530 = vmatprep.subr.bf16.mxu0 0
    %531 = vmatpush1.bf16.xpose.msra.mxu0 0
    %532 = vmatprep.subr.bf16.mxu0 0
    %533 = vmatpush1.bf16.xpose.msra.mxu0 0
    %534 = vmatprep.mubr.bf16.mxu0 0
    %535 = vmatmul.mubr.bf16.gmra.mrb[0].mxu0 %v497
    %v536 = vpop.f32.mrb[0].mxu0
    %v537 = vadd.f32 0.0, %v536
    %v538 = vpop.f32.mrb[0].mxu0
    %v539 = vpop.f32.mrb[0].mxu0
    %v540 = vadd.f32 0.0, %v539
    %v541 = vpop.f32.mrb[0].mxu0
    %542 = vdwg.mxu0
    %544 = vrot.lane.b32.xlu0 %v246, 120
    %v545 = vpop.permute.xlu0 %544
    %546 = vrot.lane.b32.xlu0 %v248, 88
    %v547 = vpop.permute.xlu0 %546
    %v549 = vsel %vm252, %v545, 0
    %v552 = vsel %vm252, %v547, 0
    %554 = vmatprep.subr.bf16.mxu0 0
    %555 = vmatpush1.bf16.xpose.msra.mxu0 %v552
    %556 = vmatprep.subr.bf16.mxu0 0
    %557 = vmatpush1.bf16.xpose.msra.mxu0 0
    %558 = vmatprep.subr.bf16.mxu0 0
    %559 = vmatpush1.bf16.xpose.msra.mxu0 0
    %560 = vmatprep.subr.bf16.mxu0 0
    %561 = vmatpush1.bf16.xpose.msra.mxu0 0
    %562 = vmatprep.subr.bf16.mxu0 0
    %563 = vmatpush1.bf16.xpose.msra.mxu0 0
    %564 = vmatprep.subr.bf16.mxu0 0
    %565 = vmatpush1.bf16.xpose.msra.mxu0 0
    %566 = vmatprep.subr.bf16.mxu0 0
    %567 = vmatpush1.bf16.xpose.msra.mxu0 0
    %568 = vmatprep.subr.bf16.mxu0 0
    %569 = vmatpush1.bf16.xpose.msra.mxu0 0
    %570 = vmatprep.subr.bf16.mxu0 0
    %571 = vmatpush1.bf16.xpose.msra.mxu0 0
    %572 = vmatprep.subr.bf16.mxu0 0
    %573 = vmatpush1.bf16.xpose.msra.mxu0 0
    %574 = vmatprep.subr.bf16.mxu0 0
    %575 = vmatpush1.bf16.xpose.msra.mxu0 0
    %576 = vmatprep.subr.bf16.mxu0 0
    %577 = vmatpush1.bf16.xpose.msra.mxu0 0
    %578 = vmatprep.subr.bf16.mxu0 0
    %579 = vmatpush1.bf16.xpose.msra.mxu0 0
    %580 = vmatprep.subr.bf16.mxu0 0
    %581 = vmatpush1.bf16.xpose.msra.mxu0 0
    %582 = vmatprep.subr.bf16.mxu0 0
    %583 = vmatpush1.bf16.xpose.msra.mxu0 0
    %584 = vmatprep.subr.bf16.mxu0 0
    %585 = vmatpush1.bf16.xpose.msra.mxu0 0
    %586 = vmatprep.mubr.bf16.mxu0 0
    %587 = vmatmul.mubr.bf16.gmra.mrb[0].mxu0 %v549
    %v588 = vpop.f32.mrb[0].mxu0
    %v589 = vadd.f32 0.0, %v588
    %v590 = vpop.f32.mrb[0].mxu0
    %v591 = vpop.f32.mrb[0].mxu0
    %v592 = vadd.f32 0.0, %v591
    %v593 = vpop.f32.mrb[0].mxu0
    %594 = vdwg.mxu0
    %v595 = vsel %vm350, %v537, -inf
    %596 = vmax.xlane.f32.xlu0 %v595
    %v597 = vpop.xlane.xlu0 %596
    %v598 = vsel %vm350, %v540, -inf
    %599 = vmax.xlane.f32.xlu0 %v598
    %v600 = vpop.xlane.xlu0 %599
    %v601 = vsel %vm350, %v589, -inf
    %602 = vmax.xlane.f32.xlu0 %v601
    %v603 = vpop.xlane.xlu0 %602
    %v604 = vsel %vm350, %v592, -inf
    %605 = vmax.xlane.f32.xlu0 %v604
    %v606 = vpop.xlane.xlu0 %605
    %v607 = vsub.f32 %v537, %v597
    %v608 = vsub.f32 %v540, %v600
    %v609 = vsub.f32 %v589, %v603
    %v610 = vsub.f32 %v592, %v606
    %v611 = vmul.f32 %v607, 1.442695
    %v612 = vpow.pop %v611
    %v613 = vmul.f32 %v608, 1.442695
    %v614 = vpow.pop %v613
    %v615 = vmul.f32 %v609, 1.442695
    %v616 = vpow.pop %v615
    %v617 = vmul.f32 %v610, 1.442695
    %v618 = vpow.pop %v617
    %v619 = vsel %vm350, %v612, 0.0
    %620 = vadd.xlane.f32.xlu0 %v619
    %v621 = vpop.xlane.xlu0 %620
    %v622 = vsel %vm350, %v614, 0.0
    %623 = vadd.xlane.f32.xlu0 %v622
    %v624 = vpop.xlane.xlu0 %623
    %v625 = vsel %vm350, %v616, 0.0
    %626 = vadd.xlane.f32.xlu0 %v625
    %v627 = vpop.xlane.xlu0 %626
    %v628 = vsel %vm350, %v618, 0.0
    %629 = vadd.xlane.f32.xlu0 %v628
    %v630 = vpop.xlane.xlu0 %629
    %v631 = vrcp.pop %v621
    %v632 = vrcp.pop %v624
    %v633 = vrcp.pop %v627
    %v634 = vrcp.pop %v630
    %v635 = vmul.f32 %v612, %v631
    %v636 = vmul.f32 %v614, %v632
    %v637 = vmul.f32 %v616, %v633
    %v638 = vmul.f32 %v618, %v634
    %v639 = vpack.c.bf16 %v636, %v635
    %v640 = vpack.c.bf16 %v638, %v637
    %641 = vrot.lane.b32.xlu0 %v247, 56
    %v642 = vpop.permute.xlu0 %641
    %v645 = vsel %vm350, %v639, 0
    %647 = vmatprep.subr.bf16.mxu0 0
    %648 = vmatpush1.bf16.msra.mxu0 %v642
    %649 = vmatprep.subr.bf16.mxu0 0
    %650 = vmatpush1.bf16.msra.mxu0 0
    %651 = vmatprep.subr.bf16.mxu0 0
    %652 = vmatpush1.bf16.msra.mxu0 0
    %653 = vmatprep.subr.bf16.mxu0 0
    %654 = vmatpush1.bf16.msra.mxu0 0
    %655 = vmatprep.subr.bf16.mxu0 0
    %656 = vmatpush1.bf16.msra.mxu0 0
    %657 = vmatprep.subr.bf16.mxu0 0
    %658 = vmatpush1.bf16.msra.mxu0 0
    %659 = vmatprep.subr.bf16.mxu0 0
    %660 = vmatpush1.bf16.msra.mxu0 0
    %661 = vmatprep.subr.bf16.mxu0 0
    %662 = vmatpush1.bf16.msra.mxu0 0
    %663 = vmatprep.subr.bf16.mxu0 0
    %664 = vmatpush1.bf16.msra.mxu0 0
    %665 = vmatprep.subr.bf16.mxu0 0
    %666 = vmatpush1.bf16.msra.mxu0 0
    %667 = vmatprep.subr.bf16.mxu0 0
    %668 = vmatpush1.bf16.msra.mxu0 0
    %669 = vmatprep.subr.bf16.mxu0 0
    %670 = vmatpush1.bf16.msra.mxu0 0
    %671 = vmatprep.subr.bf16.mxu0 0
    %672 = vmatpush1.bf16.msra.mxu0 0
    %673 = vmatprep.subr.bf16.mxu0 0
    %674 = vmatpush1.bf16.msra.mxu0 0
    %675 = vmatprep.subr.bf16.mxu0 0
    %676 = vmatpush1.bf16.msra.mxu0 0
    %677 = vmatprep.subr.bf16.mxu0 0
    %678 = vmatpush1.bf16.msra.mxu0 0
    %679 = vmatprep.mubr.bf16.mxu0 0
    %680 = vmatmul.mubr.bf16.gmra.mrb[0].mxu0 %v645
    %v681 = vpop.f32.mrb[0].mxu0
    %v682 = vadd.f32 0.0, %v681
    %v683 = vpop.f32.mrb[0].mxu0
    %v684 = vpop.f32.mrb[0].mxu0
    %v685 = vadd.f32 0.0, %v684
    %v686 = vpop.f32.mrb[0].mxu0
    %687 = vdwg.mxu0
    %688 = vrot.lane.b32.xlu0 %v248, 56
    %v689 = vpop.permute.xlu0 %688
    %v692 = vsel %vm350, %v640, 0
    %694 = vmatprep.subr.bf16.mxu0 0
    %695 = vmatpush1.bf16.msra.mxu0 %v689
    %696 = vmatprep.subr.bf16.mxu0 0
    %697 = vmatpush1.bf16.msra.mxu0 0
    %698 = vmatprep.subr.bf16.mxu0 0
    %699 = vmatpush1.bf16.msra.mxu0 0
    %700 = vmatprep.subr.bf16.mxu0 0
    %701 = vmatpush1.bf16.msra.mxu0 0
    %702 = vmatprep.subr.bf16.mxu0 0
    %703 = vmatpush1.bf16.msra.mxu0 0
    %704 = vmatprep.subr.bf16.mxu0 0
    %705 = vmatpush1.bf16.msra.mxu0 0
    %706 = vmatprep.subr.bf16.mxu0 0
    %707 = vmatpush1.bf16.msra.mxu0 0
    %708 = vmatprep.subr.bf16.mxu0 0
    %709 = vmatpush1.bf16.msra.mxu0 0
    %710 = vmatprep.subr.bf16.mxu0 0
    %711 = vmatpush1.bf16.msra.mxu0 0
    %712 = vmatprep.subr.bf16.mxu0 0
    %713 = vmatpush1.bf16.msra.mxu0 0
    %714 = vmatprep.subr.bf16.mxu0 0
    %715 = vmatpush1.bf16.msra.mxu0 0
    %716 = vmatprep.subr.bf16.mxu0 0
    %717 = vmatpush1.bf16.msra.mxu0 0
    %718 = vmatprep.subr.bf16.mxu0 0
    %719 = vmatpush1.bf16.msra.mxu0 0
    %720 = vmatprep.subr.bf16.mxu0 0
    %721 = vmatpush1.bf16.msra.mxu0 0
    %722 = vmatprep.subr.bf16.mxu0 0
    %723 = vmatpush1.bf16.msra.mxu0 0
    %724 = vmatprep.subr.bf16.mxu0 0
    %725 = vmatpush1.bf16.msra.mxu0 0
    %726 = vmatprep.mubr.bf16.mxu0 0
    %727 = vmatmul.mubr.bf16.gmra.mrb[0].mxu0 %v692
    %v728 = vpop.f32.mrb[0].mxu0
    %v729 = vadd.f32 0.0, %v728
    %v730 = vpop.f32.mrb[0].mxu0
    %v731 = vpop.f32.mrb[0].mxu0
    %v732 = vadd.f32 0.0, %v731
    %v733 = vpop.f32.mrb[0].mxu0
    %734 = vdwg.mxu0
    %735 = vrot.lane.b32.xlu0 %v245, 112
    %v736 = vpop.permute.xlu0 %735
    %737 = vrot.lane.b32.xlu0 %v247, 80
    %v738 = vpop.permute.xlu0 %737
    %v740 = vsel %vm252, %v736, 0
    %v743 = vsel %vm252, %v738, 0
    %745 = vmatprep.subr.bf16.mxu0 0
    %746 = vmatpush1.bf16.xpose.msra.mxu0 %v743
    %747 = vmatprep.subr.bf16.mxu0 0
    %748 = vmatpush1.bf16.xpose.msra.mxu0 0
    %749 = vmatprep.subr.bf16.mxu0 0
    %750 = vmatpush1.bf16.xpose.msra.mxu0 0
    %751 = vmatprep.subr.bf16.mxu0 0
    %752 = vmatpush1.bf16.xpose.msra.mxu0 0
    %753 = vmatprep.subr.bf16.mxu0 0
    %754 = vmatpush1.bf16.xpose.msra.mxu0 0
    %755 = vmatprep.subr.bf16.mxu0 0
    %756 = vmatpush1.bf16.xpose.msra.mxu0 0
    %757 = vmatprep.subr.bf16.mxu0 0
    %758 = vmatpush1.bf16.xpose.msra.mxu0 0
    %759 = vmatprep.subr.bf16.mxu0 0
    %760 = vmatpush1.bf16.xpose.msra.mxu0 0
    %761 = vmatprep.subr.bf16.mxu0 0
    %762 = vmatpush1.bf16.xpose.msra.mxu0 0
    %763 = vmatprep.subr.bf16.mxu0 0
    %764 = vmatpush1.bf16.xpose.msra.mxu0 0
    %765 = vmatprep.subr.bf16.mxu0 0
    %766 = vmatpush1.bf16.xpose.msra.mxu0 0
    %767 = vmatprep.subr.bf16.mxu0 0
    %768 = vmatpush1.bf16.xpose.msra.mxu0 0
    %769 = vmatprep.subr.bf16.mxu0 0
    %770 = vmatpush1.bf16.xpose.msra.mxu0 0
    %771 = vmatprep.subr.bf16.mxu0 0
    %772 = vmatpush1.bf16.xpose.msra.mxu0 0
    %773 = vmatprep.subr.bf16.mxu0 0
    %774 = vmatpush1.bf16.xpose.msra.mxu0 0
    %775 = vmatprep.subr.bf16.mxu0 0
    %776 = vmatpush1.bf16.xpose.msra.mxu0 0
    %777 = vmatprep.mubr.bf16.mxu0 0
    %778 = vmatmul.mubr.bf16.gmra.mrb[0].mxu0 %v740
    %v779 = vpop.f32.mrb[0].mxu0
    %v780 = vadd.f32 0.0, %v779
    %v781 = vpop.f32.mrb[0].mxu0
    %v782 = vpop.f32.mrb[0].mxu0
    %v783 = vadd.f32 0.0, %v782
    %v784 = vpop.f32.mrb[0].mxu0
    %785 = vdwg.mxu0
    %786 = vrot.lane.b32.xlu0 %v246, 112
    %v787 = vpop.permute.xlu0 %786
    %788 = vrot.lane.b32.xlu0 %v248, 80
    %v789 = vpop.permute.xlu0 %788
    %v791 = vsel %vm252, %v787, 0
    %v794 = vsel %vm252, %v789, 0
    %796 = vmatprep.subr.bf16.mxu0 0
    %797 = vmatpush1.bf16.xpose.msra.mxu0 %v794
    %798 = vmatprep.subr.bf16.mxu0 0
    %799 = vmatpush1.bf16.xpose.msra.mxu0 0
    %800 = vmatprep.subr.bf16.mxu0 0
    %801 = vmatpush1.bf16.xpose.msra.mxu0 0
    %802 = vmatprep.subr.bf16.mxu0 0
    %803 = vmatpush1.bf16.xpose.msra.mxu0 0
    %804 = vmatprep.subr.bf16.mxu0 0
    %805 = vmatpush1.bf16.xpose.msra.mxu0 0
    %806 = vmatprep.subr.bf16.mxu0 0
    %807 = vmatpush1.bf16.xpose.msra.mxu0 0
    %808 = vmatprep.subr.bf16.mxu0 0
    %809 = vmatpush1.bf16.xpose.msra.mxu0 0
    %810 = vmatprep.subr.bf16.mxu0 0
    %811 = vmatpush1.bf16.xpose.msra.mxu0 0
    %812 = vmatprep.subr.bf16.mxu0 0
    %813 = vmatpush1.bf16.xpose.msra.mxu0 0
    %814 = vmatprep.subr.bf16.mxu0 0
    %815 = vmatpush1.bf16.xpose.msra.mxu0 0
    %816 = vmatprep.subr.bf16.mxu0 0
    %817 = vmatpush1.bf16.xpose.msra.mxu0 0
    %818 = vmatprep.subr.bf16.mxu0 0
    %819 = vmatpush1.bf16.xpose.msra.mxu0 0
    %820 = vmatprep.subr.bf16.mxu0 0
    %821 = vmatpush1.bf16.xpose.msra.mxu0 0
    %822 = vmatprep.subr.bf16.mxu0 0
    %823 = vmatpush1.bf16.xpose.msra.mxu0 0
    %824 = vmatprep.subr.bf16.mxu0 0
    %825 = vmatpush1.bf16.xpose.msra.mxu0 0
    %826 = vmatprep.subr.bf16.mxu0 0
    %827 = vmatpush1.bf16.xpose.msra.mxu0 0
    %828 = vmatprep.mubr.bf16.mxu0 0
    %829 = vmatmul.mubr.bf16.gmra.mrb[0].mxu0 %v791
    %v830 = vpop.f32.mrb[0].mxu0
    %v831 = vadd.f32 0.0, %v830
    %v832 = vpop.f32.mrb[0].mxu0
    %v833 = vpop.f32.mrb[0].mxu0
    %v834 = vadd.f32 0.0, %v833
    %v835 = vpop.f32.mrb[0].mxu0
    %836 = vdwg.mxu0
    %v837 = vsel %vm350, %v780, -inf
    %838 = vmax.xlane.f32.xlu0 %v837
    %v839 = vpop.xlane.xlu0 %838
    %v840 = vsel %vm350, %v783, -inf
    %841 = vmax.xlane.f32.xlu0 %v840
    %v842 = vpop.xlane.xlu0 %841
    %v843 = vsel %vm350, %v831, -inf
    %844 = vmax.xlane.f32.xlu0 %v843
    %v845 = vpop.xlane.xlu0 %844
    %v846 = vsel %vm350, %v834, -inf
    %847 = vmax.xlane.f32.xlu0 %v846
    %v848 = vpop.xlane.xlu0 %847
    %v849 = vsub.f32 %v780, %v839
    %v850 = vsub.f32 %v783, %v842
    %v851 = vsub.f32 %v831, %v845
    %v852 = vsub.f32 %v834, %v848
    %v853 = vmul.f32 %v849, 1.442695
    %v854 = vpow.pop %v853
    %v855 = vmul.f32 %v850, 1.442695
    %v856 = vpow.pop %v855
    %v857 = vmul.f32 %v851, 1.442695
    %v858 = vpow.pop %v857
    %v859 = vmul.f32 %v852, 1.442695
    %v860 = vpow.pop %v859
    %v861 = vsel %vm350, %v854, 0.0
    %862 = vadd.xlane.f32.xlu0 %v861
    %v863 = vpop.xlane.xlu0 %862
    %v864 = vsel %vm350, %v856, 0.0
    %865 = vadd.xlane.f32.xlu0 %v864
    %v866 = vpop.xlane.xlu0 %865
    %v867 = vsel %vm350, %v858, 0.0
    %868 = vadd.xlane.f32.xlu0 %v867
    %v869 = vpop.xlane.xlu0 %868
    %v870 = vsel %vm350, %v860, 0.0
    %871 = vadd.xlane.f32.xlu0 %v870
    %v872 = vpop.xlane.xlu0 %871
    %v873 = vrcp.pop %v863
    %v874 = vrcp.pop %v866
    %v875 = vrcp.pop %v869
    %v876 = vrcp.pop %v872
    %v877 = vmul.f32 %v854, %v873
    %v878 = vmul.f32 %v856, %v874
    %v879 = vmul.f32 %v858, %v875
    %v880 = vmul.f32 %v860, %v876
    %v881 = vpack.c.bf16 %v878, %v877
    %v882 = vpack.c.bf16 %v880, %v879
    %883 = vrot.lane.b32.xlu0 %v247, 48
    %v884 = vpop.permute.xlu0 %883
    %v887 = vsel %vm350, %v881, 0
    %889 = vmatprep.subr.bf16.mxu0 0
    %890 = vmatpush1.bf16.msra.mxu0 %v884
    %891 = vmatprep.subr.bf16.mxu0 0
    %892 = vmatpush1.bf16.msra.mxu0 0
    %893 = vmatprep.subr.bf16.mxu0 0
    %894 = vmatpush1.bf16.msra.mxu0 0
    %895 = vmatprep.subr.bf16.mxu0 0
    %896 = vmatpush1.bf16.msra.mxu0 0
    %897 = vmatprep.subr.bf16.mxu0 0
    %898 = vmatpush1.bf16.msra.mxu0 0
    %899 = vmatprep.subr.bf16.mxu0 0
    %900 = vmatpush1.bf16.msra.mxu0 0
    %901 = vmatprep.subr.bf16.mxu0 0
    %902 = vmatpush1.bf16.msra.mxu0 0
    %903 = vmatprep.subr.bf16.mxu0 0
    %904 = vmatpush1.bf16.msra.mxu0 0
    %905 = vmatprep.subr.bf16.mxu0 0
    %906 = vmatpush1.bf16.msra.mxu0 0
    %907 = vmatprep.subr.bf16.mxu0 0
    %908 = vmatpush1.bf16.msra.mxu0 0
    %909 = vmatprep.subr.bf16.mxu0 0
    %910 = vmatpush1.bf16.msra.mxu0 0
    %911 = vmatprep.subr.bf16.mxu0 0
    %912 = vmatpush1.bf16.msra.mxu0 0
    %913 = vmatprep.subr.bf16.mxu0 0
    %914 = vmatpush1.bf16.msra.mxu0 0
    %915 = vmatprep.subr.bf16.mxu0 0
    %916 = vmatpush1.bf16.msra.mxu0 0
    %917 = vmatprep.subr.bf16.mxu0 0
    %918 = vmatpush1.bf16.msra.mxu0 0
    %919 = vmatprep.subr.bf16.mxu0 0
    %920 = vmatpush1.bf16.msra.mxu0 0
    %921 = vmatprep.mubr.bf16.mxu0 0
    %922 = vmatmul.mubr.bf16.gmra.mrb[0].mxu0 %v887
    %v923 = vpop.f32.mrb[0].mxu0
    %v924 = vadd.f32 0.0, %v923
    %v925 = vpop.f32.mrb[0].mxu0
    %v926 = vpop.f32.mrb[0].mxu0
    %v927 = vadd.f32 0.0, %v926
    %v928 = vpop.f32.mrb[0].mxu0
    %929 = vdwg.mxu0
    %930 = vrot.lane.b32.xlu0 %v248, 48
    %v931 = vpop.permute.xlu0 %930
    %v934 = vsel %vm350, %v882, 0
    %936 = vmatprep.subr.bf16.mxu0 0
    %937 = vmatpush1.bf16.msra.mxu0 %v931
    %938 = vmatprep.subr.bf16.mxu0 0
    %939 = vmatpush1.bf16.msra.mxu0 0
    %940 = vmatprep.subr.bf16.mxu0 0
    %941 = vmatpush1.bf16.msra.mxu0 0
    %942 = vmatprep.subr.bf16.mxu0 0
    %943 = vmatpush1.bf16.msra.mxu0 0
    %944 = vmatprep.subr.bf16.mxu0 0
    %945 = vmatpush1.bf16.msra.mxu0 0
    %946 = vmatprep.subr.bf16.mxu0 0
    %947 = vmatpush1.bf16.msra.mxu0 0
    %948 = vmatprep.subr.bf16.mxu0 0
    %949 = vmatpush1.bf16.msra.mxu0 0
    %950 = vmatprep.subr.bf16.mxu0 0
    %951 = vmatpush1.bf16.msra.mxu0 0
    %952 = vmatprep.subr.bf16.mxu0 0
    %953 = vmatpush1.bf16.msra.mxu0 0
    %954 = vmatprep.subr.bf16.mxu0 0
    %955 = vmatpush1.bf16.msra.mxu0 0
    %956 = vmatprep.subr.bf16.mxu0 0
    %957 = vmatpush1.bf16.msra.mxu0 0
    %958 = vmatprep.subr.bf16.mxu0 0
    %959 = vmatpush1.bf16.msra.mxu0 0
    %960 = vmatprep.subr.bf16.mxu0 0
    %961 = vmatpush1.bf16.msra.mxu0 0
    %962 = vmatprep.subr.bf16.mxu0 0
    %963 = vmatpush1.bf16.msra.mxu0 0
    %964 = vmatprep.subr.bf16.mxu0 0
    %965 = vmatpush1.bf16.msra.mxu0 0
    %966 = vmatprep.subr.bf16.mxu0 0
    %967 = vmatpush1.bf16.msra.mxu0 0
    %968 = vmatprep.mubr.bf16.mxu0 0
    %969 = vmatmul.mubr.bf16.gmra.mrb[0].mxu0 %v934
    %v970 = vpop.f32.mrb[0].mxu0
    %v971 = vadd.f32 0.0, %v970
    %v972 = vpop.f32.mrb[0].mxu0
    %v973 = vpop.f32.mrb[0].mxu0
    %v974 = vadd.f32 0.0, %v973
    %v975 = vpop.f32.mrb[0].mxu0
    %976 = vdwg.mxu0
    %977 = vrot.lane.b32.xlu0 %v245, 104
    %v978 = vpop.permute.xlu0 %977
    %979 = vrot.lane.b32.xlu0 %v247, 72
    %v980 = vpop.permute.xlu0 %979
    %v982 = vsel %vm252, %v978, 0
    %v985 = vsel %vm252, %v980, 0
    %987 = vmatprep.subr.bf16.mxu0 0
    %988 = vmatpush1.bf16.xpose.msra.mxu0 %v985
    %989 = vmatprep.subr.bf16.mxu0 0
    %990 = vmatpush1.bf16.xpose.msra.mxu0 0
    %991 = vmatprep.subr.bf16.mxu0 0
    %992 = vmatpush1.bf16.xpose.msra.mxu0 0
    %993 = vmatprep.subr.bf16.mxu0 0
    %994 = vmatpush1.bf16.xpose.msra.mxu0 0
    %995 = vmatprep.subr.bf16.mxu0 0
    %996 = vmatpush1.bf16.xpose.msra.mxu0 0
    %997 = vmatprep.subr.bf16.mxu0 0
    %998 = vmatpush1.bf16.xpose.msra.mxu0 0
    %999 = vmatprep.subr.bf16.mxu0 0
    %1000 = vmatpush1.bf16.xpose.msra.mxu0 0
    %1001 = vmatprep.subr.bf16.mxu0 0
    %1002 = vmatpush1.bf16.xpose.msra.mxu0 0
    %1003 = vmatprep.subr.bf16.mxu0 0
    %1004 = vmatpush1.bf16.xpose.msra.mxu0 0
    %1005 = vmatprep.subr.bf16.mxu0 0
    %1006 = vmatpush1.bf16.xpose.msra.mxu0 0
    %1007 = vmatprep.subr.bf16.mxu0 0
    %1008 = vmatpush1.bf16.xpose.msra.mxu0 0
    %1009 = vmatprep.subr.bf16.mxu0 0
    %1010 = vmatpush1.bf16.xpose.msra.mxu0 0
    %1011 = vmatprep.subr.bf16.mxu0 0
    %1012 = vmatpush1.bf16.xpose.msra.mxu0 0
    %1013 = vmatprep.subr.bf16.mxu0 0
    %1014 = vmatpush1.bf16.xpose.msra.mxu0 0
    %1015 = vmatprep.subr.bf16.mxu0 0
    %1016 = vmatpush1.bf16.xpose.msra.mxu0 0
    %1017 = vmatprep.subr.bf16.mxu0 0
    %1018 = vmatpush1.bf16.xpose.msra.mxu0 0
    %1019 = vmatprep.mubr.bf16.mxu0 0
    %1020 = vmatmul.mubr.bf16.gmra.mrb[0].mxu0 %v982
    %v1021 = vpop.f32.mrb[0].mxu0
    %v1022 = vadd.f32 0.0, %v1021
    %v1023 = vpop.f32.mrb[0].mxu0
    %v1024 = vpop.f32.mrb[0].mxu0
    %v1025 = vadd.f32 0.0, %v1024
    %v1026 = vpop.f32.mrb[0].mxu0
    %1027 = vdwg.mxu0
    %1028 = vrot.lane.b32.xlu0 %v246, 104
    %v1029 = vpop.permute.xlu0 %1028
    %1030 = vrot.lane.b32.xlu0 %v248, 72
    %v1031 = vpop.permute.xlu0 %1030
    %v1033 = vsel %vm252, %v1029, 0
    %v1036 = vsel %vm252, %v1031, 0
    %1038 = vmatprep.subr.bf16.mxu0 0
    %1039 = vmatpush1.bf16.xpose.msra.mxu0 %v1036
    %1040 = vmatprep.subr.bf16.mxu0 0
    %1041 = vmatpush1.bf16.xpose.msra.mxu0 0
    %1042 = vmatprep.subr.bf16.mxu0 0
    %1043 = vmatpush1.bf16.xpose.msra.mxu0 0
    %1044 = vmatprep.subr.bf16.mxu0 0
    %1045 = vmatpush1.bf16.xpose.msra.mxu0 0
    %1046 = vmatprep.subr.bf16.mxu0 0
    %1047 = vmatpush1.bf16.xpose.msra.mxu0 0
    %1048 = vmatprep.subr.bf16.mxu0 0
    %1049 = vmatpush1.bf16.xpose.msra.mxu0 0
    %1050 = vmatprep.subr.bf16.mxu0 0
    %1051 = vmatpush1.bf16.xpose.msra.mxu0 0
    %1052 = vmatprep.subr.bf16.mxu0 0
    %1053 = vmatpush1.bf16.xpose.msra.mxu0 0
    %1054 = vmatprep.subr.bf16.mxu0 0
    %1055 = vmatpush1.bf16.xpose.msra.mxu0 0
    %1056 = vmatprep.subr.bf16.mxu0 0
    %1057 = vmatpush1.bf16.xpose.msra.mxu0 0
    %1058 = vmatprep.subr.bf16.mxu0 0
    %1059 = vmatpush1.bf16.xpose.msra.mxu0 0
    %1060 = vmatprep.subr.bf16.mxu0 0
    %1061 = vmatpush1.bf16.xpose.msra.mxu0 0
    %1062 = vmatprep.subr.bf16.mxu0 0
    %1063 = vmatpush1.bf16.xpose.msra.mxu0 0
    %1064 = vmatprep.subr.bf16.mxu0 0
    %1065 = vmatpush1.bf16.xpose.msra.mxu0 0
    %1066 = vmatprep.subr.bf16.mxu0 0
    %1067 = vmatpush1.bf16.xpose.msra.mxu0 0
    %1068 = vmatprep.subr.bf16.mxu0 0
    %1069 = vmatpush1.bf16.xpose.msra.mxu0 0
    %1070 = vmatprep.mubr.bf16.mxu0 0
    %1071 = vmatmul.mubr.bf16.gmra.mrb[0].mxu0 %v1033
    %v1072 = vpop.f32.mrb[0].mxu0
    %v1073 = vadd.f32 0.0, %v1072
    %v1074 = vpop.f32.mrb[0].mxu0
    %v1075 = vpop.f32.mrb[0].mxu0
    %v1076 = vadd.f32 0.0, %v1075
    %v1077 = vpop.f32.mrb[0].mxu0
    %1078 = vdwg.mxu0
    %v1079 = vsel %vm350, %v1022, -inf
    %1080 = vmax.xlane.f32.xlu0 %v1079
    %v1081 = vpop.xlane.xlu0 %1080
    %v1082 = vsel %vm350, %v1025, -inf
    %1083 = vmax.xlane.f32.xlu0 %v1082
    %v1084 = vpop.xlane.xlu0 %1083
    %v1085 = vsel %vm350, %v1073, -inf
    %1086 = vmax.xlane.f32.xlu0 %v1085
    %v1087 = vpop.xlane.xlu0 %1086
    %v1088 = vsel %vm350, %v1076, -inf
    %1089 = vmax.xlane.f32.xlu0 %v1088
    %v1090 = vpop.xlane.xlu0 %1089
    %v1091 = vsub.f32 %v1022, %v1081
    %v1092 = vsub.f32 %v1025, %v1084
    %v1093 = vsub.f32 %v1073, %v1087
    %v1094 = vsub.f32 %v1076, %v1090
    %v1095 = vmul.f32 %v1091, 1.442695
    %v1096 = vpow.pop %v1095
    %v1097 = vmul.f32 %v1092, 1.442695
    %v1098 = vpow.pop %v1097
    %v1099 = vmul.f32 %v1093, 1.442695
    %v1100 = vpow.pop %v1099
    %v1101 = vmul.f32 %v1094, 1.442695
    %v1102 = vpow.pop %v1101
    %v1103 = vsel %vm350, %v1096, 0.0
    %1104 = vadd.xlane.f32.xlu0 %v1103
    %v1105 = vpop.xlane.xlu0 %1104
    %v1106 = vsel %vm350, %v1098, 0.0
    %1107 = vadd.xlane.f32.xlu0 %v1106
    %v1108 = vpop.xlane.xlu0 %1107
    %v1109 = vsel %vm350, %v1100, 0.0
    %1110 = vadd.xlane.f32.xlu0 %v1109
    %v1111 = vpop.xlane.xlu0 %1110
    %v1112 = vsel %vm350, %v1102, 0.0
    %1113 = vadd.xlane.f32.xlu0 %v1112
    %v1114 = vpop.xlane.xlu0 %1113
    %v1115 = vrcp.pop %v1105
    %v1116 = vrcp.pop %v1108
    %v1117 = vrcp.pop %v1111
    %v1118 = vrcp.pop %v1114
    %v1119 = vmul.f32 %v1096, %v1115
    %v1120 = vmul.f32 %v1098, %v1116
    %v1121 = vmul.f32 %v1100, %v1117
    %v1122 = vmul.f32 %v1102, %v1118
    %v1123 = vpack.c.bf16 %v1120, %v1119
    %v1124 = vpack.c.bf16 %v1122, %v1121
    %1125 = vrot.lane.b32.xlu0 %v247, 40
    %v1126 = vpop.permute.xlu0 %1125
    %v1129 = vsel %vm350, %v1123, 0
    %1131 = vmatprep.subr.bf16.mxu0 0
    %1132 = vmatpush1.bf16.msra.mxu0 %v1126
    %1133 = vmatprep.subr.bf16.mxu0 0
    %1134 = vmatpush1.bf16.msra.mxu0 0
    %1135 = vmatprep.subr.bf16.mxu0 0
    %1136 = vmatpush1.bf16.msra.mxu0 0
    %1137 = vmatprep.subr.bf16.mxu0 0
    %1138 = vmatpush1.bf16.msra.mxu0 0
    %1139 = vmatprep.subr.bf16.mxu0 0
    %1140 = vmatpush1.bf16.msra.mxu0 0
    %1141 = vmatprep.subr.bf16.mxu0 0
    %1142 = vmatpush1.bf16.msra.mxu0 0
    %1143 = vmatprep.subr.bf16.mxu0 0
    %1144 = vmatpush1.bf16.msra.mxu0 0
    %1145 = vmatprep.subr.bf16.mxu0 0
    %1146 = vmatpush1.bf16.msra.mxu0 0
    %1147 = vmatprep.subr.bf16.mxu0 0
    %1148 = vmatpush1.bf16.msra.mxu0 0
    %1149 = vmatprep.subr.bf16.mxu0 0
    %1150 = vmatpush1.bf16.msra.mxu0 0
    %1151 = vmatprep.subr.bf16.mxu0 0
    %1152 = vmatpush1.bf16.msra.mxu0 0
    %1153 = vmatprep.subr.bf16.mxu0 0
    %1154 = vmatpush1.bf16.msra.mxu0 0
    %1155 = vmatprep.subr.bf16.mxu0 0
    %1156 = vmatpush1.bf16.msra.mxu0 0
    %1157 = vmatprep.subr.bf16.mxu0 0
    %1158 = vmatpush1.bf16.msra.mxu0 0
    %1159 = vmatprep.subr.bf16.mxu0 0
    %1160 = vmatpush1.bf16.msra.mxu0 0
    %1161 = vmatprep.subr.bf16.mxu0 0
    %1162 = vmatpush1.bf16.msra.mxu0 0
    %1163 = vmatprep.mubr.bf16.mxu0 0
    %1164 = vmatmul.mubr.bf16.gmra.mrb[0].mxu0 %v1129
    %v1165 = vpop.f32.mrb[0].mxu0
    %v1166 = vadd.f32 0.0, %v1165
    %v1167 = vpop.f32.mrb[0].mxu0
    %v1168 = vpop.f32.mrb[0].mxu0
    %v1169 = vadd.f32 0.0, %v1168
    %v1170 = vpop.f32.mrb[0].mxu0
    %1171 = vdwg.mxu0
    %1172 = vrot.lane.b32.xlu0 %v248, 40
    %v1173 = vpop.permute.xlu0 %1172
    %v1176 = vsel %vm350, %v1124, 0
    %1178 = vmatprep.subr.bf16.mxu0 0
    %1179 = vmatpush1.bf16.msra.mxu0 %v1173
    %1180 = vmatprep.subr.bf16.mxu0 0
    %1181 = vmatpush1.bf16.msra.mxu0 0
    %1182 = vmatprep.subr.bf16.mxu0 0
    %1183 = vmatpush1.bf16.msra.mxu0 0
    %1184 = vmatprep.subr.bf16.mxu0 0
    %1185 = vmatpush1.bf16.msra.mxu0 0
    %1186 = vmatprep.subr.bf16.mxu0 0
    %1187 = vmatpush1.bf16.msra.mxu0 0
    %1188 = vmatprep.subr.bf16.mxu0 0
    %1189 = vmatpush1.bf16.msra.mxu0 0
    %1190 = vmatprep.subr.bf16.mxu0 0
    %1191 = vmatpush1.bf16.msra.mxu0 0
    %1192 = vmatprep.subr.bf16.mxu0 0
    %1193 = vmatpush1.bf16.msra.mxu0 0
    %1194 = vmatprep.subr.bf16.mxu0 0
    %1195 = vmatpush1.bf16.msra.mxu0 0
    %1196 = vmatprep.subr.bf16.mxu0 0
    %1197 = vmatpush1.bf16.msra.mxu0 0
    %1198 = vmatprep.subr.bf16.mxu0 0
    %1199 = vmatpush1.bf16.msra.mxu0 0
    %1200 = vmatprep.subr.bf16.mxu0 0
    %1201 = vmatpush1.bf16.msra.mxu0 0
    %1202 = vmatprep.subr.bf16.mxu0 0
    %1203 = vmatpush1.bf16.msra.mxu0 0
    %1204 = vmatprep.subr.bf16.mxu0 0
    %1205 = vmatpush1.bf16.msra.mxu0 0
    %1206 = vmatprep.subr.bf16.mxu0 0
    %1207 = vmatpush1.bf16.msra.mxu0 0
    %1208 = vmatprep.subr.bf16.mxu0 0
    %1209 = vmatpush1.bf16.msra.mxu0 0
    %1210 = vmatprep.mubr.bf16.mxu0 0
    %1211 = vmatmul.mubr.bf16.gmra.mrb[0].mxu0 %v1176
    %v1212 = vpop.f32.mrb[0].mxu0
    %v1213 = vadd.f32 0.0, %v1212
    %v1214 = vpop.f32.mrb[0].mxu0
    %v1215 = vpop.f32.mrb[0].mxu0
    %v1216 = vadd.f32 0.0, %v1215
    %v1217 = vpop.f32.mrb[0].mxu0
    %1218 = vdwg.mxu0
    %1223 = vrot.lane.b32.xlu0 %v682, 8
    %v1224 = vpop.permute.xlu0 %1223
    %1225 = vrot.lane.b32.xlu0 %v685, 8
    %v1226 = vpop.permute.xlu0 %1225
    %1227 = vrot.lane.b32.xlu0 %v729, 8
    %v1228 = vpop.permute.xlu0 %1227
    %1229 = vrot.lane.b32.xlu0 %v732, 8
    %v1230 = vpop.permute.xlu0 %1229
    %1239 = vrot.lane.b32.xlu0 %v924, 16
    %v1240 = vpop.permute.xlu0 %1239
    %1241 = vrot.lane.b32.xlu0 %v927, 16
    %v1242 = vpop.permute.xlu0 %1241
    %1243 = vrot.lane.b32.xlu0 %v971, 16
    %v1244 = vpop.permute.xlu0 %1243
    %1245 = vrot.lane.b32.xlu0 %v974, 16
    %v1246 = vpop.permute.xlu0 %1245
    %1255 = vrot.lane.b32.xlu0 %v1166, 24
    %v1256 = vpop.permute.xlu0 %1255
    %1257 = vrot.lane.b32.xlu0 %v1169, 24
    %v1258 = vpop.permute.xlu0 %1257
    %1259 = vrot.lane.b32.xlu0 %v1213, 24
    %v1260 = vpop.permute.xlu0 %1259
    %1261 = vrot.lane.b32.xlu0 %v1216, 24
    %v1262 = vpop.permute.xlu0 %1261
    %v1267 = vsel %vm252, %v438, %v1224
    %v1268 = vsel %vm252, %v441, %v1226
    %v1269 = vsel %vm252, %v485, %v1228
    %v1270 = vsel %vm252, %v488, %v1230
    %v1271 = vsel %vm350, %v1267, %v1240
    %v1272 = vsel %vm350, %v1268, %v1242
    %v1273 = vsel %vm350, %v1269, %v1244
    %v1274 = vsel %vm350, %v1270, %v1246
    %vm1275 = vcmask 195584
    %v1276 = vsel %vm1275, %v1271, %v1256
    %v1277 = vsel %vm1275, %v1272, %v1258
    %v1278 = vsel %vm1275, %v1273, %v1260
    %v1279 = vsel %vm1275, %v1274, %v1262
    %v1280 = vld [vmem:[%s3] sm:$0xf]
    %v1281 = vld [vmem:[%s3 + $0x4] sm:$0xf]
    %v1282 = vld [vmem:[%s3 + $0x8] sm:$0xf]
    %v1283 = vld [vmem:[%s3 + $0xc] sm:$0xf]
    %v1284 = vpack.c.bf16 %v1277, %v1276
    %v1285 = vpack.c.bf16 %v1279, %v1278
    %v1290 = vunpack.c.l.b16 %v1280
    %v1291 = vunpack.c.l.b16 %v1281
    %v1292 = vunpack.c.l.b16 %v1282
    %v1293 = vunpack.c.l.b16 %v1283
    %v1294 = vpack.c.b16 %v1291, %v1290
    %v1295 = vpack.c.b16 %v1293, %v1292
    %v1299 = vsel %vm185, %v1284, 0
    %v1302 = vsel %vm185, %v1285, 0
    %1304 = vmatprep.subr.bf16.mxu0 0
    %1305 = vmatpush1.bf16.msra.mxu0 %v1294
    %1306 = vmatprep.subr.bf16.mxu0 0
    %1307 = vmatpush1.bf16.msra.mxu0 %v1295
    %1308 = vmatprep.subr.bf16.mxu0 0
    %1309 = vmatpush1.bf16.msra.mxu0 0
    %1310 = vmatprep.subr.bf16.mxu0 0
    %1311 = vmatpush1.bf16.msra.mxu0 0
    %1312 = vmatprep.subr.bf16.mxu0 0
    %1313 = vmatpush1.bf16.msra.mxu0 0
    %1314 = vmatprep.subr.bf16.mxu0 0
    %1315 = vmatpush1.bf16.msra.mxu0 0
    %1316 = vmatprep.subr.bf16.mxu0 0
    %1317 = vmatpush1.bf16.msra.mxu0 0
    %1318 = vmatprep.subr.bf16.mxu0 0
    %1319 = vmatpush1.bf16.msra.mxu0 0
    %1320 = vmatprep.subr.bf16.mxu0 0
    %1321 = vmatpush1.bf16.msra.mxu0 0
    %1322 = vmatprep.subr.bf16.mxu0 0
    %1323 = vmatpush1.bf16.msra.mxu0 0
    %1324 = vmatprep.subr.bf16.mxu0 0
    %1325 = vmatpush1.bf16.msra.mxu0 0
    %1326 = vmatprep.subr.bf16.mxu0 0
    %1327 = vmatpush1.bf16.msra.mxu0 0
    %1328 = vmatprep.subr.bf16.mxu0 0
    %1329 = vmatpush1.bf16.msra.mxu0 0
    %1330 = vmatprep.subr.bf16.mxu0 0
    %1331 = vmatpush1.bf16.msra.mxu0 0
    %1332 = vmatprep.subr.bf16.mxu0 0
    %1333 = vmatpush1.bf16.msra.mxu0 0
    %1334 = vmatprep.subr.bf16.mxu0 0
    %1335 = vmatpush1.bf16.msra.mxu0 0
    %1336 = vmatprep.mubr.bf16.mxu0 0
    %1337 = vmatmul.mubr.bf16.gmra.mrb[0].mxu0 %v1299
    %v1338 = vpop.f32.mrb[0].mxu0
    %v1339 = vadd.f32 0.0, %v1338
    %v1340 = vpop.f32.mrb[0].mxu0
    %v1341 = vpop.f32.mrb[0].mxu0
    %v1342 = vadd.f32 0.0, %v1341
    %v1343 = vpop.f32.mrb[0].mxu0
    %1344 = vmatprep.mubr.bf16.mxu0 0
    %1345 = vmatmul.mubr.bf16.gmra.mrb[0].mxu0 %v1302
    %v1346 = vpop.f32.mrb[0].mxu0
    %v1347 = vadd.f32 0.0, %v1346
    %v1348 = vpop.f32.mrb[0].mxu0
    %v1349 = vpop.f32.mrb[0].mxu0
    %v1350 = vadd.f32 0.0, %v1349
    %v1351 = vpop.f32.mrb[0].mxu0
    %1352 = vdwg.mxu0
    %v1353 = vadd.f32 %v156, %v1339
    %v1354 = vadd.f32 %v157, %v1342
    %v1355 = vadd.f32 %v158, %v1347
    %v1356 = vadd.f32 %v159, %v1350
    %v1357 = vld [vmem:[#allocation2] sm:$0x1]
    %v1359 = vlaneseq
    %v1360 = vshrl.u32 %v1359, 7
    %v1361 = vsub.s32 0, %v1360
    %v1362 = vrot.slane %v1357, %v1361
    %v1364 = vadd.f32 %v1353, %v1362
    %v1365 = vadd.f32 %v1354, %v1362
    %v1366 = vadd.f32 %v1355, %v1362
    %v1367 = vadd.f32 %v1356, %v1362
    %v1368 = vsel %vm185, %v1364, 0.0
    %v1369 = vsel %vm185, %v1365, 0.0
    %v1370 = vadd.f32 %v1368, %v1369
    %v1371 = vsel %vm185, %v1366, 0.0
    %v1372 = vadd.f32 %v1370, %v1371
    %v1373 = vsel %vm185, %v1367, 0.0
    %v1374 = vadd.f32 %v1372, %v1373
    %v1375 = vrot.slane %v1374, 4
    %v1376 = vadd.f32 %v1374, %v1375
    %v1377 = vrot.slane %v1376, 2
    %v1378 = vadd.f32 %v1376, %v1377
    %v1379 = vrot.slane %v1378, 1
    %v1380 = vadd.f32 %v1378, %v1379
    %v1381 = vrcp.pop 32.0
    %v1382 = vmul.f32 %v1380, %v1381
    %v1383 = vsub.f32 %v1364, %v1382
    %v1384 = vsub.f32 %v1365, %v1382
    %v1385 = vsub.f32 %v1366, %v1382
    %v1386 = vsub.f32 %v1367, %v1382
    %v1387 = vmul.f32 %v1383, %v1383
    %v1388 = vmul.f32 %v1384, %v1384
    %v1389 = vmul.f32 %v1385, %v1385
    %v1390 = vmul.f32 %v1386, %v1386
    %v1391 = vsel %vm185, %v1387, 0.0
    %v1392 = vsel %vm185, %v1388, 0.0
    %v1393 = vadd.f32 %v1391, %v1392
    %v1394 = vsel %vm185, %v1389, 0.0
    %v1395 = vadd.f32 %v1393, %v1394
    %v1396 = vsel %vm185, %v1390, 0.0
    %v1397 = vadd.f32 %v1395, %v1396
    %v1398 = vrot.slane %v1397, 4
    %v1399 = vadd.f32 %v1397, %v1398
    %v1400 = vrot.slane %v1399, 2
    %v1401 = vadd.f32 %v1399, %v1400
    %v1402 = vrot.slane %v1401, 1
    %v1403 = vadd.f32 %v1401, %v1402
    %v1404 = vmul.f32 %v1403, %v1381
    %v1405 = vadd.f32 %v1404, 1e-05
    %v1406 = vrsqrt.pop %v1405
    %v1407 = vld [vmem:[#allocation4] sm:$0x1]
    %v1408 = vmul.f32 %v1406, %v1407
    %v1409 = vlaneseq
    %v1410 = vshrl.u32 %v1409, 7
    %v1411 = vsub.s32 0, %v1410
    %v1412 = vrot.slane %v1408, %v1411
    %v1413 = vmul.f32 %v1383, %v1412
    %v1414 = vmul.f32 %v1384, %v1412
    %v1415 = vmul.f32 %v1385, %v1412
    %v1416 = vmul.f32 %v1386, %v1412
    %v1417 = vld [vmem:[#allocation6] sm:$0x1]
    %v1419 = vlaneseq
    %v1420 = vshrl.u32 %v1419, 7
    %v1421 = vsub.s32 0, %v1420
    %v1422 = vrot.slane %v1417, %v1421
    %v1424 = vadd.f32 %v1413, %v1422
    %v1425 = vadd.f32 %v1414, %v1422
    %v1426 = vadd.f32 %v1415, %v1422
    %v1427 = vadd.f32 %v1416, %v1422
    %v1428 = vld [vmem:[%s7] sm:$0xf]
    %v1429 = vld [vmem:[%s7 + $0x4] sm:$0xf]
    %v1430 = vld [vmem:[%s7 + $0x8] sm:$0xf]
    %v1431 = vld [vmem:[%s7 + $0xc] sm:$0xf]
    %v1432 = vpack.c.bf16 %v1425, %v1424
    %v1433 = vpack.c.bf16 %v1427, %v1426
    %v1434 = vld [vmem:[%s8] sm:$0x1]
    %v1436 = vlaneseq
    %v1437 = vshrl.u32 %v1436, 7
    %v1438 = vsub.s32 0, %v1437
    %v1439 = vrot.slane %v1434, %v1438
    %v1445 = vunpack.c.l.b16 %v1428
    %v1446 = vunpack.c.l.b16 %v1429
    %v1447 = vunpack.c.l.b16 %v1430
    %v1448 = vunpack.c.l.b16 %v1431
    %v1449 = vpack.c.b16 %v1446, %v1445
    %v1450 = vpack.c.b16 %v1448, %v1447
    %v1454 = vsel %vm185, %v1432, 0
    %v1457 = vsel %vm185, %v1433, 0
    %1459 = vmatprep.subr.bf16.mxu0 0
    %1460 = vmatpush1.bf16.msra.mxu0 %v1449
    %1461 = vmatprep.subr.bf16.mxu0 0
    %1462 = vmatpush1.bf16.msra.mxu0 %v1450
    %1463 = vmatprep.subr.bf16.mxu0 0
    %1464 = vmatpush1.bf16.msra.mxu0 0
    %1465 = vmatprep.subr.bf16.mxu0 0
    %1466 = vmatpush1.bf16.msra.mxu0 0
    %1467 = vmatprep.subr.bf16.mxu0 0
    %1468 = vmatpush1.bf16.msra.mxu0 0
    %1469 = vmatprep.subr.bf16.mxu0 0
    %1470 = vmatpush1.bf16.msra.mxu0 0
    %1471 = vmatprep.subr.bf16.mxu0 0
    %1472 = vmatpush1.bf16.msra.mxu0 0
    %1473 = vmatprep.subr.bf16.mxu0 0
    %1474 = vmatpush1.bf16.msra.mxu0 0
    %1475 = vmatprep.subr.bf16.mxu0 0
    %1476 = vmatpush1.bf16.msra.mxu0 0
    %1477 = vmatprep.subr.bf16.mxu0 0
    %1478 = vmatpush1.bf16.msra.mxu0 0
    %1479 = vmatprep.subr.bf16.mxu0 0
    %1480 = vmatpush1.bf16.msra.mxu0 0
    %1481 = vmatprep.subr.bf16.mxu0 0
    %1482 = vmatpush1.bf16.msra.mxu0 0
    %1483 = vmatprep.subr.bf16.mxu0 0
    %1484 = vmatpush1.bf16.msra.mxu0 0
    %1485 = vmatprep.subr.bf16.mxu0 0
    %1486 = vmatpush1.bf16.msra.mxu0 0
    %1487 = vmatprep.subr.bf16.mxu0 0
    %1488 = vmatpush1.bf16.msra.mxu0 0
    %1489 = vmatprep.subr.bf16.mxu0 0
    %1490 = vmatpush1.bf16.msra.mxu0 0
    %1491 = vmatprep.mubr.bf16.mxu0 0
    %1492 = vmatmul.mubr.bf16.gmra.mrb[0].mxu0 %v1454
    %v1493 = vpop.f32.mrb[0].mxu0
    %v1494 = vadd.f32 %v1439, %v1493
    %v1495 = vpop.f32.mrb[0].mxu0
    %v1496 = vpop.f32.mrb[0].mxu0
    %v1497 = vadd.f32 %v1439, %v1496
    %v1498 = vpop.f32.mrb[0].mxu0
    %1499 = vmatprep.mubr.bf16.mxu0 0
    %1500 = vmatmul.mubr.bf16.gmra.mrb[0].mxu0 %v1457
    %v1501 = vpop.f32.mrb[0].mxu0
    %v1502 = vadd.f32 %v1439, %v1501
    %v1503 = vpop.f32.mrb[0].mxu0
    %v1504 = vpop.f32.mrb[0].mxu0
    %v1505 = vadd.f32 %v1439, %v1504
    %v1506 = vpop.f32.mrb[0].mxu0
    %1507 = vdwg.mxu0
    %v1508 = vmul.f32 %v1494, %v1494
    %v1509 = vmul.f32 %v1497, %v1497
    %v1510 = vmul.f32 %v1502, %v1502
    %v1511 = vmul.f32 %v1505, %v1505
    %v1512 = vmul.f32 %v1494, %v1508
    %v1513 = vmul.f32 %v1497, %v1509
    %v1514 = vmul.f32 %v1502, %v1510
    %v1515 = vmul.f32 %v1505, %v1511
    %v1516 = vmul.f32 %v1512, 0.044715
    %v1517 = vmul.f32 %v1513, 0.044715
    %v1518 = vmul.f32 %v1514, 0.044715
    %v1519 = vmul.f32 %v1515, 0.044715
    %v1520 = vadd.f32 %v1494, %v1516
    %v1521 = vadd.f32 %v1497, %v1517
    %v1522 = vadd.f32 %v1502, %v1518
    %v1523 = vadd.f32 %v1505, %v1519
    %v1524 = vmul.f32 %v1520, 0.7978846
    %v1525 = vmul.f32 %v1521, 0.7978846
    %v1526 = vmul.f32 %v1522, 0.7978846
    %v1527 = vmul.f32 %v1523, 0.7978846
    %v1528 = vtanh.pop %v1524
    %v1529 = vtanh.pop %v1525
    %v1530 = vtanh.pop %v1526
    %v1531 = vtanh.pop %v1527
    %v1532 = vadd.f32 %v1528, 1.0
    %v1533 = vadd.f32 %v1529, 1.0
    %v1534 = vadd.f32 %v1530, 1.0
    %v1535 = vadd.f32 %v1531, 1.0
    %v1536 = vmul.f32 %v1532, 0.5
    %v1537 = vmul.f32 %v1533, 0.5
    %v1538 = vmul.f32 %v1534, 0.5
    %v1539 = vmul.f32 %v1535, 0.5
    %v1540 = vmul.f32 %v1494, %v1536
    %v1541 = vmul.f32 %v1497, %v1537
    %v1542 = vmul.f32 %v1502, %v1538
    %v1543 = vmul.f32 %v1505, %v1539
    %v1544 = vld [vmem:[%s9] sm:$0xf]
    %v1545 = vld [vmem:[%s9 + $0x4] sm:$0xf]
    %v1546 = vld [vmem:[%s9 + $0x8] sm:$0xf]
    %v1547 = vld [vmem:[%s9 + $0xc] sm:$0xf]
    %v1548 = vld [vmem:[%s9 + $0x10] sm:$0xf]
    %v1549 = vld [vmem:[%s9 + $0x14] sm:$0xf]
    %v1550 = vld [vmem:[%s9 + $0x18] sm:$0xf]
    %v1551 = vld [vmem:[%s9 + $0x1c] sm:$0xf]
    %v1552 = vpack.c.bf16 %v1541, %v1540
    %v1553 = vpack.c.bf16 %v1543, %v1542
    %v1562 = vunpack.c.l.b16 %v1544
    %v1563 = vunpack.c.l.b16 %v1545
    %v1564 = vunpack.c.l.b16 %v1546
    %v1565 = vunpack.c.l.b16 %v1547
    %v1566 = vunpack.c.l.b16 %v1548
    %v1567 = vunpack.c.l.b16 %v1549
    %v1568 = vunpack.c.l.b16 %v1550
    %v1569 = vunpack.c.l.b16 %v1551
    %v1570 = vpack.c.b16 %v1563, %v1562
    %v1571 = vpack.c.b16 %v1565, %v1564
    %v1572 = vpack.c.b16 %v1567, %v1566
    %v1573 = vpack.c.b16 %v1569, %v1568
    %vm1578 = vcmask 523264
    %v1580 = vsel %vm1578, %v1552, 0
    %v1583 = vsel %vm1578, %v1553, 0
    %1585 = vmatprep.subr.bf16.mxu0 0
    %1586 = vmatpush1.bf16.msra.mxu0 %v1570
    %1587 = vmatprep.subr.bf16.mxu0 0
    %1588 = vmatpush1.bf16.msra.mxu0 %v1571
    %1589 = vmatprep.subr.bf16.mxu0 0
    %1590 = vmatpush1.bf16.msra.mxu0 %v1572
    %1591 = vmatprep.subr.bf16.mxu0 0
    %1592 = vmatpush1.bf16.msra.mxu0 %v1573
    %1593 = vmatprep.subr.bf16.mxu0 0
    %1594 = vmatpush1.bf16.msra.mxu0 0
    %1595 = vmatprep.subr.bf16.mxu0 0
    %1596 = vmatpush1.bf16.msra.mxu0 0
    %1597 = vmatprep.subr.bf16.mxu0 0
    %1598 = vmatpush1.bf16.msra.mxu0 0
    %1599 = vmatprep.subr.bf16.mxu0 0
    %1600 = vmatpush1.bf16.msra.mxu0 0
    %1601 = vmatprep.subr.bf16.mxu0 0
    %1602 = vmatpush1.bf16.msra.mxu0 0
    %1603 = vmatprep.subr.bf16.mxu0 0
    %1604 = vmatpush1.bf16.msra.mxu0 0
    %1605 = vmatprep.subr.bf16.mxu0 0
    %1606 = vmatpush1.bf16.msra.mxu0 0
    %1607 = vmatprep.subr.bf16.mxu0 0
    %1608 = vmatpush1.bf16.msra.mxu0 0
    %1609 = vmatprep.subr.bf16.mxu0 0
    %1610 = vmatpush1.bf16.msra.mxu0 0
    %1611 = vmatprep.subr.bf16.mxu0 0
    %1612 = vmatpush1.bf16.msra.mxu0 0
    %1613 = vmatprep.subr.bf16.mxu0 0
    %1614 = vmatpush1.bf16.msra.mxu0 0
    %1615 = vmatprep.subr.bf16.mxu0 0
    %1616 = vmatpush1.bf16.msra.mxu0 0
    %1617 = vmatprep.mubr.bf16.mxu0 0
    %1618 = vmatmul.mubr.bf16.gmra.mrb[0].mxu0 %v1580
    %v1619 = vpop.f32.mrb[0].mxu0
    %v1620 = vadd.f32 0.0, %v1619
    %v1621 = vpop.f32.mrb[0].mxu0
    %v1622 = vpop.f32.mrb[0].mxu0
    %v1623 = vadd.f32 0.0, %v1622
    %v1624 = vpop.f32.mrb[0].mxu0
    %1625 = vmatprep.mubr.bf16.mxu0 0
    %1626 = vmatmul.mubr.bf16.gmra.mrb[0].mxu0 %v1583
    %v1627 = vpop.f32.mrb[0].mxu0
    %v1628 = vadd.f32 0.0, %v1627
    %v1629 = vpop.f32.mrb[0].mxu0
    %v1630 = vpop.f32.mrb[0].mxu0
    %v1631 = vadd.f32 0.0, %v1630
    %v1632 = vpop.f32.mrb[0].mxu0
    %1633 = vdwg.mxu0
    %v1634 = vadd.f32 %v1424, %v1620
    %v1635 = vadd.f32 %v1425, %v1623
    %v1636 = vadd.f32 %v1426, %v1628
    %v1637 = vadd.f32 %v1427, %v1631
    %v1638 = vld [vmem:[%s10] sm:$0x1]
    %v1640 = vlaneseq
    %v1641 = vshrl.u32 %v1640, 7
    %v1642 = vsub.s32 0, %v1641
    %v1643 = vrot.slane %v1638, %v1642
    %v1645 = vadd.f32 %v1634, %v1643
    %v1646 = vadd.f32 %v1635, %v1643
    %v1647 = vadd.f32 %v1636, %v1643
    %v1648 = vadd.f32 %v1637, %v1643
    %v1649 = vsel %vm185, %v1645, 0.0
    %v1650 = vsel %vm185, %v1646, 0.0
    %v1651 = vadd.f32 %v1649, %v1650
    %v1652 = vsel %vm185, %v1647, 0.0
    %v1653 = vadd.f32 %v1651, %v1652
    %v1654 = vsel %vm185, %v1648, 0.0
    %v1655 = vadd.f32 %v1653, %v1654
    %v1656 = vrot.slane %v1655, 4
    %v1657 = vadd.f32 %v1655, %v1656
    %v1658 = vrot.slane %v1657, 2
    %v1659 = vadd.f32 %v1657, %v1658
    %v1660 = vrot.slane %v1659, 1
    %v1661 = vadd.f32 %v1659, %v1660
    %v1662 = vmul.f32 %v1661, %v1381
    %v1663 = vsub.f32 %v1645, %v1662
    %v1664 = vsub.f32 %v1646, %v1662
    %v1665 = vsub.f32 %v1647, %v1662
    %v1666 = vsub.f32 %v1648, %v1662
    %v1667 = vmul.f32 %v1663, %v1663
    %v1668 = vmul.f32 %v1664, %v1664
    %v1669 = vmul.f32 %v1665, %v1665
    %v1670 = vmul.f32 %v1666, %v1666
    %v1671 = vsel %vm185, %v1667, 0.0
    %v1672 = vsel %vm185, %v1668, 0.0
    %v1673 = vadd.f32 %v1671, %v1672
    %v1674 = vsel %vm185, %v1669, 0.0
    %v1675 = vadd.f32 %v1673, %v1674
    %v1676 = vsel %vm185, %v1670, 0.0
    %v1677 = vadd.f32 %v1675, %v1676
    %v1678 = vrot.slane %v1677, 4
    %v1679 = vadd.f32 %v1677, %v1678
    %v1680 = vrot.slane %v1679, 2
    %v1681 = vadd.f32 %v1679, %v1680
    %v1682 = vrot.slane %v1681, 1
    %v1683 = vadd.f32 %v1681, %v1682
    %v1684 = vmul.f32 %v1683, %v1381
    %v1685 = vadd.f32 %v1684, 1e-05
    %v1686 = vrsqrt.pop %v1685
    %v1687 = vld [vmem:[#allocation7] sm:$0x1]
    %v1688 = vmul.f32 %v1686, %v1687
    %v1689 = vlaneseq
    %v1690 = vshrl.u32 %v1689, 7
    %v1691 = vsub.s32 0, %v1690
    %v1692 = vrot.slane %v1688, %v1691
    %v1693 = vmul.f32 %v1663, %v1692
    %v1694 = vmul.f32 %v1664, %v1692
    %v1695 = vmul.f32 %v1665, %v1692
    %v1696 = vmul.f32 %v1666, %v1692
    %v1697 = vld [vmem:[#allocation9] sm:$0x1]
    %v1699 = vlaneseq
    %v1700 = vshrl.u32 %v1699, 7
    %v1701 = vsub.s32 0, %v1700
    %v1702 = vrot.slane %v1697, %v1701
    %v1704 = vadd.f32 %v1693, %v1702
    %v1705 = vadd.f32 %v1694, %v1702
    %v1706 = vadd.f32 %v1695, %v1702
    %v1707 = vadd.f32 %v1696, %v1702
    %v1708 = vld [vmem:[%s13] sm:$0xf]
    %v1709 = vld [vmem:[%s13 + $0x4] sm:$0xf]
    %v1710 = vld [vmem:[%s13 + $0x8] sm:$0xf]
    %v1711 = vld [vmem:[%s13 + $0xc] sm:$0xf]
    %v1712 = vpack.c.bf16 %v1705, %v1704
    %v1713 = vpack.c.bf16 %v1707, %v1706
    %v1714 = vld [vmem:[#allocation10] sm:$0x1]
    %v1716 = vlaneseq
    %v1717 = vshrl.u32 %v1716, 7
    %v1718 = vsub.s32 0, %v1717
    %v1719 = vrot.slane %v1714, %v1718
    %v1725 = vunpack.c.l.b16 %v1708
    %v1726 = vunpack.c.l.b16 %v1709
    %v1727 = vunpack.c.l.b16 %v1710
    %v1728 = vunpack.c.l.b16 %v1711
    %v1729 = vpack.c.b16 %v1726, %v1725
    %v1730 = vpack.c.b16 %v1728, %v1727
    %v1734 = vsel %vm185, %v1712, 0
    %v1737 = vsel %vm185, %v1713, 0
    %1739 = vmatprep.subr.bf16.mxu0 0
    %1740 = vmatpush1.bf16.msra.mxu0 %v1729
    %1741 = vmatprep.subr.bf16.mxu0 0
    %1742 = vmatpush1.bf16.msra.mxu0 %v1730
    %1743 = vmatprep.subr.bf16.mxu0 0
    %1744 = vmatpush1.bf16.msra.mxu0 0
    %1745 = vmatprep.subr.bf16.mxu0 0
    %1746 = vmatpush1.bf16.msra.mxu0 0
    %1747 = vmatprep.subr.bf16.mxu0 0
    %1748 = vmatpush1.bf16.msra.mxu0 0
    %1749 = vmatprep.subr.bf16.mxu0 0
    %1750 = vmatpush1.bf16.msra.mxu0 0
    %1751 = vmatprep.subr.bf16.mxu0 0
    %1752 = vmatpush1.bf16.msra.mxu0 0
    %1753 = vmatprep.subr.bf16.mxu0 0
    %1754 = vmatpush1.bf16.msra.mxu0 0
    %1755 = vmatprep.subr.bf16.mxu0 0
    %1756 = vmatpush1.bf16.msra.mxu0 0
    %1757 = vmatprep.subr.bf16.mxu0 0
    %1758 = vmatpush1.bf16.msra.mxu0 0
    %1759 = vmatprep.subr.bf16.mxu0 0
    %1760 = vmatpush1.bf16.msra.mxu0 0
    %1761 = vmatprep.subr.bf16.mxu0 0
    %1762 = vmatpush1.bf16.msra.mxu0 0
    %1763 = vmatprep.subr.bf16.mxu0 0
    %1764 = vmatpush1.bf16.msra.mxu0 0
    %1765 = vmatprep.subr.bf16.mxu0 0
    %1766 = vmatpush1.bf16.msra.mxu0 0
    %1767 = vmatprep.subr.bf16.mxu0 0
    %1768 = vmatpush1.bf16.msra.mxu0 0
    %1769 = vmatprep.subr.bf16.mxu0 0
    %1770 = vmatpush1.bf16.msra.mxu0 0
    %1771 = vmatprep.mubr.bf16.mxu0 0
    %1772 = vmatmul.mubr.bf16.gmra.mrb[0].mxu0 %v1734
    %v1773 = vpop.f32.mrb[0].mxu0
    %v1774 = vadd.f32 %v1719, %v1773
    %v1775 = vpop.f32.mrb[0].mxu0
    %v1776 = vpop.f32.mrb[0].mxu0
    %v1777 = vadd.f32 %v1719, %v1776
    %v1778 = vpop.f32.mrb[0].mxu0
    %1779 = vmatprep.mubr.bf16.mxu0 0
    %1780 = vmatmul.mubr.bf16.gmra.mrb[0].mxu0 %v1737
    %v1781 = vpop.f32.mrb[0].mxu0
    %v1782 = vadd.f32 %v1719, %v1781
    %v1783 = vpop.f32.mrb[0].mxu0
    %v1784 = vpop.f32.mrb[0].mxu0
    %v1785 = vadd.f32 %v1719, %v1784
    %v1786 = vpop.f32.mrb[0].mxu0
    %1787 = vdwg.mxu0
    %v1788 = vmul.f32 %v1704, %v1704
    %v1789 = vmul.f32 %v1705, %v1705
    %v1790 = vmul.f32 %v1706, %v1706
    %v1791 = vmul.f32 %v1707, %v1707
    %v1792 = vmul.f32 %v1704, %v1788
    %v1793 = vmul.f32 %v1705, %v1789
    %v1794 = vmul.f32 %v1706, %v1790
    %v1795 = vmul.f32 %v1707, %v1791
    %v1796 = vmul.f32 %v1792, 0.044715
    %v1797 = vmul.f32 %v1793, 0.044715
    %v1798 = vmul.f32 %v1794, 0.044715
    %v1799 = vmul.f32 %v1795, 0.044715
    %v1800 = vadd.f32 %v1704, %v1796
    %v1801 = vadd.f32 %v1705, %v1797
    %v1802 = vadd.f32 %v1706, %v1798
    %v1803 = vadd.f32 %v1707, %v1799
    %v1804 = vmul.f32 %v1800, 0.7978846
    %v1805 = vmul.f32 %v1801, 0.7978846
    %v1806 = vmul.f32 %v1802, 0.7978846
    %v1807 = vmul.f32 %v1803, 0.7978846
    %v1808 = vtanh.pop %v1804
    %v1809 = vtanh.pop %v1805
    %v1810 = vtanh.pop %v1806
    %v1811 = vtanh.pop %v1807
    %v1812 = vadd.f32 %v1808, 1.0
    %v1813 = vadd.f32 %v1809, 1.0
    %v1814 = vadd.f32 %v1810, 1.0
    %v1815 = vadd.f32 %v1811, 1.0
    %v1816 = vmul.f32 %v1812, 0.5
    %v1817 = vmul.f32 %v1813, 0.5
    %v1818 = vmul.f32 %v1814, 0.5
    %v1819 = vmul.f32 %v1815, 0.5
    %v1820 = vmul.f32 %v1704, %v1816
    %v1821 = vmul.f32 %v1705, %v1817
    %v1822 = vmul.f32 %v1706, %v1818
    %v1823 = vmul.f32 %v1707, %v1819
    %vm1828 = vcmask 1040384
    %v1829 = vrot.slane %v1820, 7
    %v1830 = vrot.slane %v1821, 7
    %v1831 = vsel %vm1828, %v1829, %v1830
    %v1832 = vrot.slane %v1822, 7
    %v1833 = vrot.slane %v1823, 7
    %v1834 = vsel %vm1828, %v1832, %v1833
    %v1839 = vsel %vm1828, 0.0, %v1829
    %v1840 = vsel %vm1828, 0.0, %v1832
    %vm1841 = vcmask 1046528
    %v1842 = vrot.slane %v1820, 1
    %v1843 = vrot.slane %v1821, 1
    %v1844 = vsel %vm1841, %v1842, %v1843
    %v1845 = vrot.slane %v1822, 1
    %v1846 = vrot.slane %v1823, 1
    %v1847 = vsel %vm1841, %v1845, %v1846
    %v1850 = vsel %vm1841, %v1843, 0.0
    %v1851 = vsel %vm1841, %v1846, 0.0
    %1852 = vrot.lane.b32.xlu0 %v1820, 32
    %v1853 = vpop.permute.xlu0 %1852
    %1854 = vrot.lane.b32.xlu0 %v1821, 32
    %v1855 = vpop.permute.xlu0 %1854
    %1856 = vrot.lane.b32.xlu0 %v1822, 32
    %v1857 = vpop.permute.xlu0 %1856
    %1858 = vrot.lane.b32.xlu0 %v1823, 32
    %v1859 = vpop.permute.xlu0 %1858
    %1866 = vrot.lane.b32.xlu0 %v1844, 64
    %v1867 = vpop.permute.xlu0 %1866
    %1868 = vrot.lane.b32.xlu0 %v1850, 64
    %v1869 = vpop.permute.xlu0 %1868
    %1870 = vrot.lane.b32.xlu0 %v1847, 64
    %v1871 = vpop.permute.xlu0 %1870
    %1872 = vrot.lane.b32.xlu0 %v1851, 64
    %v1873 = vpop.permute.xlu0 %1872
    %v1878 = vsel %vm185, %v1839, %v1853
    %v1879 = vsel %vm185, %v1831, %v1855
    %v1880 = vsel %vm185, %v1840, %v1857
    %v1881 = vsel %vm185, %v1834, %v1859
    %v1882 = vsel %vm1578, %v1878, %v1867
    %v1883 = vsel %vm1578, %v1879, %v1869
    %v1884 = vsel %vm1578, %v1880, %v1871
    %v1885 = vsel %vm1578, %v1881, %v1873
    %v1886 = vld [vmem:[%s15] sm:$0xf]
    %v1887 = vld [vmem:[%s15 + $0x4] sm:$0xf]
    %v1888 = vld [vmem:[%s15 + $0x8] sm:$0xf]
    %v1889 = vld [vmem:[%s15 + $0xc] sm:$0xf]
    %v1890 = vld [vmem:[%s15 + $0x10] sm:$0xf]
    %v1891 = vld [vmem:[%s15 + $0x14] sm:$0xf]
    %v1892 = vld [vmem:[%s15 + $0x18] sm:$0xf]
    %v1893 = vld [vmem:[%s15 + $0x1c] sm:$0xf]
    %v1894 = vld [vmem:[%s15 + $0x20] sm:$0xf]
    %v1895 = vld [vmem:[%s15 + $0x24] sm:$0xf]
    %v1896 = vld [vmem:[%s15 + $0x28] sm:$0xf]
    %v1897 = vld [vmem:[%s15 + $0x2c] sm:$0xf]
    %v1898 = vpack.c.bf16 %v1883, %v1882
    %v1899 = vpack.c.bf16 %v1885, %v1884
    %v1900 = vld [vmem:[#allocation12] sm:$0x1]
    %v1902 = vlaneseq
    %v1903 = vshrl.u32 %v1902, 7
    %v1904 = vsub.s32 0, %v1903
    %v1905 = vrot.slane %v1900, %v1904
    %v1919 = vunpack.c.l.b16 %v1886
    %v1920 = vunpack.c.l.b16 %v1887
    %v1921 = vunpack.c.l.b16 %v1888
    %v1922 = vunpack.c.l.b16 %v1889
    %v1923 = vunpack.c.l.b16 %v1890
    %v1924 = vunpack.c.l.b16 %v1891
    %v1925 = vunpack.c.l.b16 %v1892
    %v1926 = vunpack.c.l.b16 %v1893
    %v1927 = vunpack.c.l.b16 %v1894
    %v1928 = vunpack.c.l.b16 %v1895
    %v1929 = vunpack.c.l.b16 %v1896
    %v1930 = vunpack.c.l.b16 %v1897
    %v1931 = vpack.c.b16 %v1920, %v1919
    %v1932 = vpack.c.b16 %v1922, %v1921
    %v1933 = vpack.c.b16 %v1924, %v1923
    %v1934 = vpack.c.b16 %v1926, %v1925
    %v1935 = vpack.c.b16 %v1928, %v1927
    %v1936 = vpack.c.b16 %v1930, %v1929
    %vm1943 = vcmask 785408
    %v1945 = vsel %vm1943, %v1898, 0
    %v1948 = vsel %vm1943, %v1899, 0
    %1950 = vmatprep.subr.bf16.mxu0 0
    %1951 = vmatpush1.bf16.msra.mxu0 %v1931
    %1952 = vmatprep.subr.bf16.mxu0 0
    %1953 = vmatpush1.bf16.msra.mxu0 %v1932
    %1954 = vmatprep.subr.bf16.mxu0 0
    %1955 = vmatpush1.bf16.msra.mxu0 %v1933
    %1956 = vmatprep.subr.bf16.mxu0 0
    %1957 = vmatpush1.bf16.msra.mxu0 %v1934
    %1958 = vmatprep.subr.bf16.mxu0 0
    %1959 = vmatpush1.bf16.msra.mxu0 %v1935
    %1960 = vmatprep.subr.bf16.mxu0 0
    %1961 = vmatpush1.bf16.msra.mxu0 %v1936
    %1962 = vmatprep.subr.bf16.mxu0 0
    %1963 = vmatpush1.bf16.msra.mxu0 0
    %1964 = vmatprep.subr.bf16.mxu0 0
    %1965 = vmatpush1.bf16.msra.mxu0 0
    %1966 = vmatprep.subr.bf16.mxu0 0
    %1967 = vmatpush1.bf16.msra.mxu0 0
    %1968 = vmatprep.subr.bf16.mxu0 0
    %1969 = vmatpush1.bf16.msra.mxu0 0
    %1970 = vmatprep.subr.bf16.mxu0 0
    %1971 = vmatpush1.bf16.msra.mxu0 0
    %1972 = vmatprep.subr.bf16.mxu0 0
    %1973 = vmatpush1.bf16.msra.mxu0 0
    %1974 = vmatprep.subr.bf16.mxu0 0
    %1975 = vmatpush1.bf16.msra.mxu0 0
    %1976 = vmatprep.subr.bf16.mxu0 0
    %1977 = vmatpush1.bf16.msra.mxu0 0
    %1978 = vmatprep.subr.bf16.mxu0 0
    %1979 = vmatpush1.bf16.msra.mxu0 0
    %1980 = vmatprep.subr.bf16.mxu0 0
    %1981 = vmatpush1.bf16.msra.mxu0 0
    %1982 = vmatprep.mubr.bf16.mxu0 0
    %1983 = vmatmul.mubr.bf16.gmra.mrb[0].mxu0 %v1945
    %v1984 = vpop.f32.mrb[0].mxu0
    %v1985 = vadd.f32 %v1905, %v1984
    %v1986 = vpop.f32.mrb[0].mxu0
    %v1987 = vpop.f32.mrb[0].mxu0
    %v1988 = vadd.f32 %v1905, %v1987
    %v1989 = vpop.f32.mrb[0].mxu0
    %1990 = vmatprep.mubr.bf16.mxu0 0
    %1991 = vmatmul.mubr.bf16.gmra.mrb[0].mxu0 %v1948
    %v1992 = vpop.f32.mrb[0].mxu0
    %v1993 = vadd.f32 %v1905, %v1992
    %v1994 = vpop.f32.mrb[0].mxu0
    %v1995 = vpop.f32.mrb[0].mxu0
    %v1996 = vadd.f32 %v1905, %v1995
    %v1997 = vpop.f32.mrb[0].mxu0
    %1998 = vdwg.mxu0
    %v1999 = vmul.f32 %v1985, %v1985
    %v2000 = vmul.f32 %v1988, %v1988
    %v2001 = vmul.f32 %v1993, %v1993
    %v2002 = vmul.f32 %v1996, %v1996
    %v2003 = vmul.f32 %v1985, %v1999
    %v2004 = vmul.f32 %v1988, %v2000
    %v2005 = vmul.f32 %v1993, %v2001
    %v2006 = vmul.f32 %v1996, %v2002
    %v2007 = vmul.f32 %v2003, 0.044715
    %v2008 = vmul.f32 %v2004, 0.044715
    %v2009 = vmul.f32 %v2005, 0.044715
    %v2010 = vmul.f32 %v2006, 0.044715
    %v2011 = vadd.f32 %v1985, %v2007
    %v2012 = vadd.f32 %v1988, %v2008
    %v2013 = vadd.f32 %v1993, %v2009
    %v2014 = vadd.f32 %v1996, %v2010
    %v2015 = vmul.f32 %v2011, 0.7978846
    %v2016 = vmul.f32 %v2012, 0.7978846
    %v2017 = vmul.f32 %v2013, 0.7978846
    %v2018 = vmul.f32 %v2014, 0.7978846
    %v2019 = vtanh.pop %v2015
    %v2020 = vtanh.pop %v2016
    %v2021 = vtanh.pop %v2017
    %v2022 = vtanh.pop %v2018
    %v2023 = vadd.f32 %v2019, 1.0
    %v2024 = vadd.f32 %v2020, 1.0
    %v2025 = vadd.f32 %v2021, 1.0
    %v2026 = vadd.f32 %v2022, 1.0
    %v2027 = vmul.f32 %v2023, 0.5
    %v2028 = vmul.f32 %v2024, 0.5
    %v2029 = vmul.f32 %v2025, 0.5
    %v2030 = vmul.f32 %v2026, 0.5
    %v2031 = vmul.f32 %v1985, %v2027
    %v2032 = vmul.f32 %v1988, %v2028
    %v2033 = vmul.f32 %v1993, %v2029
    %v2034 = vmul.f32 %v1996, %v2030
    %v2039 = vrot.slane %v2031, 7
    %v2040 = vrot.slane %v2032, 7
    %v2041 = vsel %vm1828, %v2039, %v2040
    %v2042 = vrot.slane %v2033, 7
    %v2043 = vrot.slane %v2034, 7
    %v2044 = vsel %vm1828, %v2042, %v2043
    %v2049 = vsel %vm1828, 0.0, %v2039
    %v2050 = vsel %vm1828, 0.0, %v2042
    %v2051 = vrot.slane %v2031, 1
    %v2052 = vrot.slane %v2032, 1
    %v2053 = vsel %vm1841, %v2051, %v2052
    %v2054 = vrot.slane %v2033, 1
    %v2055 = vrot.slane %v2034, 1
    %v2056 = vsel %vm1841, %v2054, %v2055
    %v2059 = vsel %vm1841, %v2052, 0.0
    %v2060 = vsel %vm1841, %v2055, 0.0
    %2061 = vrot.lane.b32.xlu0 %v2031, 32
    %v2062 = vpop.permute.xlu0 %2061
    %2063 = vrot.lane.b32.xlu0 %v2032, 32
    %v2064 = vpop.permute.xlu0 %2063
    %2065 = vrot.lane.b32.xlu0 %v2033, 32
    %v2066 = vpop.permute.xlu0 %2065
    %2067 = vrot.lane.b32.xlu0 %v2034, 32
    %v2068 = vpop.permute.xlu0 %2067
    %2075 = vrot.lane.b32.xlu0 %v2053, 64
    %v2076 = vpop.permute.xlu0 %2075
    %2077 = vrot.lane.b32.xlu0 %v2059, 64
    %v2078 = vpop.permute.xlu0 %2077
    %2079 = vrot.lane.b32.xlu0 %v2056, 64
    %v2080 = vpop.permute.xlu0 %2079
    %2081 = vrot.lane.b32.xlu0 %v2060, 64
    %v2082 = vpop.permute.xlu0 %2081
    %v2087 = vsel %vm185, %v2049, %v2062
    %v2088 = vsel %vm185, %v2041, %v2064
    %v2089 = vsel %vm185, %v2050, %v2066
    %v2090 = vsel %vm185, %v2044, %v2068
    %v2091 = vsel %vm1578, %v2087, %v2076
    %v2092 = vsel %vm1578, %v2088, %v2078
    %v2093 = vsel %vm1578, %v2089, %v2080
    %v2094 = vsel %vm1578, %v2090, %v2082
    %v2095 = vld [vmem:[%s17] sm:$0xf]
    %v2096 = vld [vmem:[%s17 + $0x4] sm:$0xf]
    %v2097 = vld [vmem:[%s17 + $0x8] sm:$0xf]
    %v2098 = vld [vmem:[%s17 + $0xc] sm:$0xf]
    %v2099 = vld [vmem:[%s17 + $0x10] sm:$0xf]
    %v2100 = vld [vmem:[%s17 + $0x14] sm:$0xf]
    %v2101 = vld [vmem:[%s17 + $0x18] sm:$0xf]
    %v2102 = vld [vmem:[%s17 + $0x1c] sm:$0xf]
    %v2103 = vld [vmem:[%s17 + $0x20] sm:$0xf]
    %v2104 = vld [vmem:[%s17 + $0x24] sm:$0xf]
    %v2105 = vld [vmem:[%s17 + $0x28] sm:$0xf]
    %v2106 = vld [vmem:[%s17 + $0x2c] sm:$0xf]
    %v2107 = vpack.c.bf16 %v2092, %v2091
    %v2108 = vpack.c.bf16 %v2094, %v2093
    %v2109 = vld [vmem:[#allocation13] sm:$0x1]
    %v2111 = vlaneseq
    %v2112 = vshrl.u32 %v2111, 7
    %v2113 = vsub.s32 0, %v2112
    %v2114 = vrot.slane %v2109, %v2113
    %v2128 = vunpack.c.l.b16 %v2095
    %v2129 = vunpack.c.l.b16 %v2096
    %v2130 = vunpack.c.l.b16 %v2097
    %v2131 = vunpack.c.l.b16 %v2098
    %v2132 = vunpack.c.l.b16 %v2099
    %v2133 = vunpack.c.l.b16 %v2100
    %v2134 = vunpack.c.l.b16 %v2101
    %v2135 = vunpack.c.l.b16 %v2102
    %v2136 = vunpack.c.l.b16 %v2103
    %v2137 = vunpack.c.l.b16 %v2104
    %v2138 = vunpack.c.l.b16 %v2105
    %v2139 = vunpack.c.l.b16 %v2106
    %v2140 = vpack.c.b16 %v2129, %v2128
    %v2141 = vpack.c.b16 %v2131, %v2130
    %v2142 = vpack.c.b16 %v2133, %v2132
    %v2143 = vpack.c.b16 %v2135, %v2134
    %v2144 = vpack.c.b16 %v2137, %v2136
    %v2145 = vpack.c.b16 %v2139, %v2138
    %v2153 = vsel %vm1943, %v2107, 0
    %v2156 = vsel %vm1943, %v2108, 0
    %2158 = vmatprep.subr.bf16.mxu0 0
    %2159 = vmatpush1.bf16.msra.mxu0 %v2140
    %2160 = vmatprep.subr.bf16.mxu0 0
    %2161 = vmatpush1.bf16.msra.mxu0 %v2141
    %2162 = vmatprep.subr.bf16.mxu0 0
    %2163 = vmatpush1.bf16.msra.mxu0 %v2142
    %2164 = vmatprep.subr.bf16.mxu0 0
    %2165 = vmatpush1.bf16.msra.mxu0 %v2143
    %2166 = vmatprep.subr.bf16.mxu0 0
    %2167 = vmatpush1.bf16.msra.mxu0 %v2144
    %2168 = vmatprep.subr.bf16.mxu0 0
    %2169 = vmatpush1.bf16.msra.mxu0 %v2145
    %2170 = vmatprep.subr.bf16.mxu0 0
    %2171 = vmatpush1.bf16.msra.mxu0 0
    %2172 = vmatprep.subr.bf16.mxu0 0
    %2173 = vmatpush1.bf16.msra.mxu0 0
    %2174 = vmatprep.subr.bf16.mxu0 0
    %2175 = vmatpush1.bf16.msra.mxu0 0
    %2176 = vmatprep.subr.bf16.mxu0 0
    %2177 = vmatpush1.bf16.msra.mxu0 0
    %2178 = vmatprep.subr.bf16.mxu0 0
    %2179 = vmatpush1.bf16.msra.mxu0 0
    %2180 = vmatprep.subr.bf16.mxu0 0
    %2181 = vmatpush1.bf16.msra.mxu0 0
    %2182 = vmatprep.subr.bf16.mxu0 0
    %2183 = vmatpush1.bf16.msra.mxu0 0
    %2184 = vmatprep.subr.bf16.mxu0 0
    %2185 = vmatpush1.bf16.msra.mxu0 0
    %2186 = vmatprep.subr.bf16.mxu0 0
    %2187 = vmatpush1.bf16.msra.mxu0 0
    %2188 = vmatprep.subr.bf16.mxu0 0
    %2189 = vmatpush1.bf16.msra.mxu0 0
    %2190 = vmatprep.mubr.bf16.mxu0 0
    %2191 = vmatmul.mubr.bf16.gmra.mrb[0].mxu0 %v2153
    %v2192 = vpop.f32.mrb[0].mxu0
    %v2193 = vadd.f32 %v2114, %v2192
    %v2194 = vpop.f32.mrb[0].mxu0
    %v2195 = vpop.f32.mrb[0].mxu0
    %v2196 = vadd.f32 %v2114, %v2195
    %v2197 = vpop.f32.mrb[0].mxu0
    %2198 = vmatprep.mubr.bf16.mxu0 0
    %2199 = vmatmul.mubr.bf16.gmra.mrb[0].mxu0 %v2156
    %v2200 = vpop.f32.mrb[0].mxu0
    %v2201 = vadd.f32 %v2114, %v2200
    %v2202 = vpop.f32.mrb[0].mxu0
    %v2203 = vpop.f32.mrb[0].mxu0
    %v2204 = vadd.f32 %v2114, %v2203
    %v2205 = vpop.f32.mrb[0].mxu0
    %2206 = vdwg.mxu0
    %v2207 = vadd.f32 %v2193, %v1774
    %v2208 = vadd.f32 %v2196, %v1777
    %v2209 = vadd.f32 %v2201, %v1782
    %v2210 = vadd.f32 %v2204, %v1785
    %2211 = vst.msk [vmem:[%s19] sm:$0xff] %vm185, %v2207
    %2212 = vst.msk [vmem:[%s19 + $0x8] sm:$0xff] %vm185, %v2208
    %2213 = vst.msk [vmem:[%s19 + $0x10] sm:$0xff] %vm185, %v2209
    %2214 = vst.msk [vmem:[%s19 + $0x18] sm:$0xff] %vm185, %v2210
    // Predicated region
    $region110: #{tst_encoder.2} parent=1 // pred_check
      _
    $region111: #{tst_encoder.2} parent=1 // pred_check_branch
      %2216 = sbr.rel (0) target = $region113
    $region112: #{tst_encoder.2} parent=1 // pred_region
      _
    $region113: #{tst_encoder.2} parent=1 // pred_fallthru
      _
    // Predicated region
    $region114: #{tst_encoder.2} parent=1 // pred_check
      _
    $region115: #{tst_encoder.2} parent=1 // pred_check_branch
      %2218 = sbr.rel (0) target = $region117
    $region116: #{tst_encoder.2} parent=1 // pred_region
      _
    $region117: #{tst_encoder.2} parent=1 // pred_fallthru
      _
    %2219 = vsyncpa [#allocation3], 1
    %2220 = vsyncpa [#allocation5], 1
    %2221 = vsyncpa [#allocation8], 1
    %2222 = vsyncpa [#allocation11], 1
    %2223 = vsyncpa [#allocation14], 1

// kernel: tst_encoder.3
$region0: #{tst_encoder.3}
  #allocation0 [shape = 'u32[]', space=smem, size = 0x4, offset = 0x4, fixed_abs, tag = 'smem constant byte address 0x4 - core index']
  #allocation1 [shape = 'u32[144,128]{1,0:T(1,128)}', space=vmem, size = 0x12000, scoped, tag = 'internal scratch']
  %s0 = inlined_call_operand.vmem [shape: f32[2,16,32], index: 0, kind: input, shape index: {}]
  %s1 = inlined_call_operand.vmem [shape: bf16[32,96], index: 1, kind: input, shape index: {}]
  %s2 = inlined_call_operand.vmem [shape: f32[1,96], index: 2, kind: input, shape index: {}]
  %s3 = inlined_call_operand.vmem [shape: bf16[32,32], index: 3, kind: input, shape index: {}]
  %s4 = inlined_call_operand.vmem [shape: f32[1,32], index: 4, kind: input, shape index: {}]
  %s5 = inlined_call_operand.vmem [shape: f32[1,32], index: 5, kind: input, shape index: {}]
  %s6 = inlined_call_operand.vmem [shape: f32[1,32], index: 6, kind: input, shape index: {}]
  %s7 = inlined_call_operand.vmem [shape: bf16[32,64], index: 7, kind: input, shape index: {}]
  %s8 = inlined_call_operand.vmem [shape: f32[1,64], index: 8, kind: input, shape index: {}]
  %s9 = inlined_call_operand.vmem [shape: bf16[64,32], index: 9, kind: input, shape index: {}]
  %s10 = inlined_call_operand.vmem [shape: f32[1,32], index: 10, kind: input, shape index: {}]
  %s11 = inlined_call_operand.vmem [shape: f32[1,32], index: 11, kind: input, shape index: {}]
  %s12 = inlined_call_operand.vmem [shape: f32[1,32], index: 12, kind: input, shape index: {}]
  %s13 = inlined_call_operand.vmem [shape: bf16[32,32], index: 13, kind: input, shape index: {}]
  %s14 = inlined_call_operand.vmem [shape: f32[1,32], index: 14, kind: input, shape index: {}]
  %s15 = inlined_call_operand.vmem [shape: bf16[96,32], index: 15, kind: input, shape index: {}]
  %s16 = inlined_call_operand.vmem [shape: f32[1,32], index: 16, kind: input, shape index: {}]
  %s17 = inlined_call_operand.vmem [shape: bf16[96,32], index: 17, kind: input, shape index: {}]
  %s18 = inlined_call_operand.vmem [shape: f32[1,32], index: 18, kind: input, shape index: {}]
  %s19 = inlined_call_operand.hbm [shape: f32[2,16,32], index: 19, kind: output, shape index: {}]
  %s20 = sld [smem:[#allocation0]]
  $region86: #{tst_encoder.3} parent=0
    _
  %s22 = ssub.s32 1, %s20
  %s23 = scalar_select 0, %s22, %s20
  $region1: #{tst_encoder.3} parent=0
    #allocation2 [shape = 'u8[16384]{0}', space=vmem, size = 0x4000, scoped, tag = 'output window, operand 0, single buffered']
    #allocation3 [shape = 's32[1]{0}', space=sflag, size = 0x4, scoped, tag = 'scoped memory for tst_encoder.3']
    %24 = vsyncpa [#allocation3], 0
    // Predicated region
    $region2: #{tst_encoder.3} parent=1 // pred_check
      _
    $region3: #{tst_encoder.3} parent=1 // pred_check_branch
      %26 = sbr.rel (0) target = $region5
    $region4: #{tst_encoder.3} parent=1 // pred_region
      _
    $region5: #{tst_encoder.3} parent=1 // pred_fallthru
      _
    // Predicated region
    $region6: #{tst_encoder.3} parent=1 // pred_check
      _
    $region7: #{tst_encoder.3} parent=1 // pred_check_branch
      %28 = sbr.rel (0) target = $region9
    $region8: #{tst_encoder.3} parent=1 // pred_region
      _
    $region9: #{tst_encoder.3} parent=1 // pred_fallthru
      _
    // Predicated region
    $region10: #{tst_encoder.3} parent=1 // pred_check
      _
    $region11: #{tst_encoder.3} parent=1 // pred_check_branch
      %30 = sbr.rel (0) target = $region13
    $region12: #{tst_encoder.3} parent=1 // pred_region
      _
    $region13: #{tst_encoder.3} parent=1 // pred_fallthru
      _
    // Predicated region
    $region14: #{tst_encoder.3} parent=1 // pred_check
      _
    $region15: #{tst_encoder.3} parent=1 // pred_check_branch
      %32 = sbr.rel (0) target = $region17
    $region16: #{tst_encoder.3} parent=1 // pred_region
      _
    $region17: #{tst_encoder.3} parent=1 // pred_fallthru
      _
    // Predicated region
    $region18: #{tst_encoder.3} parent=1 // pred_check
      _
    $region19: #{tst_encoder.3} parent=1 // pred_check_branch
      %34 = sbr.rel (0) target = $region21
    $region20: #{tst_encoder.3} parent=1 // pred_region
      _
    $region21: #{tst_encoder.3} parent=1 // pred_fallthru
      _
    // Predicated region
    $region22: #{tst_encoder.3} parent=1 // pred_check
      _
    $region23: #{tst_encoder.3} parent=1 // pred_check_branch
      %36 = sbr.rel (0) target = $region25
    $region24: #{tst_encoder.3} parent=1 // pred_region
      _
    $region25: #{tst_encoder.3} parent=1 // pred_fallthru
      _
    // Predicated region
    $region26: #{tst_encoder.3} parent=1 // pred_check
      _
    $region27: #{tst_encoder.3} parent=1 // pred_check_branch
      %38 = sbr.rel (0) target = $region29
    $region28: #{tst_encoder.3} parent=1 // pred_region
      _
    $region29: #{tst_encoder.3} parent=1 // pred_fallthru
      _
    // Predicated region
    $region30: #{tst_encoder.3} parent=1 // pred_check
      _
    $region31: #{tst_encoder.3} parent=1 // pred_check_branch
      %40 = sbr.rel (0) target = $region33
    $region32: #{tst_encoder.3} parent=1 // pred_region
      _
    $region33: #{tst_encoder.3} parent=1 // pred_fallthru
      _
    // Predicated region
    $region34: #{tst_encoder.3} parent=1 // pred_check
      _
    $region35: #{tst_encoder.3} parent=1 // pred_check_branch
      %42 = sbr.rel (0) target = $region37
    $region36: #{tst_encoder.3} parent=1 // pred_region
      _
    $region37: #{tst_encoder.3} parent=1 // pred_fallthru
      _
    // Predicated region
    $region38: #{tst_encoder.3} parent=1 // pred_check
      _
    $region39: #{tst_encoder.3} parent=1 // pred_check_branch
      %44 = sbr.rel (0) target = $region41
    $region40: #{tst_encoder.3} parent=1 // pred_region
      _
    $region41: #{tst_encoder.3} parent=1 // pred_fallthru
      _
    // Predicated region
    $region42: #{tst_encoder.3} parent=1 // pred_check
      _
    $region43: #{tst_encoder.3} parent=1 // pred_check_branch
      %46 = sbr.rel (0) target = $region45
    $region44: #{tst_encoder.3} parent=1 // pred_region
      _
    $region45: #{tst_encoder.3} parent=1 // pred_fallthru
      _
    // Predicated region
    $region46: #{tst_encoder.3} parent=1 // pred_check
      _
    $region47: #{tst_encoder.3} parent=1 // pred_check_branch
      %48 = sbr.rel (0) target = $region49
    $region48: #{tst_encoder.3} parent=1 // pred_region
      _
    $region49: #{tst_encoder.3} parent=1 // pred_fallthru
      _
    // Predicated region
    $region50: #{tst_encoder.3} parent=1 // pred_check
      _
    $region51: #{tst_encoder.3} parent=1 // pred_check_branch
      %50 = sbr.rel (0) target = $region53
    $region52: #{tst_encoder.3} parent=1 // pred_region
      _
    $region53: #{tst_encoder.3} parent=1 // pred_fallthru
      _
    // Predicated region
    $region54: #{tst_encoder.3} parent=1 // pred_check
      _
    $region55: #{tst_encoder.3} parent=1 // pred_check_branch
      %52 = sbr.rel (0) target = $region57
    $region56: #{tst_encoder.3} parent=1 // pred_region
      _
    $region57: #{tst_encoder.3} parent=1 // pred_fallthru
      _
    // Predicated region
    $region58: #{tst_encoder.3} parent=1 // pred_check
      _
    $region59: #{tst_encoder.3} parent=1 // pred_check_branch
      %54 = sbr.rel (0) target = $region61
    $region60: #{tst_encoder.3} parent=1 // pred_region
      _
    $region61: #{tst_encoder.3} parent=1 // pred_fallthru
      _
    // Predicated region
    $region62: #{tst_encoder.3} parent=1 // pred_check
      _
    $region63: #{tst_encoder.3} parent=1 // pred_check_branch
      %56 = sbr.rel (0) target = $region65
    $region64: #{tst_encoder.3} parent=1 // pred_region
      _
    $region65: #{tst_encoder.3} parent=1 // pred_fallthru
      _
    // Predicated region
    $region66: #{tst_encoder.3} parent=1 // pred_check
      _
    $region67: #{tst_encoder.3} parent=1 // pred_check_branch
      %58 = sbr.rel (0) target = $region69
    $region68: #{tst_encoder.3} parent=1 // pred_region
      _
    $region69: #{tst_encoder.3} parent=1 // pred_fallthru
      _
    // Predicated region
    $region70: #{tst_encoder.3} parent=1 // pred_check
      _
    $region71: #{tst_encoder.3} parent=1 // pred_check_branch
      %60 = sbr.rel (0) target = $region73
    $region72: #{tst_encoder.3} parent=1 // pred_region
      _
    $region73: #{tst_encoder.3} parent=1 // pred_fallthru
      _
    // Predicated region
    $region74: #{tst_encoder.3} parent=1 // pred_check
      _
    $region75: #{tst_encoder.3} parent=1 // pred_check_branch
      %62 = sbr.rel (0) target = $region77
    $region76: #{tst_encoder.3} parent=1 // pred_region
      _
    $region77: #{tst_encoder.3} parent=1 // pred_fallthru
      _
    %v64 = vld [vmem:[%s0] sm:$0xff]
    %v65 = vld [vmem:[%s0 + $0x8] sm:$0xff]
    %v66 = vld [vmem:[%s0 + $0x10] sm:$0xff]
    %v67 = vld [vmem:[%s0 + $0x18] sm:$0xff]
    %v68 = vld [vmem:[%s1] sm:$0xf]
    %v69 = vld [vmem:[%s1 + $0x4] sm:$0xf]
    %v70 = vld [vmem:[%s1 + $0x8] sm:$0xf]
    %v71 = vld [vmem:[%s1 + $0xc] sm:$0xf]
    %v72 = vpack.c.bf16 %v65, %v64
    %v73 = vpack.c.bf16 %v67, %v66
    %v74 = vld [vmem:[%s2] sm:$0x1]
    %v76 = vlaneseq
    %v77 = vshrl.u32 %v76, 7
    %v78 = vsub.s32 0, %v77
    %v79 = vrot.slane %v74, %v78
    %v85 = vunpack.c.l.b16 %v68
    %v86 = vunpack.c.l.b16 %v69
    %v87 = vunpack.c.l.b16 %v70
    %v88 = vunpack.c.l.b16 %v71
    %v89 = vpack.c.b16 %v86, %v85
    %v90 = vpack.c.b16 %v88, %v87
    %vm93 = vcmask 261120
    %v95 = vsel %vm93, %v72, 0
    %v98 = vsel %vm93, %v73, 0
    %100 = vmatprep.subr.bf16.mxu0 0
    %101 = vmatpush1.bf16.msra.mxu0 %v89
    %102 = vmatprep.subr.bf16.mxu0 0
    %103 = vmatpush1.bf16.msra.mxu0 %v90
    %104 = vmatprep.subr.bf16.mxu0 0
    %105 = vmatpush1.bf16.msra.mxu0 0
    %106 = vmatprep.subr.bf16.mxu0 0
    %107 = vmatpush1.bf16.msra.mxu0 0
    %108 = vmatprep.subr.bf16.mxu0 0
    %109 = vmatpush1.bf16.msra.mxu0 0
    %110 = vmatprep.subr.bf16.mxu0 0
    %111 = vmatpush1.bf16.msra.mxu0 0
    %112 = vmatprep.subr.bf16.mxu0 0
    %113 = vmatpush1.bf16.msra.mxu0 0
    %114 = vmatprep.subr.bf16.mxu0 0
    %115 = vmatpush1.bf16.msra.mxu0 0
    %116 = vmatprep.subr.bf16.mxu0 0
    %117 = vmatpush1.bf16.msra.mxu0 0
    %118 = vmatprep.subr.bf16.mxu0 0
    %119 = vmatpush1.bf16.msra.mxu0 0
    %120 = vmatprep.subr.bf16.mxu0 0
    %121 = vmatpush1.bf16.msra.mxu0 0
    %122 = vmatprep.subr.bf16.mxu0 0
    %123 = vmatpush1.bf16.msra.mxu0 0
    %124 = vmatprep.subr.bf16.mxu0 0
    %125 = vmatpush1.bf16.msra.mxu0 0
    %126 = vmatprep.subr.bf16.mxu0 0
    %127 = vmatpush1.bf16.msra.mxu0 0
    %128 = vmatprep.subr.bf16.mxu0 0
    %129 = vmatpush1.bf16.msra.mxu0 0
    %130 = vmatprep.subr.bf16.mxu0 0
    %131 = vmatpush1.bf16.msra.mxu0 0
    %132 = vmatprep.mubr.bf16.mxu0 0
    %133 = vmatmul.mubr.bf16.gmra.mrb[0].mxu0 %v95
    %v134 = vpop.f32.mrb[0].mxu0
    %v135 = vadd.f32 %v79, %v134
    %v136 = vpop.f32.mrb[0].mxu0
    %v137 = vpop.f32.mrb[0].mxu0
    %v138 = vadd.f32 %v79, %v137
    %v139 = vpop.f32.mrb[0].mxu0
    %140 = vmatprep.mubr.bf16.mxu0 0
    %141 = vmatmul.mubr.bf16.gmra.mrb[0].mxu0 %v98
    %v142 = vpop.f32.mrb[0].mxu0
    %v143 = vadd.f32 %v79, %v142
    %v144 = vpop.f32.mrb[0].mxu0
    %v145 = vpop.f32.mrb[0].mxu0
    %v146 = vadd.f32 %v79, %v145
    %v147 = vpop.f32.mrb[0].mxu0
    %148 = vdwg.mxu0
    %v149 = vmul.f32 %v135, 0.35355338
    %v150 = vmul.f32 %v138, 0.35355338
    %v151 = vmul.f32 %v143, 0.35355338
    %v152 = vmul.f32 %v146, 0.35355338
    %v153 = vpack.c.bf16 %v150, %v149
    %v154 = vpack.c.bf16 %v152, %v151
    %v155 = vpack.c.bf16 %v138, %v135
    %v156 = vpack.c.bf16 %v146, %v143
    %158 = vrot.lane.b32.xlu0 %v155, 96
    %v159 = vpop.permute.xlu0 %158
    %vm160 = vcmask 64512
    %v162 = vsel %vm160, %v153, 0
    %v165 = vsel %vm160, %v159, 0
    %167 = vmatprep.subr.bf16.mxu0 0
    %168 = vmatpush1.bf16.xpose.msra.mxu0 %v165
    %169 = vmatprep.subr.bf16.mxu0 0
    %170 = vmatpush1.bf16.xpose.msra.mxu0 0
    %171 = vmatprep.subr.bf16.mxu0 0
    %172 = vmatpush1.bf16.xpose.msra.mxu0 0
    %173 = vmatprep.subr.bf16.mxu0 0
    %174 = vmatpush1.bf16.xpose.msra.mxu0 0
    %175 = vmatprep.subr.bf16.mxu0 0
    %176 = vmatpush1.bf16.xpose.msra.mxu0 0
    %177 = vmatprep.subr.bf16.mxu0 0
    %178 = vmatpush1.bf16.xpose.msra.mxu0 0
    %179 = vmatprep.subr.bf16.mxu0 0
    %180 = vmatpush1.bf16.xpose.msra.mxu0 0
    %181 = vmatprep.subr.bf16.mxu0 0
    %182 = vmatpush1.bf16.xpose.msra.mxu0 0
    %183 = vmatprep.subr.bf16.mxu0 0
    %184 = vmatpush1.bf16.xpose.msra.mxu0 0
    %185 = vmatprep.subr.bf16.mxu0 0
    %186 = vmatpush1.bf16.xpose.msra.mxu0 0
    %187 = vmatprep.subr.bf16.mxu0 0
    %188 = vmatpush1.bf16.xpose.msra.mxu0 0
    %189 = vmatprep.subr.bf16.mxu0 0
    %190 = vmatpush1.bf16.xpose.msra.mxu0 0
    %191 = vmatprep.subr.bf16.mxu0 0
    %192 = vmatpush1.bf16.xpose.msra.mxu0 0
    %193 = vmatprep.subr.bf16.mxu0 0
    %194 = vmatpush1.bf16.xpose.msra.mxu0 0
    %195 = vmatprep.subr.bf16.mxu0 0
    %196 = vmatpush1.bf16.xpose.msra.mxu0 0
    %197 = vmatprep.subr.bf16.mxu0 0
    %198 = vmatpush1.bf16.xpose.msra.mxu0 0
    %199 = vmatprep.mubr.bf16.mxu0 0
    %200 = vmatmul.mubr.bf16.gmra.mrb[0].mxu0 %v162
    %v201 = vpop.f32.mrb[0].mxu0
    %v202 = vadd.f32 0.0, %v201
    %v203 = vpop.f32.mrb[0].mxu0
    %v204 = vpop.f32.mrb[0].mxu0
    %v205 = vadd.f32 0.0, %v204
    %v206 = vpop.f32.mrb[0].mxu0
    %207 = vdwg.mxu0
    %209 = vrot.lane.b32.xlu0 %v156, 96
    %v210 = vpop.permute.xlu0 %209
    %v212 = vsel %vm160, %v154, 0
    %v215 = vsel %vm160, %v210, 0
    %217 = vmatprep.subr.bf16.mxu0 0
    %218 = vmatpush1.bf16.xpose.msra.mxu0 %v215
    %219 = vmatprep.subr.bf16.mxu0 0
    %220 = vmatpush1.bf16.xpose.msra.mxu0 0
    %221 = vmatprep.subr.bf16.mxu0 0
    %222 = vmatpush1.bf16.xpose.msra.mxu0 0
    %223 = vmatprep.subr.bf16.mxu0 0
    %224 = vmatpush1.bf16.xpose.msra.mxu0 0
    %225 = vmatprep.subr.bf16.mxu0 0
    %226 = vmatpush1.bf16.xpose.msra.mxu0 0
    %227 = vmatprep.subr.bf16.mxu0 0
    %228 = vmatpush1.bf16.xpose.msra.mxu0 0
    %229 = vmatprep.subr.bf16.mxu0 0
    %230 = vmatpush1.bf16.xpose.msra.mxu0 0
    %231 = vmatprep.subr.bf16.mxu0 0
    %232 = vmatpush1.bf16.xpose.msra.mxu0 0
    %233 = vmatprep.subr.bf16.mxu0 0
    %234 = vmatpush1.bf16.xpose.msra.mxu0 0
    %235 = vmatprep.subr.bf16.mxu0 0
    %236 = vmatpush1.bf16.xpose.msra.mxu0 0
    %237 = vmatprep.subr.bf16.mxu0 0
    %238 = vmatpush1.bf16.xpose.msra.mxu0 0
    %239 = vmatprep.subr.bf16.mxu0 0
    %240 = vmatpush1.bf16.xpose.msra.mxu0 0
    %241 = vmatprep.subr.bf16.mxu0 0
    %242 = vmatpush1.bf16.xpose.msra.mxu0 0
    %243 = vmatprep.subr.bf16.mxu0 0
    %244 = vmatpush1.bf16.xpose.msra.mxu0 0
    %245 = vmatprep.subr.bf16.mxu0 0
    %246 = vmatpush1.bf16.xpose.msra.mxu0 0
    %247 = vmatprep.subr.bf16.mxu0 0
    %248 = vmatpush1.bf16.xpose.msra.mxu0 0
    %249 = vmatprep.mubr.bf16.mxu0 0
    %250 = vmatmul.mubr.bf16.gmra.mrb[0].mxu0 %v212
    %v251 = vpop.f32.mrb[0].mxu0
    %v252 = vadd.f32 0.0, %v251
    %v253 = vpop.f32.mrb[0].mxu0
    %v254 = vpop.f32.mrb[0].mxu0
    %v255 = vadd.f32 0.0, %v254
    %v256 = vpop.f32.mrb[0].mxu0
    %257 = vdwg.mxu0
    %vm258 = vcmask 130048
    %v259 = vsel %vm258, %v202, -inf
    %260 = vmax.xlane.f32.xlu0 %v259
    %v261 = vpop.xlane.xlu0 %260
    %v262 = vsel %vm258, %v205, -inf
    %263 = vmax.xlane.f32.xlu0 %v262
    %v264 = vpop.xlane.xlu0 %263
    %v265 = vsel %vm258, %v252, -inf
    %266 = vmax.xlane.f32.xlu0 %v265
    %v267 = vpop.xlane.xlu0 %266
    %v268 = vsel %vm258, %v255, -inf
    %269 = vmax.xlane.f32.xlu0 %v268
    %v270 = vpop.xlane.xlu0 %269
    %v271 = vsub.f32 %v202, %v261
    %v272 = vsub.f32 %v205, %v264
    %v273 = vsub.f32 %v252, %v267
    %v274 = vsub.f32 %v255, %v270
    %v275 = vmul.f32 %v271, 1.442695
    %v276 = vpow.pop %v275
    %v277 = vmul.f32 %v272, 1.442695
    %v278 = vpow.pop %v277
    %v279 = vmul.f32 %v273, 1.442695
    %v280 = vpow.pop %v279
    %v281 = vmul.f32 %v274, 1.442695
    %v282 = vpow.pop %v281
    %v283 = vsel %vm258, %v276, 0.0
    %284 = vadd.xlane.f32.xlu0 %v283
    %v285 = vpop.xlane.xlu0 %284
    %v286 = vsel %vm258, %v278, 0.0
    %287 = vadd.xlane.f32.xlu0 %v286
    %v288 = vpop.xlane.xlu0 %287
    %v289 = vsel %vm258, %v280, 0.0
    %290 = vadd.xlane.f32.xlu0 %v289
    %v291 = vpop.xlane.xlu0 %290
    %v292 = vsel %vm258, %v282, 0.0
    %293 = vadd.xlane.f32.xlu0 %v292
    %v294 = vpop.xlane.xlu0 %293
    %v295 = vrcp.pop %v285
    %v296 = vrcp.pop %v288
    %v297 = vrcp.pop %v291
    %v298 = vrcp.pop %v294
    %v299 = vmul.f32 %v276, %v295
    %v300 = vmul.f32 %v278, %v296
    %v301 = vmul.f32 %v280, %v297
    %v302 = vmul.f32 %v282, %v298
    %v303 = vpack.c.bf16 %v300, %v299
    %v304 = vpack.c.bf16 %v302, %v301
    %305 = vrot.lane.b32.xlu0 %v155, 64
    %v306 = vpop.permute.xlu0 %305
    %v309 = vsel %vm258, %v303, 0
    %311 = vmatprep.subr.bf16.mxu0 0
    %312 = vmatpush1.bf16.msra.mxu0 %v306
    %313 = vmatprep.subr.bf16.mxu0 0
    %314 = vmatpush1.bf16.msra.mxu0 0
    %315 = vmatprep.subr.bf16.mxu0 0
    %316 = vmatpush1.bf16.msra.mxu0 0
    %317 = vmatprep.subr.bf16.mxu0 0
    %318 = vmatpush1.bf16.msra.mxu0 0
    %319 = vmatprep.subr.bf16.mxu0 0
    %320 = vmatpush1.bf16.msra.mxu0 0
    %321 = vmatprep.subr.bf16.mxu0 0
    %322 = vmatpush1.bf16.msra.mxu0 0
    %323 = vmatprep.subr.bf16.mxu0 0
    %324 = vmatpush1.bf16.msra.mxu0 0
    %325 = vmatprep.subr.bf16.mxu0 0
    %326 = vmatpush1.bf16.msra.mxu0 0
    %327 = vmatprep.subr.bf16.mxu0 0
    %328 = vmatpush1.bf16.msra.mxu0 0
    %329 = vmatprep.subr.bf16.mxu0 0
    %330 = vmatpush1.bf16.msra.mxu0 0
    %331 = vmatprep.subr.bf16.mxu0 0
    %332 = vmatpush1.bf16.msra.mxu0 0
    %333 = vmatprep.subr.bf16.mxu0 0
    %334 = vmatpush1.bf16.msra.mxu0 0
    %335 = vmatprep.subr.bf16.mxu0 0
    %336 = vmatpush1.bf16.msra.mxu0 0
    %337 = vmatprep.subr.bf16.mxu0 0
    %338 = vmatpush1.bf16.msra.mxu0 0
    %339 = vmatprep.subr.bf16.mxu0 0
    %340 = vmatpush1.bf16.msra.mxu0 0
    %341 = vmatprep.subr.bf16.mxu0 0
    %342 = vmatpush1.bf16.msra.mxu0 0
    %343 = vmatprep.mubr.bf16.mxu0 0
    %344 = vmatmul.mubr.bf16.gmra.mrb[0].mxu0 %v309
    %v345 = vpop.f32.mrb[0].mxu0
    %v346 = vadd.f32 0.0, %v345
    %v347 = vpop.f32.mrb[0].mxu0
    %v348 = vpop.f32.mrb[0].mxu0
    %v349 = vadd.f32 0.0, %v348
    %v350 = vpop.f32.mrb[0].mxu0
    %351 = vdwg.mxu0
    %352 = vrot.lane.b32.xlu0 %v156, 64
    %v353 = vpop.permute.xlu0 %352
    %v356 = vsel %vm258, %v304, 0
    %358 = vmatprep.subr.bf16.mxu0 0
    %359 = vmatpush1.bf16.msra.mxu0 %v353
    %360 = vmatprep.subr.bf16.mxu0 0
    %361 = vmatpush1.bf16.msra.mxu0 0
    %362 = vmatprep.subr.bf16.mxu0 0
    %363 = vmatpush1.bf16.msra.mxu0 0
    %364 = vmatprep.subr.bf16.mxu0 0
    %365 = vmatpush1.bf16.msra.mxu0 0
    %366 = vmatprep.subr.bf16.mxu0 0
    %367 = vmatpush1.bf16.msra.mxu0 0
    %368 = vmatprep.subr.bf16.mxu0 0
    %369 = vmatpush1.bf16.msra.mxu0 0
    %370 = vmatprep.subr.bf16.mxu0 0
    %371 = vmatpush1.bf16.msra.mxu0 0
    %372 = vmatprep.subr.bf16.mxu0 0
    %373 = vmatpush1.bf16.msra.mxu0 0
    %374 = vmatprep.subr.bf16.mxu0 0
    %375 = vmatpush1.bf16.msra.mxu0 0
    %376 = vmatprep.subr.bf16.mxu0 0
    %377 = vmatpush1.bf16.msra.mxu0 0
    %378 = vmatprep.subr.bf16.mxu0 0
    %379 = vmatpush1.bf16.msra.mxu0 0
    %380 = vmatprep.subr.bf16.mxu0 0
    %381 = vmatpush1.bf16.msra.mxu0 0
    %382 = vmatprep.subr.bf16.mxu0 0
    %383 = vmatpush1.bf16.msra.mxu0 0
    %384 = vmatprep.subr.bf16.mxu0 0
    %385 = vmatpush1.bf16.msra.mxu0 0
    %386 = vmatprep.subr.bf16.mxu0 0
    %387 = vmatpush1.bf16.msra.mxu0 0
    %388 = vmatprep.subr.bf16.mxu0 0
    %389 = vmatpush1.bf16.msra.mxu0 0
    %390 = vmatprep.mubr.bf16.mxu0 0
    %391 = vmatmul.mubr.bf16.gmra.mrb[0].mxu0 %v356
    %v392 = vpop.f32.mrb[0].mxu0
    %v393 = vadd.f32 0.0, %v392
    %v394 = vpop.f32.mrb[0].mxu0
    %v395 = vpop.f32.mrb[0].mxu0
    %v396 = vadd.f32 0.0, %v395
    %v397 = vpop.f32.mrb[0].mxu0
    %398 = vdwg.mxu0
    %400 = vrot.lane.b32.xlu0 %v153, 120
    %v401 = vpop.permute.xlu0 %400
    %402 = vrot.lane.b32.xlu0 %v155, 88
    %v403 = vpop.permute.xlu0 %402
    %v405 = vsel %vm160, %v401, 0
    %v408 = vsel %vm160, %v403, 0
    %410 = vmatprep.subr.bf16.mxu0 0
    %411 = vmatpush1.bf16.xpose.msra.mxu0 %v408
    %412 = vmatprep.subr.bf16.mxu0 0
    %413 = vmatpush1.bf16.xpose.msra.mxu0 0
    %414 = vmatprep.subr.bf16.mxu0 0
    %415 = vmatpush1.bf16.xpose.msra.mxu0 0
    %416 = vmatprep.subr.bf16.mxu0 0
    %417 = vmatpush1.bf16.xpose.msra.mxu0 0
    %418 = vmatprep.subr.bf16.mxu0 0
    %419 = vmatpush1.bf16.xpose.msra.mxu0 0
    %420 = vmatprep.subr.bf16.mxu0 0
    %421 = vmatpush1.bf16.xpose.msra.mxu0 0
    %422 = vmatprep.subr.bf16.mxu0 0
    %423 = vmatpush1.bf16.xpose.msra.mxu0 0
    %424 = vmatprep.subr.bf16.mxu0 0
    %425 = vmatpush1.bf16.xpose.msra.mxu0 0
    %426 = vmatprep.subr.bf16.mxu0 0
    %427 = vmatpush1.bf16.xpose.msra.mxu0 0
    %428 = vmatprep.subr.bf16.mxu0 0
    %429 = vmatpush1.bf16.xpose.msra.mxu0 0
    %430 = vmatprep.subr.bf16.mxu0 0
    %431 = vmatpush1.bf16.xpose.msra.mxu0 0
    %432 = vmatprep.subr.bf16.mxu0 0
    %433 = vmatpush1.bf16.xpose.msra.mxu0 0
    %434 = vmatprep.subr.bf16.mxu0 0
    %435 = vmatpush1.bf16.xpose.msra.mxu0 0
    %436 = vmatprep.subr.bf16.mxu0 0
    %437 = vmatpush1.bf16.xpose.msra.mxu0 0
    %438 = vmatprep.subr.bf16.mxu0 0
    %439 = vmatpush1.bf16.xpose.msra.mxu0 0
    %440 = vmatprep.subr.bf16.mxu0 0
    %441 = vmatpush1.bf16.xpose.msra.mxu0 0
    %442 = vmatprep.mubr.bf16.mxu0 0
    %443 = vmatmul.mubr.bf16.gmra.mrb[0].mxu0 %v405
    %v444 = vpop.f32.mrb[0].mxu0
    %v445 = vadd.f32 0.0, %v444
    %v446 = vpop.f32.mrb[0].mxu0
    %v447 = vpop.f32.mrb[0].mxu0
    %v448 = vadd.f32 0.0, %v447
    %v449 = vpop.f32.mrb[0].mxu0
    %450 = vdwg.mxu0
    %452 = vrot.lane.b32.xlu0 %v154, 120
    %v453 = vpop.permute.xlu0 %452
    %454 = vrot.lane.b32.xlu0 %v156, 88
    %v455 = vpop.permute.xlu0 %454
    %v457 = vsel %vm160, %v453, 0
    %v460 = vsel %vm160, %v455, 0
    %462 = vmatprep.subr.bf16.mxu0 0
    %463 = vmatpush1.bf16.xpose.msra.mxu0 %v460
    %464 = vmatprep.subr.bf16.mxu0 0
    %465 = vmatpush1.bf16.xpose.msra.mxu0 0
    %466 = vmatprep.subr.bf16.mxu0 0
    %467 = vmatpush1.bf16.xpose.msra.mxu0 0
    %468 = vmatprep.subr.bf16.mxu0 0
    %469 = vmatpush1.bf16.xpose.msra.mxu0 0
    %470 = vmatprep.subr.bf16.mxu0 0
    %471 = vmatpush1.bf16.xpose.msra.mxu0 0
    %472 = vmatprep.subr.bf16.mxu0 0
    %473 = vmatpush1.bf16.xpose.msra.mxu0 0
    %474 = vmatprep.subr.bf16.mxu0 0
    %475 = vmatpush1.bf16.xpose.msra.mxu0 0
    %476 = vmatprep.subr.bf16.mxu0 0
    %477 = vmatpush1.bf16.xpose.msra.mxu0 0
    %478 = vmatprep.subr.bf16.mxu0 0
    %479 = vmatpush1.bf16.xpose.msra.mxu0 0
    %480 = vmatprep.subr.bf16.mxu0 0
    %481 = vmatpush1.bf16.xpose.msra.mxu0 0
    %482 = vmatprep.subr.bf16.mxu0 0
    %483 = vmatpush1.bf16.xpose.msra.mxu0 0
    %484 = vmatprep.subr.bf16.mxu0 0
    %485 = vmatpush1.bf16.xpose.msra.mxu0 0
    %486 = vmatprep.subr.bf16.mxu0 0
    %487 = vmatpush1.bf16.xpose.msra.mxu0 0
    %488 = vmatprep.subr.bf16.mxu0 0
    %489 = vmatpush1.bf16.xpose.msra.mxu0 0
    %490 = vmatprep.subr.bf16.mxu0 0
    %491 = vmatpush1.bf16.xpose.msra.mxu0 0
    %492 = vmatprep.subr.bf16.mxu0 0
    %493 = vmatpush1.bf16.xpose.msra.mxu0 0
    %494 = vmatprep.mubr.bf16.mxu0 0
    %495 = vmatmul.mubr.bf16.gmra.mrb[0].mxu0 %v457
    %v496 = vpop.f32.mrb[0].mxu0
    %v497 = vadd.f32 0.0, %v496
    %v498 = vpop.f32.mrb[0].mxu0
    %v499 = vpop.f32.mrb[0].mxu0
    %v500 = vadd.f32 0.0, %v499
    %v501 = vpop.f32.mrb[0].mxu0
    %502 = vdwg.mxu0
    %v503 = vsel %vm258, %v445, -inf
    %504 = vmax.xlane.f32.xlu0 %v503
    %v505 = vpop.xlane.xlu0 %504
    %v506 = vsel %vm258, %v448, -inf
    %507 = vmax.xlane.f32.xlu0 %v506
    %v508 = vpop.xlane.xlu0 %507
    %v509 = vsel %vm258, %v497, -inf
    %510 = vmax.xlane.f32.xlu0 %v509
    %v511 = vpop.xlane.xlu0 %510
    %v512 = vsel %vm258, %v500, -inf
    %513 = vmax.xlane.f32.xlu0 %v512
    %v514 = vpop.xlane.xlu0 %513
    %v515 = vsub.f32 %v445, %v505
    %v516 = vsub.f32 %v448, %v508
    %v517 = vsub.f32 %v497, %v511
    %v518 = vsub.f32 %v500, %v514
    %v519 = vmul.f32 %v515, 1.442695
    %v520 = vpow.pop %v519
    %v521 = vmul.f32 %v516, 1.442695
    %v522 = vpow.pop %v521
    %v523 = vmul.f32 %v517, 1.442695
    %v524 = vpow.pop %v523
    %v525 = vmul.f32 %v518, 1.442695
    %v526 = vpow.pop %v525
    %v527 = vsel %vm258, %v520, 0.0
    %528 = vadd.xlane.f32.xlu0 %v527
    %v529 = vpop.xlane.xlu0 %528
    %v530 = vsel %vm258, %v522, 0.0
    %531 = vadd.xlane.f32.xlu0 %v530
    %v532 = vpop.xlane.xlu0 %531
    %v533 = vsel %vm258, %v524, 0.0
    %534 = vadd.xlane.f32.xlu0 %v533
    %v535 = vpop.xlane.xlu0 %534
    %v536 = vsel %vm258, %v526, 0.0
    %537 = vadd.xlane.f32.xlu0 %v536
    %v538 = vpop.xlane.xlu0 %537
    %v539 = vrcp.pop %v529
    %v540 = vrcp.pop %v532
    %v541 = vrcp.pop %v535
    %v542 = vrcp.pop %v538
    %v543 = vmul.f32 %v520, %v539
    %v544 = vmul.f32 %v522, %v540
    %v545 = vmul.f32 %v524, %v541
    %v546 = vmul.f32 %v526, %v542
    %v547 = vpack.c.bf16 %v544, %v543
    %v548 = vpack.c.bf16 %v546, %v545
    %549 = vrot.lane.b32.xlu0 %v155, 56
    %v550 = vpop.permute.xlu0 %549
    %v553 = vsel %vm258, %v547, 0
    %555 = vmatprep.subr.bf16.mxu0 0
    %556 = vmatpush1.bf16.msra.mxu0 %v550
    %557 = vmatprep.subr.bf16.mxu0 0
    %558 = vmatpush1.bf16.msra.mxu0 0
    %559 = vmatprep.subr.bf16.mxu0 0
    %560 = vmatpush1.bf16.msra.mxu0 0
    %561 = vmatprep.subr.bf16.mxu0 0
    %562 = vmatpush1.bf16.msra.mxu0 0
    %563 = vmatprep.subr.bf16.mxu0 0
    %564 = vmatpush1.bf16.msra.mxu0 0
    %565 = vmatprep.subr.bf16.mxu0 0
    %566 = vmatpush1.bf16.msra.mxu0 0
    %567 = vmatprep.subr.bf16.mxu0 0
    %568 = vmatpush1.bf16.msra.mxu0 0
    %569 = vmatprep.subr.bf16.mxu0 0
    %570 = vmatpush1.bf16.msra.mxu0 0
    %571 = vmatprep.subr.bf16.mxu0 0
    %572 = vmatpush1.bf16.msra.mxu0 0
    %573 = vmatprep.subr.bf16.mxu0 0
    %574 = vmatpush1.bf16.msra.mxu0 0
    %575 = vmatprep.subr.bf16.mxu0 0
    %576 = vmatpush1.bf16.msra.mxu0 0
    %577 = vmatprep.subr.bf16.mxu0 0
    %578 = vmatpush1.bf16.msra.mxu0 0
    %579 = vmatprep.subr.bf16.mxu0 0
    %580 = vmatpush1.bf16.msra.mxu0 0
    %581 = vmatprep.subr.bf16.mxu0 0
    %582 = vmatpush1.bf16.msra.mxu0 0
    %583 = vmatprep.subr.bf16.mxu0 0
    %584 = vmatpush1.bf16.msra.mxu0 0
    %585 = vmatprep.subr.bf16.mxu0 0
    %586 = vmatpush1.bf16.msra.mxu0 0
    %587 = vmatprep.mubr.bf16.mxu0 0
    %588 = vmatmul.mubr.bf16.gmra.mrb[0].mxu0 %v553
    %v589 = vpop.f32.mrb[0].mxu0
    %v590 = vadd.f32 0.0, %v589
    %v591 = vpop.f32.mrb[0].mxu0
    %v592 = vpop.f32.mrb[0].mxu0
    %v593 = vadd.f32 0.0, %v592
    %v594 = vpop.f32.mrb[0].mxu0
    %595 = vdwg.mxu0
    %596 = vrot.lane.b32.xlu0 %v156, 56
    %v597 = vpop.permute.xlu0 %596
    %v600 = vsel %vm258, %v548, 0
    %602 = vmatprep.subr.bf16.mxu0 0
    %603 = vmatpush1.bf16.msra.mxu0 %v597
    %604 = vmatprep.subr.bf16.mxu0 0
    %605 = vmatpush1.bf16.msra.mxu0 0
    %606 = vmatprep.subr.bf16.mxu0 0
    %607 = vmatpush1.bf16.msra.mxu0 0
    %608 = vmatprep.subr.bf16.mxu0 0
    %609 = vmatpush1.bf16.msra.mxu0 0
    %610 = vmatprep.subr.bf16.mxu0 0
    %611 = vmatpush1.bf16.msra.mxu0 0
    %612 = vmatprep.subr.bf16.mxu0 0
    %613 = vmatpush1.bf16.msra.mxu0 0
    %614 = vmatprep.subr.bf16.mxu0 0
    %615 = vmatpush1.bf16.msra.mxu0 0
    %616 = vmatprep.subr.bf16.mxu0 0
    %617 = vmatpush1.bf16.msra.mxu0 0
    %618 = vmatprep.subr.bf16.mxu0 0
    %619 = vmatpush1.bf16.msra.mxu0 0
    %620 = vmatprep.subr.bf16.mxu0 0
    %621 = vmatpush1.bf16.msra.mxu0 0
    %622 = vmatprep.subr.bf16.mxu0 0
    %623 = vmatpush1.bf16.msra.mxu0 0
    %624 = vmatprep.subr.bf16.mxu0 0
    %625 = vmatpush1.bf16.msra.mxu0 0
    %626 = vmatprep.subr.bf16.mxu0 0
    %627 = vmatpush1.bf16.msra.mxu0 0
    %628 = vmatprep.subr.bf16.mxu0 0
    %629 = vmatpush1.bf16.msra.mxu0 0
    %630 = vmatprep.subr.bf16.mxu0 0
    %631 = vmatpush1.bf16.msra.mxu0 0
    %632 = vmatprep.subr.bf16.mxu0 0
    %633 = vmatpush1.bf16.msra.mxu0 0
    %634 = vmatprep.mubr.bf16.mxu0 0
    %635 = vmatmul.mubr.bf16.gmra.mrb[0].mxu0 %v600
    %v636 = vpop.f32.mrb[0].mxu0
    %v637 = vadd.f32 0.0, %v636
    %v638 = vpop.f32.mrb[0].mxu0
    %v639 = vpop.f32.mrb[0].mxu0
    %v640 = vadd.f32 0.0, %v639
    %v641 = vpop.f32.mrb[0].mxu0
    %642 = vdwg.mxu0
    %643 = vrot.lane.b32.xlu0 %v153, 112
    %v644 = vpop.permute.xlu0 %643
    %645 = vrot.lane.b32.xlu0 %v155, 80
    %v646 = vpop.permute.xlu0 %645
    %v648 = vsel %vm160, %v644, 0
    %v651 = vsel %vm160, %v646, 0
    %653 = vmatprep.subr.bf16.mxu0 0
    %654 = vmatpush1.bf16.xpose.msra.mxu0 %v651
    %655 = vmatprep.subr.bf16.mxu0 0
    %656 = vmatpush1.bf16.xpose.msra.mxu0 0
    %657 = vmatprep.subr.bf16.mxu0 0
    %658 = vmatpush1.bf16.xpose.msra.mxu0 0
    %659 = vmatprep.subr.bf16.mxu0 0
    %660 = vmatpush1.bf16.xpose.msra.mxu0 0
    %661 = vmatprep.subr.bf16.mxu0 0
    %662 = vmatpush1.bf16.xpose.msra.mxu0 0
    %663 = vmatprep.subr.bf16.mxu0 0
    %664 = vmatpush1.bf16.xpose.msra.mxu0 0
    %665 = vmatprep.subr.bf16.mxu0 0
    %666 = vmatpush1.bf16.xpose.msra.mxu0 0
    %667 = vmatprep.subr.bf16.mxu0 0
    %668 = vmatpush1.bf16.xpose.msra.mxu0 0
    %669 = vmatprep.subr.bf16.mxu0 0
    %670 = vmatpush1.bf16.xpose.msra.mxu0 0
    %671 = vmatprep.subr.bf16.mxu0 0
    %672 = vmatpush1.bf16.xpose.msra.mxu0 0
    %673 = vmatprep.subr.bf16.mxu0 0
    %674 = vmatpush1.bf16.xpose.msra.mxu0 0
    %675 = vmatprep.subr.bf16.mxu0 0
    %676 = vmatpush1.bf16.xpose.msra.mxu0 0
    %677 = vmatprep.subr.bf16.mxu0 0
    %678 = vmatpush1.bf16.xpose.msra.mxu0 0
    %679 = vmatprep.subr.bf16.mxu0 0
    %680 = vmatpush1.bf16.xpose.msra.mxu0 0
    %681 = vmatprep.subr.bf16.mxu0 0
    %682 = vmatpush1.bf16.xpose.msra.mxu0 0
    %683 = vmatprep.subr.bf16.mxu0 0
    %684 = vmatpush1.bf16.xpose.msra.mxu0 0
    %685 = vmatprep.mubr.bf16.mxu0 0
    %686 = vmatmul.mubr.bf16.gmra.mrb[0].mxu0 %v648
    %v687 = vpop.f32.mrb[0].mxu0
    %v688 = vadd.f32 0.0, %v687
    %v689 = vpop.f32.mrb[0].mxu0
    %v690 = vpop.f32.mrb[0].mxu0
    %v691 = vadd.f32 0.0, %v690
    %v692 = vpop.f32.mrb[0].mxu0
    %693 = vdwg.mxu0
    %694 = vrot.lane.b32.xlu0 %v154, 112
    %v695 = vpop.permute.xlu0 %694
    %696 = vrot.lane.b32.xlu0 %v156, 80
    %v697 = vpop.permute.xlu0 %696
    %v699 = vsel %vm160, %v695, 0
    %v702 = vsel %vm160, %v697, 0
    %704 = vmatprep.subr.bf16.mxu0 0
    %705 = vmatpush1.bf16.xpose.msra.mxu0 %v702
    %706 = vmatprep.subr.bf16.mxu0 0
    %707 = vmatpush1.bf16.xpose.msra.mxu0 0
    %708 = vmatprep.subr.bf16.mxu0 0
    %709 = vmatpush1.bf16.xpose.msra.mxu0 0
    %710 = vmatprep.subr.bf16.mxu0 0
    %711 = vmatpush1.bf16.xpose.msra.mxu0 0
    %712 = vmatprep.subr.bf16.mxu0 0
    %713 = vmatpush1.bf16.xpose.msra.mxu0 0
    %714 = vmatprep.subr.bf16.mxu0 0
    %715 = vmatpush1.bf16.xpose.msra.mxu0 0
    %716 = vmatprep.subr.bf16.mxu0 0
    %717 = vmatpush1.bf16.xpose.msra.mxu0 0
    %718 = vmatprep.subr.bf16.mxu0 0
    %719 = vmatpush1.bf16.xpose.msra.mxu0 0
    %720 = vmatprep.subr.bf16.mxu0 0
    %721 = vmatpush1.bf16.xpose.msra.mxu0 0
    %722 = vmatprep.subr.bf16.mxu0 0
    %723 = vmatpush1.bf16.xpose.msra.mxu0 0
    %724 = vmatprep.subr.bf16.mxu0 0
    %725 = vmatpush1.bf16.xpose.msra.mxu0 0
    %726 = vmatprep.subr.bf16.mxu0 0
    %727 = vmatpush1.bf16.xpose.msra.mxu0 0
    %728 = vmatprep.subr.bf16.mxu0 0
    %729 = vmatpush1.bf16.xpose.msra.mxu0 0
    %730 = vmatprep.subr.bf16.mxu0 0
    %731 = vmatpush1.bf16.xpose.msra.mxu0 0
    %732 = vmatprep.subr.bf16.mxu0 0
    %733 = vmatpush1.bf16.xpose.msra.mxu0 0
    %734 = vmatprep.subr.bf16.mxu0 0
    %735 = vmatpush1.bf16.xpose.msra.mxu0 0
    %736 = vmatprep.mubr.bf16.mxu0 0
    %737 = vmatmul.mubr.bf16.gmra.mrb[0].mxu0 %v699
    %v738 = vpop.f32.mrb[0].mxu0
    %v739 = vadd.f32 0.0, %v738
    %v740 = vpop.f32.mrb[0].mxu0
    %v741 = vpop.f32.mrb[0].mxu0
    %v742 = vadd.f32 0.0, %v741
    %v743 = vpop.f32.mrb[0].mxu0
    %744 = vdwg.mxu0
    %v745 = vsel %vm258, %v688, -inf
    %746 = vmax.xlane.f32.xlu0 %v745
    %v747 = vpop.xlane.xlu0 %746
    %v748 = vsel %vm258, %v691, -inf
    %749 = vmax.xlane.f32.xlu0 %v748
    %v750 = vpop.xlane.xlu0 %749
    %v751 = vsel %vm258, %v739, -inf
    %752 = vmax.xlane.f32.xlu0 %v751
    %v753 = vpop.xlane.xlu0 %752
    %v754 = vsel %vm258, %v742, -inf
    %755 = vmax.xlane.f32.xlu0 %v754
    %v756 = vpop.xlane.xlu0 %755
    %v757 = vsub.f32 %v688, %v747
    %v758 = vsub.f32 %v691, %v750
    %v759 = vsub.f32 %v739, %v753
    %v760 = vsub.f32 %v742, %v756
    %v761 = vmul.f32 %v757, 1.442695
    %v762 = vpow.pop %v761
    %v763 = vmul.f32 %v758, 1.442695
    %v764 = vpow.pop %v763
    %v765 = vmul.f32 %v759, 1.442695
    %v766 = vpow.pop %v765
    %v767 = vmul.f32 %v760, 1.442695
    %v768 = vpow.pop %v767
    %v769 = vsel %vm258, %v762, 0.0
    %770 = vadd.xlane.f32.xlu0 %v769
    %v771 = vpop.xlane.xlu0 %770
    %v772 = vsel %vm258, %v764, 0.0
    %773 = vadd.xlane.f32.xlu0 %v772
    %v774 = vpop.xlane.xlu0 %773
    %v775 = vsel %vm258, %v766, 0.0
    %776 = vadd.xlane.f32.xlu0 %v775
    %v777 = vpop.xlane.xlu0 %776
    %v778 = vsel %vm258, %v768, 0.0
    %779 = vadd.xlane.f32.xlu0 %v778
    %v780 = vpop.xlane.xlu0 %779
    %v781 = vrcp.pop %v771
    %v782 = vrcp.pop %v774
    %v783 = vrcp.pop %v777
    %v784 = vrcp.pop %v780
    %v785 = vmul.f32 %v762, %v781
    %v786 = vmul.f32 %v764, %v782
    %v787 = vmul.f32 %v766, %v783
    %v788 = vmul.f32 %v768, %v784
    %v789 = vpack.c.bf16 %v786, %v785
    %v790 = vpack.c.bf16 %v788, %v787
    %791 = vrot.lane.b32.xlu0 %v155, 48
    %v792 = vpop.permute.xlu0 %791
    %v795 = vsel %vm258, %v789, 0
    %797 = vmatprep.subr.bf16.mxu0 0
    %798 = vmatpush1.bf16.msra.mxu0 %v792
    %799 = vmatprep.subr.bf16.mxu0 0
    %800 = vmatpush1.bf16.msra.mxu0 0
    %801 = vmatprep.subr.bf16.mxu0 0
    %802 = vmatpush1.bf16.msra.mxu0 0
    %803 = vmatprep.subr.bf16.mxu0 0
    %804 = vmatpush1.bf16.msra.mxu0 0
    %805 = vmatprep.subr.bf16.mxu0 0
    %806 = vmatpush1.bf16.msra.mxu0 0
    %807 = vmatprep.subr.bf16.mxu0 0
    %808 = vmatpush1.bf16.msra.mxu0 0
    %809 = vmatprep.subr.bf16.mxu0 0
    %810 = vmatpush1.bf16.msra.mxu0 0
    %811 = vmatprep.subr.bf16.mxu0 0
    %812 = vmatpush1.bf16.msra.mxu0 0
    %813 = vmatprep.subr.bf16.mxu0 0
    %814 = vmatpush1.bf16.msra.mxu0 0
    %815 = vmatprep.subr.bf16.mxu0 0
    %816 = vmatpush1.bf16.msra.mxu0 0
    %817 = vmatprep.subr.bf16.mxu0 0
    %818 = vmatpush1.bf16.msra.mxu0 0
    %819 = vmatprep.subr.bf16.mxu0 0
    %820 = vmatpush1.bf16.msra.mxu0 0
    %821 = vmatprep.subr.bf16.mxu0 0
    %822 = vmatpush1.bf16.msra.mxu0 0
    %823 = vmatprep.subr.bf16.mxu0 0
    %824 = vmatpush1.bf16.msra.mxu0 0
    %825 = vmatprep.subr.bf16.mxu0 0
    %826 = vmatpush1.bf16.msra.mxu0 0
    %827 = vmatprep.subr.bf16.mxu0 0
    %828 = vmatpush1.bf16.msra.mxu0 0
    %829 = vmatprep.mubr.bf16.mxu0 0
    %830 = vmatmul.mubr.bf16.gmra.mrb[0].mxu0 %v795
    %v831 = vpop.f32.mrb[0].mxu0
    %v832 = vadd.f32 0.0, %v831
    %v833 = vpop.f32.mrb[0].mxu0
    %v834 = vpop.f32.mrb[0].mxu0
    %v835 = vadd.f32 0.0, %v834
    %v836 = vpop.f32.mrb[0].mxu0
    %837 = vdwg.mxu0
    %838 = vrot.lane.b32.xlu0 %v156, 48
    %v839 = vpop.permute.xlu0 %838
    %v842 = vsel %vm258, %v790, 0
    %844 = vmatprep.subr.bf16.mxu0 0
    %845 = vmatpush1.bf16.msra.mxu0 %v839
    %846 = vmatprep.subr.bf16.mxu0 0
    %847 = vmatpush1.bf16.msra.mxu0 0
    %848 = vmatprep.subr.bf16.mxu0 0
    %849 = vmatpush1.bf16.msra.mxu0 0
    %850 = vmatprep.subr.bf16.mxu0 0
    %851 = vmatpush1.bf16.msra.mxu0 0
    %852 = vmatprep.subr.bf16.mxu0 0
    %853 = vmatpush1.bf16.msra.mxu0 0
    %854 = vmatprep.subr.bf16.mxu0 0
    %855 = vmatpush1.bf16.msra.mxu0 0
    %856 = vmatprep.subr.bf16.mxu0 0
    %857 = vmatpush1.bf16.msra.mxu0 0
    %858 = vmatprep.subr.bf16.mxu0 0
    %859 = vmatpush1.bf16.msra.mxu0 0
    %860 = vmatprep.subr.bf16.mxu0 0
    %861 = vmatpush1.bf16.msra.mxu0 0
    %862 = vmatprep.subr.bf16.mxu0 0
    %863 = vmatpush1.bf16.msra.mxu0 0
    %864 = vmatprep.subr.bf16.mxu0 0
    %865 = vmatpush1.bf16.msra.mxu0 0
    %866 = vmatprep.subr.bf16.mxu0 0
    %867 = vmatpush1.bf16.msra.mxu0 0
    %868 = vmatprep.subr.bf16.mxu0 0
    %869 = vmatpush1.bf16.msra.mxu0 0
    %870 = vmatprep.subr.bf16.mxu0 0
    %871 = vmatpush1.bf16.msra.mxu0 0
    %872 = vmatprep.subr.bf16.mxu0 0
    %873 = vmatpush1.bf16.msra.mxu0 0
    %874 = vmatprep.subr.bf16.mxu0 0
    %875 = vmatpush1.bf16.msra.mxu0 0
    %876 = vmatprep.mubr.bf16.mxu0 0
    %877 = vmatmul.mubr.bf16.gmra.mrb[0].mxu0 %v842
    %v878 = vpop.f32.mrb[0].mxu0
    %v879 = vadd.f32 0.0, %v878
    %v880 = vpop.f32.mrb[0].mxu0
    %v881 = vpop.f32.mrb[0].mxu0
    %v882 = vadd.f32 0.0, %v881
    %v883 = vpop.f32.mrb[0].mxu0
    %884 = vdwg.mxu0
    %885 = vrot.lane.b32.xlu0 %v153, 104
    %v886 = vpop.permute.xlu0 %885
    %887 = vrot.lane.b32.xlu0 %v155, 72
    %v888 = vpop.permute.xlu0 %887
    %v890 = vsel %vm160, %v886, 0
    %v893 = vsel %vm160, %v888, 0
    %895 = vmatprep.subr.bf16.mxu0 0
    %896 = vmatpush1.bf16.xpose.msra.mxu0 %v893
    %897 = vmatprep.subr.bf16.mxu0 0
    %898 = vmatpush1.bf16.xpose.msra.mxu0 0
    %899 = vmatprep.subr.bf16.mxu0 0
    %900 = vmatpush1.bf16.xpose.msra.mxu0 0
    %901 = vmatprep.subr.bf16.mxu0 0
    %902 = vmatpush1.bf16.xpose.msra.mxu0 0
    %903 = vmatprep.subr.bf16.mxu0 0
    %904 = vmatpush1.bf16.xpose.msra.mxu0 0
    %905 = vmatprep.subr.bf16.mxu0 0
    %906 = vmatpush1.bf16.xpose.msra.mxu0 0
    %907 = vmatprep.subr.bf16.mxu0 0
    %908 = vmatpush1.bf16.xpose.msra.mxu0 0
    %909 = vmatprep.subr.bf16.mxu0 0
    %910 = vmatpush1.bf16.xpose.msra.mxu0 0
    %911 = vmatprep.subr.bf16.mxu0 0
    %912 = vmatpush1.bf16.xpose.msra.mxu0 0
    %913 = vmatprep.subr.bf16.mxu0 0
    %914 = vmatpush1.bf16.xpose.msra.mxu0 0
    %915 = vmatprep.subr.bf16.mxu0 0
    %916 = vmatpush1.bf16.xpose.msra.mxu0 0
    %917 = vmatprep.subr.bf16.mxu0 0
    %918 = vmatpush1.bf16.xpose.msra.mxu0 0
    %919 = vmatprep.subr.bf16.mxu0 0
    %920 = vmatpush1.bf16.xpose.msra.mxu0 0
    %921 = vmatprep.subr.bf16.mxu0 0
    %922 = vmatpush1.bf16.xpose.msra.mxu0 0
    %923 = vmatprep.subr.bf16.mxu0 0
    %924 = vmatpush1.bf16.xpose.msra.mxu0 0
    %925 = vmatprep.subr.bf16.mxu0 0
    %926 = vmatpush1.bf16.xpose.msra.mxu0 0
    %927 = vmatprep.mubr.bf16.mxu0 0
    %928 = vmatmul.mubr.bf16.gmra.mrb[0].mxu0 %v890
    %v929 = vpop.f32.mrb[0].mxu0
    %v930 = vadd.f32 0.0, %v929
    %v931 = vpop.f32.mrb[0].mxu0
    %v932 = vpop.f32.mrb[0].mxu0
    %v933 = vadd.f32 0.0, %v932
    %v934 = vpop.f32.mrb[0].mxu0
    %935 = vdwg.mxu0
    %936 = vrot.lane.b32.xlu0 %v154, 104
    %v937 = vpop.permute.xlu0 %936
    %938 = vrot.lane.b32.xlu0 %v156, 72
    %v939 = vpop.permute.xlu0 %938
    %v941 = vsel %vm160, %v937, 0
    %v944 = vsel %vm160, %v939, 0
    %946 = vmatprep.subr.bf16.mxu0 0
    %947 = vmatpush1.bf16.xpose.msra.mxu0 %v944
    %948 = vmatprep.subr.bf16.mxu0 0
    %949 = vmatpush1.bf16.xpose.msra.mxu0 0
    %950 = vmatprep.subr.bf16.mxu0 0
    %951 = vmatpush1.bf16.xpose.msra.mxu0 0
    %952 = vmatprep.subr.bf16.mxu0 0
    %953 = vmatpush1.bf16.xpose.msra.mxu0 0
    %954 = vmatprep.subr.bf16.mxu0 0
    %955 = vmatpush1.bf16.xpose.msra.mxu0 0
    %956 = vmatprep.subr.bf16.mxu0 0
    %957 = vmatpush1.bf16.xpose.msra.mxu0 0
    %958 = vmatprep.subr.bf16.mxu0 0
    %959 = vmatpush1.bf16.xpose.msra.mxu0 0
    %960 = vmatprep.subr.bf16.mxu0 0
    %961 = vmatpush1.bf16.xpose.msra.mxu0 0
    %962 = vmatprep.subr.bf16.mxu0 0
    %963 = vmatpush1.bf16.xpose.msra.mxu0 0
    %964 = vmatprep.subr.bf16.mxu0 0
    %965 = vmatpush1.bf16.xpose.msra.mxu0 0
    %966 = vmatprep.subr.bf16.mxu0 0
    %967 = vmatpush1.bf16.xpose.msra.mxu0 0
    %968 = vmatprep.subr.bf16.mxu0 0
    %969 = vmatpush1.bf16.xpose.msra.mxu0 0
    %970 = vmatprep.subr.bf16.mxu0 0
    %971 = vmatpush1.bf16.xpose.msra.mxu0 0
    %972 = vmatprep.subr.bf16.mxu0 0
    %973 = vmatpush1.bf16.xpose.msra.mxu0 0
    %974 = vmatprep.subr.bf16.mxu0 0
    %975 = vmatpush1.bf16.xpose.msra.mxu0 0
    %976 = vmatprep.subr.bf16.mxu0 0
    %977 = vmatpush1.bf16.xpose.msra.mxu0 0
    %978 = vmatprep.mubr.bf16.mxu0 0
    %979 = vmatmul.mubr.bf16.gmra.mrb[0].mxu0 %v941
    %v980 = vpop.f32.mrb[0].mxu0
    %v981 = vadd.f32 0.0, %v980
    %v982 = vpop.f32.mrb[0].mxu0
    %v983 = vpop.f32.mrb[0].mxu0
    %v984 = vadd.f32 0.0, %v983
    %v985 = vpop.f32.mrb[0].mxu0
    %986 = vdwg.mxu0
    %v987 = vsel %vm258, %v930, -inf
    %988 = vmax.xlane.f32.xlu0 %v987
    %v989 = vpop.xlane.xlu0 %988
    %v990 = vsel %vm258, %v933, -inf
    %991 = vmax.xlane.f32.xlu0 %v990
    %v992 = vpop.xlane.xlu0 %991
    %v993 = vsel %vm258, %v981, -inf
    %994 = vmax.xlane.f32.xlu0 %v993
    %v995 = vpop.xlane.xlu0 %994
    %v996 = vsel %vm258, %v984, -inf
    %997 = vmax.xlane.f32.xlu0 %v996
    %v998 = vpop.xlane.xlu0 %997
    %v999 = vsub.f32 %v930, %v989
    %v1000 = vsub.f32 %v933, %v992
    %v1001 = vsub.f32 %v981, %v995
    %v1002 = vsub.f32 %v984, %v998
    %v1003 = vmul.f32 %v999, 1.442695
    %v1004 = vpow.pop %v1003
    %v1005 = vmul.f32 %v1000, 1.442695
    %v1006 = vpow.pop %v1005
    %v1007 = vmul.f32 %v1001, 1.442695
    %v1008 = vpow.pop %v1007
    %v1009 = vmul.f32 %v1002, 1.442695
    %v1010 = vpow.pop %v1009
    %v1011 = vsel %vm258, %v1004, 0.0
    %1012 = vadd.xlane.f32.xlu0 %v1011
    %v1013 = vpop.xlane.xlu0 %1012
    %v1014 = vsel %vm258, %v1006, 0.0
    %1015 = vadd.xlane.f32.xlu0 %v1014
    %v1016 = vpop.xlane.xlu0 %1015
    %v1017 = vsel %vm258, %v1008, 0.0
    %1018 = vadd.xlane.f32.xlu0 %v1017
    %v1019 = vpop.xlane.xlu0 %1018
    %v1020 = vsel %vm258, %v1010, 0.0
    %1021 = vadd.xlane.f32.xlu0 %v1020
    %v1022 = vpop.xlane.xlu0 %1021
    %v1023 = vrcp.pop %v1013
    %v1024 = vrcp.pop %v1016
    %v1025 = vrcp.pop %v1019
    %v1026 = vrcp.pop %v1022
    %v1027 = vmul.f32 %v1004, %v1023
    %v1028 = vmul.f32 %v1006, %v1024
    %v1029 = vmul.f32 %v1008, %v1025
    %v1030 = vmul.f32 %v1010, %v1026
    %v1031 = vpack.c.bf16 %v1028, %v1027
    %v1032 = vpack.c.bf16 %v1030, %v1029
    %1033 = vrot.lane.b32.xlu0 %v155, 40
    %v1034 = vpop.permute.xlu0 %1033
    %v1037 = vsel %vm258, %v1031, 0
    %1039 = vmatprep.subr.bf16.mxu0 0
    %1040 = vmatpush1.bf16.msra.mxu0 %v1034
    %1041 = vmatprep.subr.bf16.mxu0 0
    %1042 = vmatpush1.bf16.msra.mxu0 0
    %1043 = vmatprep.subr.bf16.mxu0 0
    %1044 = vmatpush1.bf16.msra.mxu0 0
    %1045 = vmatprep.subr.bf16.mxu0 0
    %1046 = vmatpush1.bf16.msra.mxu0 0
    %1047 = vmatprep.subr.bf16.mxu0 0
    %1048 = vmatpush1.bf16.msra.mxu0 0
    %1049 = vmatprep.subr.bf16.mxu0 0
    %1050 = vmatpush1.bf16.msra.mxu0 0
    %1051 = vmatprep.subr.bf16.mxu0 0
    %1052 = vmatpush1.bf16.msra.mxu0 0
    %1053 = vmatprep.subr.bf16.mxu0 0
    %1054 = vmatpush1.bf16.msra.mxu0 0
    %1055 = vmatprep.subr.bf16.mxu0 0
    %1056 = vmatpush1.bf16.msra.mxu0 0
    %1057 = vmatprep.subr.bf16.mxu0 0
    %1058 = vmatpush1.bf16.msra.mxu0 0
    %1059 = vmatprep.subr.bf16.mxu0 0
    %1060 = vmatpush1.bf16.msra.mxu0 0
    %1061 = vmatprep.subr.bf16.mxu0 0
    %1062 = vmatpush1.bf16.msra.mxu0 0
    %1063 = vmatprep.subr.bf16.mxu0 0
    %1064 = vmatpush1.bf16.msra.mxu0 0
    %1065 = vmatprep.subr.bf16.mxu0 0
    %1066 = vmatpush1.bf16.msra.mxu0 0
    %1067 = vmatprep.subr.bf16.mxu0 0
    %1068 = vmatpush1.bf16.msra.mxu0 0
    %1069 = vmatprep.subr.bf16.mxu0 0
    %1070 = vmatpush1.bf16.msra.mxu0 0
    %1071 = vmatprep.mubr.bf16.mxu0 0
    %1072 = vmatmul.mubr.bf16.gmra.mrb[0].mxu0 %v1037
    %v1073 = vpop.f32.mrb[0].mxu0
    %v1074 = vadd.f32 0.0, %v1073
    %v1075 = vpop.f32.mrb[0].mxu0
    %v1076 = vpop.f32.mrb[0].mxu0
    %v1077 = vadd.f32 0.0, %v1076
    %v1078 = vpop.f32.mrb[0].mxu0
    %1079 = vdwg.mxu0
    %1080 = vrot.lane.b32.xlu0 %v156, 40
    %v1081 = vpop.permute.xlu0 %1080
    %v1084 = vsel %vm258, %v1032, 0
    %1086 = vmatprep.subr.bf16.mxu0 0
    %1087 = vmatpush1.bf16.msra.mxu0 %v1081
    %1088 = vmatprep.subr.bf16.mxu0 0
    %1089 = vmatpush1.bf16.msra.mxu0 0
    %1090 = vmatprep.subr.bf16.mxu0 0
    %1091 = vmatpush1.bf16.msra.mxu0 0
    %1092 = vmatprep.subr.bf16.mxu0 0
    %1093 = vmatpush1.bf16.msra.mxu0 0
    %1094 = vmatprep.subr.bf16.mxu0 0
    %1095 = vmatpush1.bf16.msra.mxu0 0
    %1096 = vmatprep.subr.bf16.mxu0 0
    %1097 = vmatpush1.bf16.msra.mxu0 0
    %1098 = vmatprep.subr.bf16.mxu0 0
    %1099 = vmatpush1.bf16.msra.mxu0 0
    %1100 = vmatprep.subr.bf16.mxu0 0
    %1101 = vmatpush1.bf16.msra.mxu0 0
    %1102 = vmatprep.subr.bf16.mxu0 0
    %1103 = vmatpush1.bf16.msra.mxu0 0
    %1104 = vmatprep.subr.bf16.mxu0 0
    %1105 = vmatpush1.bf16.msra.mxu0 0
    %1106 = vmatprep.subr.bf16.mxu0 0
    %1107 = vmatpush1.bf16.msra.mxu0 0
    %1108 = vmatprep.subr.bf16.mxu0 0
    %1109 = vmatpush1.bf16.msra.mxu0 0
    %1110 = vmatprep.subr.bf16.mxu0 0
    %1111 = vmatpush1.bf16.msra.mxu0 0
    %1112 = vmatprep.subr.bf16.mxu0 0
    %1113 = vmatpush1.bf16.msra.mxu0 0
    %1114 = vmatprep.subr.bf16.mxu0 0
    %1115 = vmatpush1.bf16.msra.mxu0 0
    %1116 = vmatprep.subr.bf16.mxu0 0
    %1117 = vmatpush1.bf16.msra.mxu0 0
    %1118 = vmatprep.mubr.bf16.mxu0 0
    %1119 = vmatmul.mubr.bf16.gmra.mrb[0].mxu0 %v1084
    %v1120 = vpop.f32.mrb[0].mxu0
    %v1121 = vadd.f32 0.0, %v1120
    %v1122 = vpop.f32.mrb[0].mxu0
    %v1123 = vpop.f32.mrb[0].mxu0
    %v1124 = vadd.f32 0.0, %v1123
    %v1125 = vpop.f32.mrb[0].mxu0
    %1126 = vdwg.mxu0
    %1131 = vrot.lane.b32.xlu0 %v590, 8
    %v1132 = vpop.permute.xlu0 %1131
    %1133 = vrot.lane.b32.xlu0 %v593, 8
    %v1134 = vpop.permute.xlu0 %1133
    %1135 = vrot.lane.b32.xlu0 %v637, 8
    %v1136 = vpop.permute.xlu0 %1135
    %1137 = vrot.lane.b32.xlu0 %v640, 8
    %v1138 = vpop.permute.xlu0 %1137
    %1147 = vrot.lane.b32.xlu0 %v832, 16
    %v1148 = vpop.permute.xlu0 %1147
    %1149 = vrot.lane.b32.xlu0 %v835, 16
    %v1150 = vpop.permute.xlu0 %1149
    %1151 = vrot.lane.b32.xlu0 %v879, 16
    %v1152 = vpop.permute.xlu0 %1151
    %1153 = vrot.lane.b32.xlu0 %v882, 16
    %v1154 = vpop.permute.xlu0 %1153
    %1163 = vrot.lane.b32.xlu0 %v1074, 24
    %v1164 = vpop.permute.xlu0 %1163
    %1165 = vrot.lane.b32.xlu0 %v1077, 24
    %v1166 = vpop.permute.xlu0 %1165
    %1167 = vrot.lane.b32.xlu0 %v1121, 24
    %v1168 = vpop.permute.xlu0 %1167
    %1169 = vrot.lane.b32.xlu0 %v1124, 24
    %v1170 = vpop.permute.xlu0 %1169
    %v1175 = vsel %vm160, %v346, %v1132
    %v1176 = vsel %vm160, %v349, %v1134
    %v1177 = vsel %vm160, %v393, %v1136
    %v1178 = vsel %vm160, %v396, %v1138
    %v1179 = vsel %vm258, %v1175, %v1148
    %v1180 = vsel %vm258, %v1176, %v1150
    %v1181 = vsel %vm258, %v1177, %v1152
    %v1182 = vsel %vm258, %v1178, %v1154
    %vm1183 = vcmask 195584
    %v1184 = vsel %vm1183, %v1179, %v1164
    %v1185 = vsel %vm1183, %v1180, %v1166
    %v1186 = vsel %vm1183, %v1181, %v1168
    %v1187 = vsel %vm1183, %v1182, %v1170
    %v1188 = vld [vmem:[%s3] sm:$0xf]
    %v1189 = vld [vmem:[%s3 + $0x4] sm:$0xf]
    %v1190 = vld [vmem:[%s3 + $0x8] sm:$0xf]
    %v1191 = vld [vmem:[%s3 + $0xc] sm:$0xf]
    %v1192 = vpack.c.bf16 %v1185, %v1184
    %v1193 = vpack.c.bf16 %v1187, %v1186
    %v1198 = vunpack.c.l.b16 %v1188
    %v1199 = vunpack.c.l.b16 %v1189
    %v1200 = vunpack.c.l.b16 %v1190
    %v1201 = vunpack.c.l.b16 %v1191
    %v1202 = vpack.c.b16 %v1199, %v1198
    %v1203 = vpack.c.b16 %v1201, %v1200
    %v1207 = vsel %vm93, %v1192, 0
    %v1210 = vsel %vm93, %v1193, 0
    %1212 = vmatprep.subr.bf16.mxu0 0
    %1213 = vmatpush1.bf16.msra.mxu0 %v1202
    %1214 = vmatprep.subr.bf16.mxu0 0
    %1215 = vmatpush1.bf16.msra.mxu0 %v1203
    %1216 = vmatprep.subr.bf16.mxu0 0
    %1217 = vmatpush1.bf16.msra.mxu0 0
    %1218 = vmatprep.subr.bf16.mxu0 0
    %1219 = vmatpush1.bf16.msra.mxu0 0
    %1220 = vmatprep.subr.bf16.mxu0 0
    %1221 = vmatpush1.bf16.msra.mxu0 0
    %1222 = vmatprep.subr.bf16.mxu0 0
    %1223 = vmatpush1.bf16.msra.mxu0 0
    %1224 = vmatprep.subr.bf16.mxu0 0
    %1225 = vmatpush1.bf16.msra.mxu0 0
    %1226 = vmatprep.subr.bf16.mxu0 0
    %1227 = vmatpush1.bf16.msra.mxu0 0
    %1228 = vmatprep.subr.bf16.mxu0 0
    %1229 = vmatpush1.bf16.msra.mxu0 0
    %1230 = vmatprep.subr.bf16.mxu0 0
    %1231 = vmatpush1.bf16.msra.mxu0 0
    %1232 = vmatprep.subr.bf16.mxu0 0
    %1233 = vmatpush1.bf16.msra.mxu0 0
    %1234 = vmatprep.subr.bf16.mxu0 0
    %1235 = vmatpush1.bf16.msra.mxu0 0
    %1236 = vmatprep.subr.bf16.mxu0 0
    %1237 = vmatpush1.bf16.msra.mxu0 0
    %1238 = vmatprep.subr.bf16.mxu0 0
    %1239 = vmatpush1.bf16.msra.mxu0 0
    %1240 = vmatprep.subr.bf16.mxu0 0
    %1241 = vmatpush1.bf16.msra.mxu0 0
    %1242 = vmatprep.subr.bf16.mxu0 0
    %1243 = vmatpush1.bf16.msra.mxu0 0
    %1244 = vmatprep.mubr.bf16.mxu0 0
    %1245 = vmatmul.mubr.bf16.gmra.mrb[0].mxu0 %v1207
    %v1246 = vpop.f32.mrb[0].mxu0
    %v1247 = vadd.f32 0.0, %v1246
    %v1248 = vpop.f32.mrb[0].mxu0
    %v1249 = vpop.f32.mrb[0].mxu0
    %v1250 = vadd.f32 0.0, %v1249
    %v1251 = vpop.f32.mrb[0].mxu0
    %1252 = vmatprep.mubr.bf16.mxu0 0
    %1253 = vmatmul.mubr.bf16.gmra.mrb[0].mxu0 %v1210
    %v1254 = vpop.f32.mrb[0].mxu0
    %v1255 = vadd.f32 0.0, %v1254
    %v1256 = vpop.f32.mrb[0].mxu0
    %v1257 = vpop.f32.mrb[0].mxu0
    %v1258 = vadd.f32 0.0, %v1257
    %v1259 = vpop.f32.mrb[0].mxu0
    %1260 = vdwg.mxu0
    %v1261 = vadd.f32 %v64, %v1247
    %v1262 = vadd.f32 %v65, %v1250
    %v1263 = vadd.f32 %v66, %v1255
    %v1264 = vadd.f32 %v67, %v1258
    %v1265 = vld [vmem:[%s4] sm:$0x1]
    %v1267 = vlaneseq
    %v1268 = vshrl.u32 %v1267, 7
    %v1269 = vsub.s32 0, %v1268
    %v1270 = vrot.slane %v1265, %v1269
    %v1272 = vadd.f32 %v1261, %v1270
    %v1273 = vadd.f32 %v1262, %v1270
    %v1274 = vadd.f32 %v1263, %v1270
    %v1275 = vadd.f32 %v1264, %v1270
    %v1276 = vsel %vm93, %v1272, 0.0
    %v1277 = vsel %vm93, %v1273, 0.0
    %v1278 = vadd.f32 %v1276, %v1277
    %v1279 = vsel %vm93, %v1274, 0.0
    %v1280 = vadd.f32 %v1278, %v1279
    %v1281 = vsel %vm93, %v1275, 0.0
    %v1282 = vadd.f32 %v1280, %v1281
    %v1283 = vrot.slane %v1282, 4
    %v1284 = vadd.f32 %v1282, %v1283
    %v1285 = vrot.slane %v1284, 2
    %v1286 = vadd.f32 %v1284, %v1285
    %v1287 = vrot.slane %v1286, 1
    %v1288 = vadd.f32 %v1286, %v1287
    %v1289 = vrcp.pop 32.0
    %v1290 = vmul.f32 %v1288, %v1289
    %v1291 = vsub.f32 %v1272, %v1290
    %v1292 = vsub.f32 %v1273, %v1290
    %v1293 = vsub.f32 %v1274, %v1290
    %v1294 = vsub.f32 %v1275, %v1290
    %v1295 = vmul.f32 %v1291, %v1291
    %v1296 = vmul.f32 %v1292, %v1292
    %v1297 = vmul.f32 %v1293, %v1293
    %v1298 = vmul.f32 %v1294, %v1294
    %v1299 = vsel %vm93, %v1295, 0.0
    %v1300 = vsel %vm93, %v1296, 0.0
    %v1301 = vadd.f32 %v1299, %v1300
    %v1302 = vsel %vm93, %v1297, 0.0
    %v1303 = vadd.f32 %v1301, %v1302
    %v1304 = vsel %vm93, %v1298, 0.0
    %v1305 = vadd.f32 %v1303, %v1304
    %v1306 = vrot.slane %v1305, 4
    %v1307 = vadd.f32 %v1305, %v1306
    %v1308 = vrot.slane %v1307, 2
    %v1309 = vadd.f32 %v1307, %v1308
    %v1310 = vrot.slane %v1309, 1
    %v1311 = vadd.f32 %v1309, %v1310
    %v1312 = vmul.f32 %v1311, %v1289
    %v1313 = vadd.f32 %v1312, 1e-05
    %v1314 = vrsqrt.pop %v1313
    %v1315 = vld [vmem:[%s5] sm:$0x1]
    %v1316 = vmul.f32 %v1314, %v1315
    %v1317 = vlaneseq
    %v1318 = vshrl.u32 %v1317, 7
    %v1319 = vsub.s32 0, %v1318
    %v1320 = vrot.slane %v1316, %v1319
    %v1321 = vmul.f32 %v1291, %v1320
    %v1322 = vmul.f32 %v1292, %v1320
    %v1323 = vmul.f32 %v1293, %v1320
    %v1324 = vmul.f32 %v1294, %v1320
    %v1325 = vld [vmem:[%s6] sm:$0x1]
    %v1327 = vlaneseq
    %v1328 = vshrl.u32 %v1327, 7
    %v1329 = vsub.s32 0, %v1328
    %v1330 = vrot.slane %v1325, %v1329
    %v1332 = vadd.f32 %v1321, %v1330
    %v1333 = vadd.f32 %v1322, %v1330
    %v1334 = vadd.f32 %v1323, %v1330
    %v1335 = vadd.f32 %v1324, %v1330
    %v1336 = vld [vmem:[%s7] sm:$0xf]
    %v1337 = vld [vmem:[%s7 + $0x4] sm:$0xf]
    %v1338 = vld [vmem:[%s7 + $0x8] sm:$0xf]
    %v1339 = vld [vmem:[%s7 + $0xc] sm:$0xf]
    %v1340 = vpack.c.bf16 %v1333, %v1332
    %v1341 = vpack.c.bf16 %v1335, %v1334
    %v1342 = vld [vmem:[%s8] sm:$0x1]
    %v1344 = vlaneseq
    %v1345 = vshrl.u32 %v1344, 7
    %v1346 = vsub.s32 0, %v1345
    %v1347 = vrot.slane %v1342, %v1346
    %v1353 = vunpack.c.l.b16 %v1336
    %v1354 = vunpack.c.l.b16 %v1337
    %v1355 = vunpack.c.l.b16 %v1338
    %v1356 = vunpack.c.l.b16 %v1339
    %v1357 = vpack.c.b16 %v1354, %v1353
    %v1358 = vpack.c.b16 %v1356, %v1355
    %v1362 = vsel %vm93, %v1340, 0
    %v1365 = vsel %vm93, %v1341, 0
    %1367 = vmatprep.subr.bf16.mxu0 0
    %1368 = vmatpush1.bf16.msra.mxu0 %v1357
    %1369 = vmatprep.subr.bf16.mxu0 0
    %1370 = vmatpush1.bf16.msra.mxu0 %v1358
    %1371 = vmatprep.subr.bf16.mxu0 0
    %1372 = vmatpush1.bf16.msra.mxu0 0
    %1373 = vmatprep.subr.bf16.mxu0 0
    %1374 = vmatpush1.bf16.msra.mxu0 0
    %1375 = vmatprep.subr.bf16.mxu0 0
    %1376 = vmatpush1.bf16.msra.mxu0 0
    %1377 = vmatprep.subr.bf16.mxu0 0
    %1378 = vmatpush1.bf16.msra.mxu0 0
    %1379 = vmatprep.subr.bf16.mxu0 0
    %1380 = vmatpush1.bf16.msra.mxu0 0
    %1381 = vmatprep.subr.bf16.mxu0 0
    %1382 = vmatpush1.bf16.msra.mxu0 0
    %1383 = vmatprep.subr.bf16.mxu0 0
    %1384 = vmatpush1.bf16.msra.mxu0 0
    %1385 = vmatprep.subr.bf16.mxu0 0
    %1386 = vmatpush1.bf16.msra.mxu0 0
    %1387 = vmatprep.subr.bf16.mxu0 0
    %1388 = vmatpush1.bf16.msra.mxu0 0
    %1389 = vmatprep.subr.bf16.mxu0 0
    %1390 = vmatpush1.bf16.msra.mxu0 0
    %1391 = vmatprep.subr.bf16.mxu0 0
    %1392 = vmatpush1.bf16.msra.mxu0 0
    %1393 = vmatprep.subr.bf16.mxu0 0
    %1394 = vmatpush1.bf16.msra.mxu0 0
    %1395 = vmatprep.subr.bf16.mxu0 0
    %1396 = vmatpush1.bf16.msra.mxu0 0
    %1397 = vmatprep.subr.bf16.mxu0 0
    %1398 = vmatpush1.bf16.msra.mxu0 0
    %1399 = vmatprep.mubr.bf16.mxu0 0
    %1400 = vmatmul.mubr.bf16.gmra.mrb[0].mxu0 %v1362
    %v1401 = vpop.f32.mrb[0].mxu0
    %v1402 = vadd.f32 %v1347, %v1401
    %v1403 = vpop.f32.mrb[0].mxu0
    %v1404 = vpop.f32.mrb[0].mxu0
    %v1405 = vadd.f32 %v1347, %v1404
    %v1406 = vpop.f32.mrb[0].mxu0
    %1407 = vmatprep.mubr.bf16.mxu0 0
    %1408 = vmatmul.mubr.bf16.gmra.mrb[0].mxu0 %v1365
    %v1409 = vpop.f32.mrb[0].mxu0
    %v1410 = vadd.f32 %v1347, %v1409
    %v1411 = vpop.f32.mrb[0].mxu0
    %v1412 = vpop.f32.mrb[0].mxu0
    %v1413 = vadd.f32 %v1347, %v1412
    %v1414 = vpop.f32.mrb[0].mxu0
    %1415 = vdwg.mxu0
    %v1416 = vmul.f32 %v1402, %v1402
    %v1417 = vmul.f32 %v1405, %v1405
    %v1418 = vmul.f32 %v1410, %v1410
    %v1419 = vmul.f32 %v1413, %v1413
    %v1420 = vmul.f32 %v1402, %v1416
    %v1421 = vmul.f32 %v1405, %v1417
    %v1422 = vmul.f32 %v1410, %v1418
    %v1423 = vmul.f32 %v1413, %v1419
    %v1424 = vmul.f32 %v1420, 0.044715
    %v1425 = vmul.f32 %v1421, 0.044715
    %v1426 = vmul.f32 %v1422, 0.044715
    %v1427 = vmul.f32 %v1423, 0.044715
    %v1428 = vadd.f32 %v1402, %v1424
    %v1429 = vadd.f32 %v1405, %v1425
    %v1430 = vadd.f32 %v1410, %v1426
    %v1431 = vadd.f32 %v1413, %v1427
    %v1432 = vmul.f32 %v1428, 0.7978846
    %v1433 = vmul.f32 %v1429, 0.7978846
    %v1434 = vmul.f32 %v1430, 0.7978846
    %v1435 = vmul.f32 %v1431, 0.7978846
    %v1436 = vtanh.pop %v1432
    %v1437 = vtanh.pop %v1433
    %v1438 = vtanh.pop %v1434
    %v1439 = vtanh.pop %v1435
    %v1440 = vadd.f32 %v1436, 1.0
    %v1441 = vadd.f32 %v1437, 1.0
    %v1442 = vadd.f32 %v1438, 1.0
    %v1443 = vadd.f32 %v1439, 1.0
    %v1444 = vmul.f32 %v1440, 0.5
    %v1445 = vmul.f32 %v1441, 0.5
    %v1446 = vmul.f32 %v1442, 0.5
    %v1447 = vmul.f32 %v1443, 0.5
    %v1448 = vmul.f32 %v1402, %v1444
    %v1449 = vmul.f32 %v1405, %v1445
    %v1450 = vmul.f32 %v1410, %v1446
    %v1451 = vmul.f32 %v1413, %v1447
    %v1452 = vld [vmem:[%s9] sm:$0xf]
    %v1453 = vld [vmem:[%s9 + $0x4] sm:$0xf]
    %v1454 = vld [vmem:[%s9 + $0x8] sm:$0xf]
    %v1455 = vld [vmem:[%s9 + $0xc] sm:$0xf]
    %v1456 = vld [vmem:[%s9 + $0x10] sm:$0xf]
    %v1457 = vld [vmem:[%s9 + $0x14] sm:$0xf]
    %v1458 = vld [vmem:[%s9 + $0x18] sm:$0xf]
    %v1459 = vld [vmem:[%s9 + $0x1c] sm:$0xf]
    %v1460 = vpack.c.bf16 %v1449, %v1448
    %v1461 = vpack.c.bf16 %v1451, %v1450
    %v1470 = vunpack.c.l.b16 %v1452
    %v1471 = vunpack.c.l.b16 %v1453
    %v1472 = vunpack.c.l.b16 %v1454
    %v1473 = vunpack.c.l.b16 %v1455
    %v1474 = vunpack.c.l.b16 %v1456
    %v1475 = vunpack.c.l.b16 %v1457
    %v1476 = vunpack.c.l.b16 %v1458
    %v1477 = vunpack.c.l.b16 %v1459
    %v1478 = vpack.c.b16 %v1471, %v1470
    %v1479 = vpack.c.b16 %v1473, %v1472
    %v1480 = vpack.c.b16 %v1475, %v1474
    %v1481 = vpack.c.b16 %v1477, %v1476
    %vm1486 = vcmask 523264
    %v1488 = vsel %vm1486, %v1460, 0
    %v1491 = vsel %vm1486, %v1461, 0
    %1493 = vmatprep.subr.bf16.mxu0 0
    %1494 = vmatpush1.bf16.msra.mxu0 %v1478
    %1495 = vmatprep.subr.bf16.mxu0 0
    %1496 = vmatpush1.bf16.msra.mxu0 %v1479
    %1497 = vmatprep.subr.bf16.mxu0 0
    %1498 = vmatpush1.bf16.msra.mxu0 %v1480
    %1499 = vmatprep.subr.bf16.mxu0 0
    %1500 = vmatpush1.bf16.msra.mxu0 %v1481
    %1501 = vmatprep.subr.bf16.mxu0 0
    %1502 = vmatpush1.bf16.msra.mxu0 0
    %1503 = vmatprep.subr.bf16.mxu0 0
    %1504 = vmatpush1.bf16.msra.mxu0 0
    %1505 = vmatprep.subr.bf16.mxu0 0
    %1506 = vmatpush1.bf16.msra.mxu0 0
    %1507 = vmatprep.subr.bf16.mxu0 0
    %1508 = vmatpush1.bf16.msra.mxu0 0
    %1509 = vmatprep.subr.bf16.mxu0 0
    %1510 = vmatpush1.bf16.msra.mxu0 0
    %1511 = vmatprep.subr.bf16.mxu0 0
    %1512 = vmatpush1.bf16.msra.mxu0 0
    %1513 = vmatprep.subr.bf16.mxu0 0
    %1514 = vmatpush1.bf16.msra.mxu0 0
    %1515 = vmatprep.subr.bf16.mxu0 0
    %1516 = vmatpush1.bf16.msra.mxu0 0
    %1517 = vmatprep.subr.bf16.mxu0 0
    %1518 = vmatpush1.bf16.msra.mxu0 0
    %1519 = vmatprep.subr.bf16.mxu0 0
    %1520 = vmatpush1.bf16.msra.mxu0 0
    %1521 = vmatprep.subr.bf16.mxu0 0
    %1522 = vmatpush1.bf16.msra.mxu0 0
    %1523 = vmatprep.subr.bf16.mxu0 0
    %1524 = vmatpush1.bf16.msra.mxu0 0
    %1525 = vmatprep.mubr.bf16.mxu0 0
    %1526 = vmatmul.mubr.bf16.gmra.mrb[0].mxu0 %v1488
    %v1527 = vpop.f32.mrb[0].mxu0
    %v1528 = vadd.f32 0.0, %v1527
    %v1529 = vpop.f32.mrb[0].mxu0
    %v1530 = vpop.f32.mrb[0].mxu0
    %v1531 = vadd.f32 0.0, %v1530
    %v1532 = vpop.f32.mrb[0].mxu0
    %1533 = vmatprep.mubr.bf16.mxu0 0
    %1534 = vmatmul.mubr.bf16.gmra.mrb[0].mxu0 %v1491
    %v1535 = vpop.f32.mrb[0].mxu0
    %v1536 = vadd.f32 0.0, %v1535
    %v1537 = vpop.f32.mrb[0].mxu0
    %v1538 = vpop.f32.mrb[0].mxu0
    %v1539 = vadd.f32 0.0, %v1538
    %v1540 = vpop.f32.mrb[0].mxu0
    %1541 = vdwg.mxu0
    %v1542 = vadd.f32 %v1332, %v1528
    %v1543 = vadd.f32 %v1333, %v1531
    %v1544 = vadd.f32 %v1334, %v1536
    %v1545 = vadd.f32 %v1335, %v1539
    %v1546 = vld [vmem:[%s10] sm:$0x1]
    %v1548 = vlaneseq
    %v1549 = vshrl.u32 %v1548, 7
    %v1550 = vsub.s32 0, %v1549
    %v1551 = vrot.slane %v1546, %v1550
    %v1553 = vadd.f32 %v1542, %v1551
    %v1554 = vadd.f32 %v1543, %v1551
    %v1555 = vadd.f32 %v1544, %v1551
    %v1556 = vadd.f32 %v1545, %v1551
    %v1557 = vsel %vm93, %v1553, 0.0
    %v1558 = vsel %vm93, %v1554, 0.0
    %v1559 = vadd.f32 %v1557, %v1558
    %v1560 = vsel %vm93, %v1555, 0.0
    %v1561 = vadd.f32 %v1559, %v1560
    %v1562 = vsel %vm93, %v1556, 0.0
    %v1563 = vadd.f32 %v1561, %v1562
    %v1564 = vrot.slane %v1563, 4
    %v1565 = vadd.f32 %v1563, %v1564
    %v1566 = vrot.slane %v1565, 2
    %v1567 = vadd.f32 %v1565, %v1566
    %v1568 = vrot.slane %v1567, 1
    %v1569 = vadd.f32 %v1567, %v1568
    %v1570 = vmul.f32 %v1569, %v1289
    %v1571 = vsub.f32 %v1553, %v1570
    %v1572 = vsub.f32 %v1554, %v1570
    %v1573 = vsub.f32 %v1555, %v1570
    %v1574 = vsub.f32 %v1556, %v1570
    %v1575 = vmul.f32 %v1571, %v1571
    %v1576 = vmul.f32 %v1572, %v1572
    %v1577 = vmul.f32 %v1573, %v1573
    %v1578 = vmul.f32 %v1574, %v1574
    %v1579 = vsel %vm93, %v1575, 0.0
    %v1580 = vsel %vm93, %v1576, 0.0
    %v1581 = vadd.f32 %v1579, %v1580
    %v1582 = vsel %vm93, %v1577, 0.0
    %v1583 = vadd.f32 %v1581, %v1582
    %v1584 = vsel %vm93, %v1578, 0.0
    %v1585 = vadd.f32 %v1583, %v1584
    %v1586 = vrot.slane %v1585, 4
    %v1587 = vadd.f32 %v1585, %v1586
    %v1588 = vrot.slane %v1587, 2
    %v1589 = vadd.f32 %v1587, %v1588
    %v1590 = vrot.slane %v1589, 1
    %v1591 = vadd.f32 %v1589, %v1590
    %v1592 = vmul.f32 %v1591, %v1289
    %v1593 = vadd.f32 %v1592, 1e-05
    %v1594 = vrsqrt.pop %v1593
    %v1595 = vld [vmem:[%s11] sm:$0x1]
    %v1596 = vmul.f32 %v1594, %v1595
    %v1597 = vlaneseq
    %v1598 = vshrl.u32 %v1597, 7
    %v1599 = vsub.s32 0, %v1598
    %v1600 = vrot.slane %v1596, %v1599
    %v1601 = vmul.f32 %v1571, %v1600
    %v1602 = vmul.f32 %v1572, %v1600
    %v1603 = vmul.f32 %v1573, %v1600
    %v1604 = vmul.f32 %v1574, %v1600
    %v1605 = vld [vmem:[%s12] sm:$0x1]
    %v1607 = vlaneseq
    %v1608 = vshrl.u32 %v1607, 7
    %v1609 = vsub.s32 0, %v1608
    %v1610 = vrot.slane %v1605, %v1609
    %v1612 = vadd.f32 %v1601, %v1610
    %v1613 = vadd.f32 %v1602, %v1610
    %v1614 = vadd.f32 %v1603, %v1610
    %v1615 = vadd.f32 %v1604, %v1610
    %v1616 = vld [vmem:[%s13] sm:$0xf]
    %v1617 = vld [vmem:[%s13 + $0x4] sm:$0xf]
    %v1618 = vld [vmem:[%s13 + $0x8] sm:$0xf]
    %v1619 = vld [vmem:[%s13 + $0xc] sm:$0xf]
    %v1620 = vpack.c.bf16 %v1613, %v1612
    %v1621 = vpack.c.bf16 %v1615, %v1614
    %v1622 = vld [vmem:[%s14] sm:$0x1]
    %v1624 = vlaneseq
    %v1625 = vshrl.u32 %v1624, 7
    %v1626 = vsub.s32 0, %v1625
    %v1627 = vrot.slane %v1622, %v1626
    %v1633 = vunpack.c.l.b16 %v1616
    %v1634 = vunpack.c.l.b16 %v1617
    %v1635 = vunpack.c.l.b16 %v1618
    %v1636 = vunpack.c.l.b16 %v1619
    %v1637 = vpack.c.b16 %v1634, %v1633
    %v1638 = vpack.c.b16 %v1636, %v1635
    %v1642 = vsel %vm93, %v1620, 0
    %v1645 = vsel %vm93, %v1621, 0
    %1647 = vmatprep.subr.bf16.mxu0 0
    %1648 = vmatpush1.bf16.msra.mxu0 %v1637
    %1649 = vmatprep.subr.bf16.mxu0 0
    %1650 = vmatpush1.bf16.msra.mxu0 %v1638
    %1651 = vmatprep.subr.bf16.mxu0 0
    %1652 = vmatpush1.bf16.msra.mxu0 0
    %1653 = vmatprep.subr.bf16.mxu0 0
    %1654 = vmatpush1.bf16.msra.mxu0 0
    %1655 = vmatprep.subr.bf16.mxu0 0
    %1656 = vmatpush1.bf16.msra.mxu0 0
    %1657 = vmatprep.subr.bf16.mxu0 0
    %1658 = vmatpush1.bf16.msra.mxu0 0
    %1659 = vmatprep.subr.bf16.mxu0 0
    %1660 = vmatpush1.bf16.msra.mxu0 0
    %1661 = vmatprep.subr.bf16.mxu0 0
    %1662 = vmatpush1.bf16.msra.mxu0 0
    %1663 = vmatprep.subr.bf16.mxu0 0
    %1664 = vmatpush1.bf16.msra.mxu0 0
    %1665 = vmatprep.subr.bf16.mxu0 0
    %1666 = vmatpush1.bf16.msra.mxu0 0
    %1667 = vmatprep.subr.bf16.mxu0 0
    %1668 = vmatpush1.bf16.msra.mxu0 0
    %1669 = vmatprep.subr.bf16.mxu0 0
    %1670 = vmatpush1.bf16.msra.mxu0 0
    %1671 = vmatprep.subr.bf16.mxu0 0
    %1672 = vmatpush1.bf16.msra.mxu0 0
    %1673 = vmatprep.subr.bf16.mxu0 0
    %1674 = vmatpush1.bf16.msra.mxu0 0
    %1675 = vmatprep.subr.bf16.mxu0 0
    %1676 = vmatpush1.bf16.msra.mxu0 0
    %1677 = vmatprep.subr.bf16.mxu0 0
    %1678 = vmatpush1.bf16.msra.mxu0 0
    %1679 = vmatprep.mubr.bf16.mxu0 0
    %1680 = vmatmul.mubr.bf16.gmra.mrb[0].mxu0 %v1642
    %v1681 = vpop.f32.mrb[0].mxu0
    %v1682 = vadd.f32 %v1627, %v1681
    %v1683 = vpop.f32.mrb[0].mxu0
    %v1684 = vpop.f32.mrb[0].mxu0
    %v1685 = vadd.f32 %v1627, %v1684
    %v1686 = vpop.f32.mrb[0].mxu0
    %1687 = vmatprep.mubr.bf16.mxu0 0
    %1688 = vmatmul.mubr.bf16.gmra.mrb[0].mxu0 %v1645
    %v1689 = vpop.f32.mrb[0].mxu0
    %v1690 = vadd.f32 %v1627, %v1689
    %v1691 = vpop.f32.mrb[0].mxu0
    %v1692 = vpop.f32.mrb[0].mxu0
    %v1693 = vadd.f32 %v1627, %v1692
    %v1694 = vpop.f32.mrb[0].mxu0
    %1695 = vdwg.mxu0
    %v1696 = vmul.f32 %v1612, %v1612
    %v1697 = vmul.f32 %v1613, %v1613
    %v1698 = vmul.f32 %v1614, %v1614
    %v1699 = vmul.f32 %v1615, %v1615
    %v1700 = vmul.f32 %v1612, %v1696
    %v1701 = vmul.f32 %v1613, %v1697
    %v1702 = vmul.f32 %v1614, %v1698
    %v1703 = vmul.f32 %v1615, %v1699
    %v1704 = vmul.f32 %v1700, 0.044715
    %v1705 = vmul.f32 %v1701, 0.044715
    %v1706 = vmul.f32 %v1702, 0.044715
    %v1707 = vmul.f32 %v1703, 0.044715
    %v1708 = vadd.f32 %v1612, %v1704
    %v1709 = vadd.f32 %v1613, %v1705
    %v1710 = vadd.f32 %v1614, %v1706
    %v1711 = vadd.f32 %v1615, %v1707
    %v1712 = vmul.f32 %v1708, 0.7978846
    %v1713 = vmul.f32 %v1709, 0.7978846
    %v1714 = vmul.f32 %v1710, 0.7978846
    %v1715 = vmul.f32 %v1711, 0.7978846
    %v1716 = vtanh.pop %v1712
    %v1717 = vtanh.pop %v1713
    %v1718 = vtanh.pop %v1714
    %v1719 = vtanh.pop %v1715
    %v1720 = vadd.f32 %v1716, 1.0
    %v1721 = vadd.f32 %v1717, 1.0
    %v1722 = vadd.f32 %v1718, 1.0
    %v1723 = vadd.f32 %v1719, 1.0
    %v1724 = vmul.f32 %v1720, 0.5
    %v1725 = vmul.f32 %v1721, 0.5
    %v1726 = vmul.f32 %v1722, 0.5
    %v1727 = vmul.f32 %v1723, 0.5
    %v1728 = vmul.f32 %v1612, %v1724
    %v1729 = vmul.f32 %v1613, %v1725
    %v1730 = vmul.f32 %v1614, %v1726
    %v1731 = vmul.f32 %v1615, %v1727
    %vm1736 = vcmask 1040384
    %v1737 = vrot.slane %v1728, 7
    %v1738 = vrot.slane %v1729, 7
    %v1739 = vsel %vm1736, %v1737, %v1738
    %v1740 = vrot.slane %v1730, 7
    %v1741 = vrot.slane %v1731, 7
    %v1742 = vsel %vm1736, %v1740, %v1741
    %v1747 = vsel %vm1736, 0.0, %v1737
    %v1748 = vsel %vm1736, 0.0, %v1740
    %vm1749 = vcmask 1046528
    %v1750 = vrot.slane %v1728, 1
    %v1751 = vrot.slane %v1729, 1
    %v1752 = vsel %vm1749, %v1750, %v1751
    %v1753 = vrot.slane %v1730, 1
    %v1754 = vrot.slane %v1731, 1
    %v1755 = vsel %vm1749, %v1753, %v1754
    %v1758 = vsel %vm1749, %v1751, 0.0
    %v1759 = vsel %vm1749, %v1754, 0.0
    %1760 = vrot.lane.b32.xlu0 %v1728, 32
    %v1761 = vpop.permute.xlu0 %1760
    %1762 = vrot.lane.b32.xlu0 %v1729, 32
    %v1763 = vpop.permute.xlu0 %1762
    %1764 = vrot.lane.b32.xlu0 %v1730, 32
    %v1765 = vpop.permute.xlu0 %1764
    %1766 = vrot.lane.b32.xlu0 %v1731, 32
    %v1767 = vpop.permute.xlu0 %1766
    %1774 = vrot.lane.b32.xlu0 %v1752, 64
    %v1775 = vpop.permute.xlu0 %1774
    %1776 = vrot.lane.b32.xlu0 %v1758, 64
    %v1777 = vpop.permute.xlu0 %1776
    %1778 = vrot.lane.b32.xlu0 %v1755, 64
    %v1779 = vpop.permute.xlu0 %1778
    %1780 = vrot.lane.b32.xlu0 %v1759, 64
    %v1781 = vpop.permute.xlu0 %1780
    %v1786 = vsel %vm93, %v1747, %v1761
    %v1787 = vsel %vm93, %v1739, %v1763
    %v1788 = vsel %vm93, %v1748, %v1765
    %v1789 = vsel %vm93, %v1742, %v1767
    %v1790 = vsel %vm1486, %v1786, %v1775
    %v1791 = vsel %vm1486, %v1787, %v1777
    %v1792 = vsel %vm1486, %v1788, %v1779
    %v1793 = vsel %vm1486, %v1789, %v1781
    %v1794 = vld [vmem:[%s15] sm:$0xf]
    %v1795 = vld [vmem:[%s15 + $0x4] sm:$0xf]
    %v1796 = vld [vmem:[%s15 + $0x8] sm:$0xf]
    %v1797 = vld [vmem:[%s15 + $0xc] sm:$0xf]
    %v1798 = vld [vmem:[%s15 + $0x10] sm:$0xf]
    %v1799 = vld [vmem:[%s15 + $0x14] sm:$0xf]
    %v1800 = vld [vmem:[%s15 + $0x18] sm:$0xf]
    %v1801 = vld [vmem:[%s15 + $0x1c] sm:$0xf]
    %v1802 = vld [vmem:[%s15 + $0x20] sm:$0xf]
    %v1803 = vld [vmem:[%s15 + $0x24] sm:$0xf]
    %v1804 = vld [vmem:[%s15 + $0x28] sm:$0xf]
    %v1805 = vld [vmem:[%s15 + $0x2c] sm:$0xf]
    %v1806 = vpack.c.bf16 %v1791, %v1790
    %v1807 = vpack.c.bf16 %v1793, %v1792
    %v1808 = vld [vmem:[%s16] sm:$0x1]
    %v1810 = vlaneseq
    %v1811 = vshrl.u32 %v1810, 7
    %v1812 = vsub.s32 0, %v1811
    %v1813 = vrot.slane %v1808, %v1812
    %v1827 = vunpack.c.l.b16 %v1794
    %v1828 = vunpack.c.l.b16 %v1795
    %v1829 = vunpack.c.l.b16 %v1796
    %v1830 = vunpack.c.l.b16 %v1797
    %v1831 = vunpack.c.l.b16 %v1798
    %v1832 = vunpack.c.l.b16 %v1799
    %v1833 = vunpack.c.l.b16 %v1800
    %v1834 = vunpack.c.l.b16 %v1801
    %v1835 = vunpack.c.l.b16 %v1802
    %v1836 = vunpack.c.l.b16 %v1803
    %v1837 = vunpack.c.l.b16 %v1804
    %v1838 = vunpack.c.l.b16 %v1805
    %v1839 = vpack.c.b16 %v1828, %v1827
    %v1840 = vpack.c.b16 %v1830, %v1829
    %v1841 = vpack.c.b16 %v1832, %v1831
    %v1842 = vpack.c.b16 %v1834, %v1833
    %v1843 = vpack.c.b16 %v1836, %v1835
    %v1844 = vpack.c.b16 %v1838, %v1837
    %vm1851 = vcmask 785408
    %v1853 = vsel %vm1851, %v1806, 0
    %v1856 = vsel %vm1851, %v1807, 0
    %1858 = vmatprep.subr.bf16.mxu0 0
    %1859 = vmatpush1.bf16.msra.mxu0 %v1839
    %1860 = vmatprep.subr.bf16.mxu0 0
    %1861 = vmatpush1.bf16.msra.mxu0 %v1840
    %1862 = vmatprep.subr.bf16.mxu0 0
    %1863 = vmatpush1.bf16.msra.mxu0 %v1841
    %1864 = vmatprep.subr.bf16.mxu0 0
    %1865 = vmatpush1.bf16.msra.mxu0 %v1842
    %1866 = vmatprep.subr.bf16.mxu0 0
    %1867 = vmatpush1.bf16.msra.mxu0 %v1843
    %1868 = vmatprep.subr.bf16.mxu0 0
    %1869 = vmatpush1.bf16.msra.mxu0 %v1844
    %1870 = vmatprep.subr.bf16.mxu0 0
    %1871 = vmatpush1.bf16.msra.mxu0 0
    %1872 = vmatprep.subr.bf16.mxu0 0
    %1873 = vmatpush1.bf16.msra.mxu0 0
    %1874 = vmatprep.subr.bf16.mxu0 0
    %1875 = vmatpush1.bf16.msra.mxu0 0
    %1876 = vmatprep.subr.bf16.mxu0 0
    %1877 = vmatpush1.bf16.msra.mxu0 0
    %1878 = vmatprep.subr.bf16.mxu0 0
    %1879 = vmatpush1.bf16.msra.mxu0 0
    %1880 = vmatprep.subr.bf16.mxu0 0
    %1881 = vmatpush1.bf16.msra.mxu0 0
    %1882 = vmatprep.subr.bf16.mxu0 0
    %1883 = vmatpush1.bf16.msra.mxu0 0
    %1884 = vmatprep.subr.bf16.mxu0 0
    %1885 = vmatpush1.bf16.msra.mxu0 0
    %1886 = vmatprep.subr.bf16.mxu0 0
    %1887 = vmatpush1.bf16.msra.mxu0 0
    %1888 = vmatprep.subr.bf16.mxu0 0
    %1889 = vmatpush1.bf16.msra.mxu0 0
    %1890 = vmatprep.mubr.bf16.mxu0 0
    %1891 = vmatmul.mubr.bf16.gmra.mrb[0].mxu0 %v1853
    %v1892 = vpop.f32.mrb[0].mxu0
    %v1893 = vadd.f32 %v1813, %v1892
    %v1894 = vpop.f32.mrb[0].mxu0
    %v1895 = vpop.f32.mrb[0].mxu0
    %v1896 = vadd.f32 %v1813, %v1895
    %v1897 = vpop.f32.mrb[0].mxu0
    %1898 = vmatprep.mubr.bf16.mxu0 0
    %1899 = vmatmul.mubr.bf16.gmra.mrb[0].mxu0 %v1856
    %v1900 = vpop.f32.mrb[0].mxu0
    %v1901 = vadd.f32 %v1813, %v1900
    %v1902 = vpop.f32.mrb[0].mxu0
    %v1903 = vpop.f32.mrb[0].mxu0
    %v1904 = vadd.f32 %v1813, %v1903
    %v1905 = vpop.f32.mrb[0].mxu0
    %1906 = vdwg.mxu0
    %v1907 = vmul.f32 %v1893, %v1893
    %v1908 = vmul.f32 %v1896, %v1896
    %v1909 = vmul.f32 %v1901, %v1901
    %v1910 = vmul.f32 %v1904, %v1904
    %v1911 = vmul.f32 %v1893, %v1907
    %v1912 = vmul.f32 %v1896, %v1908
    %v1913 = vmul.f32 %v1901, %v1909
    %v1914 = vmul.f32 %v1904, %v1910
    %v1915 = vmul.f32 %v1911, 0.044715
    %v1916 = vmul.f32 %v1912, 0.044715
    %v1917 = vmul.f32 %v1913, 0.044715
    %v1918 = vmul.f32 %v1914, 0.044715
    %v1919 = vadd.f32 %v1893, %v1915
    %v1920 = vadd.f32 %v1896, %v1916
    %v1921 = vadd.f32 %v1901, %v1917
    %v1922 = vadd.f32 %v1904, %v1918
    %v1923 = vmul.f32 %v1919, 0.7978846
    %v1924 = vmul.f32 %v1920, 0.7978846
    %v1925 = vmul.f32 %v1921, 0.7978846
    %v1926 = vmul.f32 %v1922, 0.7978846
    %v1927 = vtanh.pop %v1923
    %v1928 = vtanh.pop %v1924
    %v1929 = vtanh.pop %v1925
    %v1930 = vtanh.pop %v1926
    %v1931 = vadd.f32 %v1927, 1.0
    %v1932 = vadd.f32 %v1928, 1.0
    %v1933 = vadd.f32 %v1929, 1.0
    %v1934 = vadd.f32 %v1930, 1.0
    %v1935 = vmul.f32 %v1931, 0.5
    %v1936 = vmul.f32 %v1932, 0.5
    %v1937 = vmul.f32 %v1933, 0.5
    %v1938 = vmul.f32 %v1934, 0.5
    %v1939 = vmul.f32 %v1893, %v1935
    %v1940 = vmul.f32 %v1896, %v1936
    %v1941 = vmul.f32 %v1901, %v1937
    %v1942 = vmul.f32 %v1904, %v1938
    %v1947 = vrot.slane %v1939, 7
    %v1948 = vrot.slane %v1940, 7
    %v1949 = vsel %vm1736, %v1947, %v1948
    %v1950 = vrot.slane %v1941, 7
    %v1951 = vrot.slane %v1942, 7
    %v1952 = vsel %vm1736, %v1950, %v1951
    %v1957 = vsel %vm1736, 0.0, %v1947
    %v1958 = vsel %vm1736, 0.0, %v1950
    %v1959 = vrot.slane %v1939, 1
    %v1960 = vrot.slane %v1940, 1
    %v1961 = vsel %vm1749, %v1959, %v1960
    %v1962 = vrot.slane %v1941, 1
    %v1963 = vrot.slane %v1942, 1
    %v1964 = vsel %vm1749, %v1962, %v1963
    %v1967 = vsel %vm1749, %v1960, 0.0
    %v1968 = vsel %vm1749, %v1963, 0.0
    %1969 = vrot.lane.b32.xlu0 %v1939, 32
    %v1970 = vpop.permute.xlu0 %1969
    %1971 = vrot.lane.b32.xlu0 %v1940, 32
    %v1972 = vpop.permute.xlu0 %1971
    %1973 = vrot.lane.b32.xlu0 %v1941, 32
    %v1974 = vpop.permute.xlu0 %1973
    %1975 = vrot.lane.b32.xlu0 %v1942, 32
    %v1976 = vpop.permute.xlu0 %1975
    %1983 = vrot.lane.b32.xlu0 %v1961, 64
    %v1984 = vpop.permute.xlu0 %1983
    %1985 = vrot.lane.b32.xlu0 %v1967, 64
    %v1986 = vpop.permute.xlu0 %1985
    %1987 = vrot.lane.b32.xlu0 %v1964, 64
    %v1988 = vpop.permute.xlu0 %1987
    %1989 = vrot.lane.b32.xlu0 %v1968, 64
    %v1990 = vpop.permute.xlu0 %1989
    %v1995 = vsel %vm93, %v1957, %v1970
    %v1996 = vsel %vm93, %v1949, %v1972
    %v1997 = vsel %vm93, %v1958, %v1974
    %v1998 = vsel %vm93, %v1952, %v1976
    %v1999 = vsel %vm1486, %v1995, %v1984
    %v2000 = vsel %vm1486, %v1996, %v1986
    %v2001 = vsel %vm1486, %v1997, %v1988
    %v2002 = vsel %vm1486, %v1998, %v1990
    %v2003 = vld [vmem:[%s17] sm:$0xf]
    %v2004 = vld [vmem:[%s17 + $0x4] sm:$0xf]
    %v2005 = vld [vmem:[%s17 + $0x8] sm:$0xf]
    %v2006 = vld [vmem:[%s17 + $0xc] sm:$0xf]
    %v2007 = vld [vmem:[%s17 + $0x10] sm:$0xf]
    %v2008 = vld [vmem:[%s17 + $0x14] sm:$0xf]
    %v2009 = vld [vmem:[%s17 + $0x18] sm:$0xf]
    %v2010 = vld [vmem:[%s17 + $0x1c] sm:$0xf]
    %v2011 = vld [vmem:[%s17 + $0x20] sm:$0xf]
    %v2012 = vld [vmem:[%s17 + $0x24] sm:$0xf]
    %v2013 = vld [vmem:[%s17 + $0x28] sm:$0xf]
    %v2014 = vld [vmem:[%s17 + $0x2c] sm:$0xf]
    %v2015 = vpack.c.bf16 %v2000, %v1999
    %v2016 = vpack.c.bf16 %v2002, %v2001
    %v2017 = vld [vmem:[%s18] sm:$0x1]
    %v2019 = vlaneseq
    %v2020 = vshrl.u32 %v2019, 7
    %v2021 = vsub.s32 0, %v2020
    %v2022 = vrot.slane %v2017, %v2021
    %v2036 = vunpack.c.l.b16 %v2003
    %v2037 = vunpack.c.l.b16 %v2004
    %v2038 = vunpack.c.l.b16 %v2005
    %v2039 = vunpack.c.l.b16 %v2006
    %v2040 = vunpack.c.l.b16 %v2007
    %v2041 = vunpack.c.l.b16 %v2008
    %v2042 = vunpack.c.l.b16 %v2009
    %v2043 = vunpack.c.l.b16 %v2010
    %v2044 = vunpack.c.l.b16 %v2011
    %v2045 = vunpack.c.l.b16 %v2012
    %v2046 = vunpack.c.l.b16 %v2013
    %v2047 = vunpack.c.l.b16 %v2014
    %v2048 = vpack.c.b16 %v2037, %v2036
    %v2049 = vpack.c.b16 %v2039, %v2038
    %v2050 = vpack.c.b16 %v2041, %v2040
    %v2051 = vpack.c.b16 %v2043, %v2042
    %v2052 = vpack.c.b16 %v2045, %v2044
    %v2053 = vpack.c.b16 %v2047, %v2046
    %v2061 = vsel %vm1851, %v2015, 0
    %v2064 = vsel %vm1851, %v2016, 0
    %2066 = vmatprep.subr.bf16.mxu0 0
    %2067 = vmatpush1.bf16.msra.mxu0 %v2048
    %2068 = vmatprep.subr.bf16.mxu0 0
    %2069 = vmatpush1.bf16.msra.mxu0 %v2049
    %2070 = vmatprep.subr.bf16.mxu0 0
    %2071 = vmatpush1.bf16.msra.mxu0 %v2050
    %2072 = vmatprep.subr.bf16.mxu0 0
    %2073 = vmatpush1.bf16.msra.mxu0 %v2051
    %2074 = vmatprep.subr.bf16.mxu0 0
    %2075 = vmatpush1.bf16.msra.mxu0 %v2052
    %2076 = vmatprep.subr.bf16.mxu0 0
    %2077 = vmatpush1.bf16.msra.mxu0 %v2053
    %2078 = vmatprep.subr.bf16.mxu0 0
    %2079 = vmatpush1.bf16.msra.mxu0 0
    %2080 = vmatprep.subr.bf16.mxu0 0
    %2081 = vmatpush1.bf16.msra.mxu0 0
    %2082 = vmatprep.subr.bf16.mxu0 0
    %2083 = vmatpush1.bf16.msra.mxu0 0
    %2084 = vmatprep.subr.bf16.mxu0 0
    %2085 = vmatpush1.bf16.msra.mxu0 0
    %2086 = vmatprep.subr.bf16.mxu0 0
    %2087 = vmatpush1.bf16.msra.mxu0 0
    %2088 = vmatprep.subr.bf16.mxu0 0
    %2089 = vmatpush1.bf16.msra.mxu0 0
    %2090 = vmatprep.subr.bf16.mxu0 0
    %2091 = vmatpush1.bf16.msra.mxu0 0
    %2092 = vmatprep.subr.bf16.mxu0 0
    %2093 = vmatpush1.bf16.msra.mxu0 0
    %2094 = vmatprep.subr.bf16.mxu0 0
    %2095 = vmatpush1.bf16.msra.mxu0 0
    %2096 = vmatprep.subr.bf16.mxu0 0
    %2097 = vmatpush1.bf16.msra.mxu0 0
    %2098 = vmatprep.mubr.bf16.mxu0 0
    %2099 = vmatmul.mubr.bf16.gmra.mrb[0].mxu0 %v2061
    %v2100 = vpop.f32.mrb[0].mxu0
    %v2101 = vadd.f32 %v2022, %v2100
    %v2102 = vpop.f32.mrb[0].mxu0
    %v2103 = vpop.f32.mrb[0].mxu0
    %v2104 = vadd.f32 %v2022, %v2103
    %v2105 = vpop.f32.mrb[0].mxu0
    %2106 = vmatprep.mubr.bf16.mxu0 0
    %2107 = vmatmul.mubr.bf16.gmra.mrb[0].mxu0 %v2064
    %v2108 = vpop.f32.mrb[0].mxu0
    %v2109 = vadd.f32 %v2022, %v2108
    %v2110 = vpop.f32.mrb[0].mxu0
    %v2111 = vpop.f32.mrb[0].mxu0
    %v2112 = vadd.f32 %v2022, %v2111
    %v2113 = vpop.f32.mrb[0].mxu0
    %2114 = vdwg.mxu0
    %v2115 = vadd.f32 %v2101, %v1682
    %v2116 = vadd.f32 %v2104, %v1685
    %v2117 = vadd.f32 %v2109, %v1690
    %v2118 = vadd.f32 %v2112, %v1693
    %2119 = vst.msk [vmem:[#allocation2] sm:$0xff] %vm93, %v2115
    %2120 = vst.msk [vmem:[#allocation2 + $0x8] sm:$0xff] %vm93, %v2116
    %2121 = vst.msk [vmem:[#allocation2 + $0x10] sm:$0xff] %vm93, %v2117
    %2122 = vst.msk [vmem:[#allocation2 + $0x18] sm:$0xff] %vm93, %v2118
    // Predicated region
    $region78: #{tst_encoder.3} parent=1 // pred_check
      _
    $region79: #{tst_encoder.3} parent=1 // pred_check_branch
      %2124 = sbr.rel (0) target = $region81
    $region80: #{tst_encoder.3} parent=1 // pred_region
      %s2126 = ssub.s32 512, 512
      %2127 = vsyncadd [#allocation3], %s2126
      %s2128 = sshll.u32 [#allocation2], 4
      %s2129 = int_to_ptr.vmem [resolvable:$true] %s2128
      %2134 = dma.vmem_to_hbm [thread:$0]  %s2129, 512, %s19, [#allocation3], 128, 128, 8
    $region81: #{tst_encoder.3} parent=1 // pred_fallthru
      _
    // Predicated region
    $region82: #{tst_encoder.3} parent=1 // pred_check
      _
    $region83: #{tst_encoder.3} parent=1 // pred_check_branch
      %2136 = sbr.rel (0) target = $region85
    $region84: #{tst_encoder.3} parent=1 // pred_region
      %2137 = dma.done [#allocation3], 512
    $region85: #{tst_encoder.3} parent=1 // pred_fallthru
      _
    %2138 = vsyncpa [#allocation3], 1

</llo_original>
